<compile_context>
chip_gen: v5e
topology: v5e:2x2
jax: 0.10.0
libtpu: 0.0.40
codegen_flags: <defaults>
</compile_context>

<pallas_src>
import functools
import math

import jax
import jax.numpy as jnp
from jax import lax
from jax.experimental import pallas as pl
from jax.experimental.pallas import tpu as pltpu

F32 = jnp.float32
BF16 = jnp.bfloat16
# <= 48 MiB double-buffered budget: safe on v7x (64 MiB physical) and above the
# v5e/v6e scoped defaults (16/32 MiB).
VMEM_LIMIT = 48 * 1024 * 1024


def _round_up(x, m):
    return ((x + m - 1) // m) * m


def _pick_tile(dim, max_tile, align):
    """Return (tile, padded_dim): prefer the full dim, else an aligned exact divisor,
    else an aligned tile with padding (rare fallback)."""
    if dim <= max_tile:
        return dim, dim
    t = (max_tile // align) * align
    while t >= align:
        if dim % t == 0:
            return t, dim
        t -= align
    t = (max_tile // align) * align
    return t, _round_up(dim, t)


def _gelu(x):
    # TODO(synk): reference uses exact erf-based gelu; tanh approximation used here
    # (EUP-friendly, guaranteed Mosaic lowering); delta ~1e-3, below bf16 noise.
    c = jnp.float32(math.sqrt(2.0 / math.pi))
    return 0.5 * x * (1.0 + jnp.tanh(c * (x + jnp.float32(0.044715) * x * x * x)))


def _apply_act(y, act):
    if act == "gelu":
        return _gelu(y)
    if act == "tanh":
        return jnp.tanh(y)
    return y


# ----------------------------- Pallas kernels ------------------------------

def _linear_kernel(x_ref, w_ref, b_ref, o_ref, *, act):
    y = jnp.dot(x_ref[...], w_ref[...], preferred_element_type=jnp.float32)
    o_ref[...] = _apply_act(y + b_ref[...], act).astype(o_ref.dtype)


def _linear_acc_kernel(x_ref, w_ref, b_ref, o_ref, acc_ref, *, act):
    @pl.when(pl.program_id(2) == 0)
    def _():
        acc_ref[...] = jnp.zeros_like(acc_ref)

    acc_ref[...] += jnp.dot(x_ref[...], w_ref[...],
                            preferred_element_type=jnp.float32)

    @pl.when(pl.program_id(2) == pl.num_programs(2) - 1)
    def _():
        o_ref[...] = _apply_act(acc_ref[...] + b_ref[...], act).astype(o_ref.dtype)


def linear_pallas(x, w, b, act="none", out_dtype=BF16,
                  tm_max=512, tn_max=1024, tk_max=4096):
    """y = act(x @ w + b); bf16 MXU inputs, f32 accumulation, bf16 (default) output."""
    in_shape = x.shape
    K = in_shape[-1]
    M = int(math.prod(in_shape[:-1]))
    N = w.shape[1]

    x2 = x.reshape(M, K).astype(BF16)
    wb = w.astype(BF16)
    bf = b.reshape(1, N).astype(F32)

    tm, Mp = _pick_tile(M, tm_max, 8)
    tn, Np = _pick_tile(N, tn_max, 128)
    if Mp != M:
        x2 = jnp.pad(x2, ((0, Mp - M), (0, 0)))
    if Np != N:
        wb = jnp.pad(wb, ((0, 0), (0, Np - N)))
        bf = jnp.pad(bf, ((0, 0), (0, Np - N)))

    if K <= tk_max:
        out = pl.pallas_call(
            functools.partial(_linear_kernel, act=act),
            out_shape=jax.ShapeDtypeStruct((Mp, Np), out_dtype),
            grid=(Mp // tm, Np // tn),
            in_specs=[pl.BlockSpec((tm, K), lambda i, j: (i, 0)),
                      pl.BlockSpec((K, tn), lambda i, j: (0, j)),
                      pl.BlockSpec((1, tn), lambda i, j: (0, j))],
            out_specs=pl.BlockSpec((tm, tn), lambda i, j: (i, j)),
            compiler_params=pltpu.CompilerParams(
                dimension_semantics=("parallel", "parallel"),
                vmem_limit_bytes=VMEM_LIMIT),
        )(x2, wb, bf)
    else:
        tk, Kp = _pick_tile(K, tk_max, 128)
        if Kp != K:
            x2 = jnp.pad(x2, ((0, 0), (0, Kp - K)))
            wb = jnp.pad(wb, ((0, Kp - K), (0, 0)))
        out = pl.pallas_call(
            functools.partial(_linear_acc_kernel, act=act),
            out_shape=jax.ShapeDtypeStruct((Mp, Np), out_dtype),
            grid=(Mp // tm, Np // tn, Kp // tk),
            in_specs=[pl.BlockSpec((tm, tk), lambda i, j, k: (i, k)),
                      pl.BlockSpec((tk, tn), lambda i, j, k: (k, j)),
                      pl.BlockSpec((1, tn), lambda i, j, k: (0, j))],
            out_specs=pl.BlockSpec((tm, tn), lambda i, j, k: (i, j)),
            scratch_shapes=[pltpu.VMEM((tm, tn), jnp.float32)],
            compiler_params=pltpu.CompilerParams(
                dimension_semantics=("parallel", "parallel", "arbitrary"),
                vmem_limit_bytes=VMEM_LIMIT),
        )(x2, wb, bf)

    if Mp != M or Np != N:
        out = out[:M, :N]
    return out.reshape(in_shape[:-1] + (N,))


def _linear2_kernel(x1_ref, w1_ref, x2_ref, w2_ref, b_ref, o_ref, *, act):
    y = jnp.dot(x1_ref[...], w1_ref[...], preferred_element_type=jnp.float32)
    y = y + jnp.dot(x2_ref[...], w2_ref[...], preferred_element_type=jnp.float32)
    o_ref[...] = _apply_act(y + b_ref[...], act).astype(o_ref.dtype)


def linear2_pallas(x1, w1, x2, w2, b, act="none", out_dtype=BF16,
                   tm_max=512, tn_max=1024):
    """y = act(x1 @ w1 + x2 @ w2 + b); avoids materializing concat([x1, x2])."""
    in_shape = x1.shape
    K1, K2 = x1.shape[-1], x2.shape[-1]
    M = int(math.prod(in_shape[:-1]))
    N = w1.shape[1]

    a1 = x1.reshape(M, K1).astype(BF16)
    a2 = x2.reshape(M, K2).astype(BF16)
    wb1, wb2 = w1.astype(BF16), w2.astype(BF16)
    bf = b.reshape(1, N).astype(F32)

    tm, Mp = _pick_tile(M, tm_max, 8)
    tn, Np = _pick_tile(N, tn_max, 128)
    if Mp != M:
        a1 = jnp.pad(a1, ((0, Mp - M), (0, 0)))
        a2 = jnp.pad(a2, ((0, Mp - M), (0, 0)))
    if Np != N:
        wb1 = jnp.pad(wb1, ((0, 0), (0, Np - N)))
        wb2 = jnp.pad(wb2, ((0, 0), (0, Np - N)))
        bf = jnp.pad(bf, ((0, 0), (0, Np - N)))

    out = pl.pallas_call(
        functools.partial(_linear2_kernel, act=act),
        out_shape=jax.ShapeDtypeStruct((Mp, Np), out_dtype),
        grid=(Mp // tm, Np // tn),
        in_specs=[pl.BlockSpec((tm, K1), lambda i, j: (i, 0)),
                  pl.BlockSpec((K1, tn), lambda i, j: (0, j)),
                  pl.BlockSpec((tm, K2), lambda i, j: (i, 0)),
                  pl.BlockSpec((K2, tn), lambda i, j: (0, j)),
                  pl.BlockSpec((1, tn), lambda i, j: (0, j))],
        out_specs=pl.BlockSpec((tm, tn), lambda i, j: (i, j)),
        compiler_params=pltpu.CompilerParams(
            dimension_semantics=("parallel", "parallel"),
            vmem_limit_bytes=VMEM_LIMIT),
    )(a1, wb1, a2, wb2, bf)

    if Mp != M or Np != N:
        out = out[:M, :N]
    return out.reshape(in_shape[:-1] + (N,))


def _layernorm_kernel(x_ref, g_ref, b_ref, o_ref, *, eps):
    x = x_ref[...].astype(jnp.float32)
    u = jnp.mean(x, axis=-1, keepdims=True)
    s = jnp.mean((x - u) ** 2, axis=-1, keepdims=True)
    xn = (x - u) / jnp.sqrt(s + eps)
    o_ref[...] = (xn * g_ref[...] + b_ref[...]).astype(o_ref.dtype)


def _layernorm_res_kernel(x_ref, r_ref, g_ref, b_ref, o_ref, *, eps):
    x = x_ref[...].astype(jnp.float32) + r_ref[...].astype(jnp.float32)
    u = jnp.mean(x, axis=-1, keepdims=True)
    s = jnp.mean((x - u) ** 2, axis=-1, keepdims=True)
    xn = (x - u) / jnp.sqrt(s + eps)
    o_ref[...] = (xn * g_ref[...] + b_ref[...]).astype(o_ref.dtype)


def layernorm_pallas(x, gamma, beta, residual=None, eps=1e-12, out_dtype=BF16,
                     tm_max=512):
    in_shape = x.shape
    D = in_shape[-1]
    M = int(math.prod(in_shape[:-1]))
    tm, Mp = _pick_tile(M, tm_max, 8)

    xs = x.reshape(M, D)
    if Mp != M:
        xs = jnp.pad(xs, ((0, Mp - M), (0, 0)))
    inputs = [xs]
    specs = [pl.BlockSpec((tm, D), lambda i: (i, 0))]
    kern = _layernorm_kernel
    if residual is not None:
        rs = residual.reshape(M, D)
        if Mp != M:
            rs = jnp.pad(rs, ((0, Mp - M), (0, 0)))
        inputs.append(rs)
        specs.append(pl.BlockSpec((tm, D), lambda i: (i, 0)))
        kern = _layernorm_res_kernel
    inputs += [gamma.reshape(1, D).astype(F32), beta.reshape(1, D).astype(F32)]
    specs += [pl.BlockSpec((1, D), lambda i: (0, 0)),
              pl.BlockSpec((1, D), lambda i: (0, 0))]

    out = pl.pallas_call(
        functools.partial(kern, eps=eps),
        out_shape=jax.ShapeDtypeStruct((Mp, D), out_dtype),
        grid=(Mp // tm,),
        in_specs=specs,
        out_specs=pl.BlockSpec((tm, D), lambda i: (i, 0)),
        compiler_params=pltpu.CompilerParams(
            dimension_semantics=("parallel",),
            vmem_limit_bytes=VMEM_LIMIT),
    )(*inputs)
    if Mp != M:
        out = out[:M]
    return out.reshape(in_shape)


def _mha_kernel(qkv_ref, m_ref, o_ref, *, num_heads, scale):
    # qkv_ref: (1, S, 3H) bf16; heads split via static lane slices; output is the
    # merged-head lane-dense (1, S, H) tile.  Per-head loop keeps only one (S, S)
    # f32 logits tile live at a time (v7x 64 MiB VMEM safe).
    qkv = qkv_ref[0]                           # (S, 3H)
    H = qkv.shape[-1] // 3
    dh = H // num_heads
    mask = m_ref[0]                            # (1, S) -> broadcasts over (Sq, Sk)
    dn = (((1,), (1,)), ((), ()))              # q @ k^T (contract head_dim)
    ctx = []
    for h in range(num_heads):
        qh = qkv[:, h * dh:(h + 1) * dh]
        kh = qkv[:, H + h * dh:H + (h + 1) * dh]
        vh = qkv[:, 2 * H + h * dh:2 * H + (h + 1) * dh]
        s = lax.dot_general(qh, kh, dn, preferred_element_type=jnp.float32)
        s = s * scale + mask
        s = s - jnp.max(s, axis=-1, keepdims=True)
        p = jnp.exp(s)
        p = p / jnp.sum(p, axis=-1, keepdims=True)      # exact division
        ctx.append(jnp.dot(p.astype(vh.dtype), vh,
                           preferred_element_type=jnp.float32))
    o_ref[0] = jnp.concatenate(ctx, axis=-1).astype(o_ref.dtype)


def mha_pallas(qkv, mask, num_heads):
    # TODO(synk): for very long sequences add a kv-tile (flash-style) grid axis so the
    # per-head (S,S) logits tile and the full-S qkv block stay within VMEM.
    B, S, H3 = qkv.shape
    H = H3 // 3
    dh = H // num_heads
    return pl.pallas_call(
        functools.partial(_mha_kernel, num_heads=num_heads,
                          scale=1.0 / math.sqrt(dh)),
        out_shape=jax.ShapeDtypeStruct((B, S, H), BF16),
        grid=(B,),
        in_specs=[pl.BlockSpec((1, S, H3), lambda b: (b, 0, 0)),
                  pl.BlockSpec((1, 1, S), lambda b: (b, 0, 0))],
        out_specs=pl.BlockSpec((1, S, H), lambda b: (b, 0, 0)),
        compiler_params=pltpu.CompilerParams(
            dimension_semantics=("parallel",),
            vmem_limit_bytes=VMEM_LIMIT),
    )(qkv.astype(BF16), mask.astype(F32))


def _dk_fusion_kernel(q_ref, k_ref, v_ref, o_ref, *, k_v_dim, nb):
    # CokeBert dynamic-knowledge graph attention (reconstructed DK_fusion):
    # att = (q*k).sum(-1)/sqrt(d); masked_fill(att==0, -1e4); softmax(LeakyReLU(att));
    # masked_fill(att==1/nb, 0); out = att @ v
    # TODO(synk): last dim (k_v_dim) << 128 lanes -> lane-masked vector work; fine as
    # long as the DK path is cold.
    q = q_ref[...]                             # (tn, D)
    k = k_ref[...]                             # (tn, nb, D)
    v = v_ref[...]                             # (tn, nb, Dv)
    att = jnp.sum(q[:, None, :] * k, axis=-1) / jnp.sqrt(jnp.float32(k_v_dim))
    att = jnp.where(att == 0.0, jnp.float32(-10000.0), att)
    att = jnp.where(att >= 0.0, att, jnp.float32(0.01) * att)      # LeakyReLU(0.01)
    att = att - jnp.max(att, axis=-1, keepdims=True)
    p = jnp.exp(att)
    p = p / jnp.sum(p, axis=-1, keepdims=True)
    p = jnp.where(p == jnp.float32(1.0 / nb), 0.0, p)
    o_ref[...] = jnp.sum(p[:, :, None] * v, axis=1)


def dk_fusion_pallas(q, k, v, k_v_dim, tn_max=256):
    N, nb, D = k.shape
    Dv = v.shape[-1]
    tn, Np = _pick_tile(N, tn_max, 8)
    if Np != N:
        q = jnp.pad(q, ((0, Np - N), (0, 0)))
        k = jnp.pad(k, ((0, Np - N), (0, 0), (0, 0)))
        v = jnp.pad(v, ((0, Np - N), (0, 0), (0, 0)))
    out = pl.pallas_call(
        functools.partial(_dk_fusion_kernel, k_v_dim=k_v_dim, nb=nb),
        out_shape=jax.ShapeDtypeStruct((Np, Dv), F32),
        grid=(Np // tn,),
        in_specs=[pl.BlockSpec((tn, D), lambda i: (i, 0)),
                  pl.BlockSpec((tn, nb, D), lambda i: (i, 0, 0)),
                  pl.BlockSpec((tn, nb, Dv), lambda i: (i, 0, 0))],
        out_specs=pl.BlockSpec((tn, Dv), lambda i: (i, 0)),
        compiler_params=pltpu.CompilerParams(
            dimension_semantics=("parallel",),
            vmem_limit_bytes=VMEM_LIMIT),
    )(q.astype(F32), k.astype(F32), v.astype(F32))
    return out[:N]


# --------------------------- model building blocks --------------------------

def self_attention_block(p, x, ext_mask, num_heads):
    qkv = linear_pallas(x, p['qkv_w'], p['qkv_b'])          # fused QKV, bf16
    ctx = mha_pallas(qkv, ext_mask, num_heads)               # (B, S, H) bf16, lane-dense
    out = linear_pallas(ctx, p['out_w'], p['out_b'])
    return layernorm_pallas(out, p['ln_g'], p['ln_b'], residual=x)


def sim_layer_fwd(p, x, ext_mask, x_ent, num_heads):
    a = self_attention_block(p['attn'], x, ext_mask, num_heads)
    inter = linear_pallas(a, p['inter_w'], p['inter_b'], act='gelu')
    out = linear_pallas(inter, p['out_w'], p['out_b'])
    out = layernorm_pallas(out, p['out_ln_g'], p['out_ln_b'], residual=a)
    return out, x_ent


def mix_layer_fwd(p, x, ext_mask, x_ent, ent_mask_e, num_heads):
    a = self_attention_block(p['attn'], x, ext_mask, num_heads)
    a_ent = (x_ent * ent_mask_e).astype(BF16)
    # dense(a) + dense_ent(a_ent) then gelu, without concatenating activations in HBM
    inter = linear2_pallas(a, p['inter_w'], a_ent, p['inter_ent_w'],
                           p['inter_b2'], act='gelu')
    out = linear_pallas(inter, p['out_w'], p['out_b'])
    out = layernorm_pallas(out, p['out_ln_g'], p['out_ln_b'], residual=a)
    out_ent = linear_pallas(inter, p['out_ent_w'], p['out_ent_b'])
    out_ent = layernorm_pallas(out_ent, p['out_ent_ln_g'], p['out_ent_ln_b'],
                               residual=a_ent)
    return out, out_ent


def dk_encoder_fwd(p, input_ent, hidden_states, k_v_s, k_v_dim):
    q = hidden_states[:, 0, :]                                 # [B, q_dim]
    combined = None
    for i, lp in enumerate(p['layers']):                       # layer_no = n..1
        k, v = k_v_s[-(i + 1)]
        v = v.astype(F32)
        if i != 0:
            v = jnp.concatenate([v, combined], axis=-1)
        # DK_text: tanh(q_linear(q)), broadcast over entity/neighbor dims
        q_i = linear_pallas(q, lp['q_w'], lp['q_b'], act='tanh', out_dtype=F32)
        # DK_knowledge: k_v_linear(k), no bias
        k_lin = linear_pallas(k, lp['k_w'], lp['k_b'], out_dtype=F32)
        lead, nb = k.shape[:-2], k.shape[-2]
        N = int(math.prod(lead))
        k_flat = k_lin.reshape(N, nb, k_v_dim)
        v_flat = v.reshape(N, nb, v.shape[-1])
        q_full = jnp.broadcast_to(
            q_i.reshape((q_i.shape[0],) + (1,) * (len(lead) - 1) + (k_v_dim,)),
            lead + (k_v_dim,)).reshape(N, k_v_dim)
        combined = dk_fusion_pallas(q_full, k_flat, v_flat, k_v_dim
                                    ).reshape(lead + (v.shape[-1],))
    # Scatter entity reps back to token positions (torch.nonzero loop in reference).
    # TODO(synk): assumes each entity row of input_ent has exactly one nonzero element,
    # matching the reference's enumeration of torch.nonzero(input_ent).
    ent_rows = jnp.any(input_ent != 0, axis=-1)                # [B, S]
    idx = jnp.cumsum(ent_rows.astype(jnp.int32), axis=1) - 1
    idx = jnp.clip(idx, 0, combined.shape[1] - 1)
    gathered = jnp.take_along_axis(combined, idx[:, :, None], axis=1)
    return jnp.where(ent_rows[:, :, None], gathered, 0.0)


def cokebert_forward(params, cfg, input_ids, token_type_ids, attention_mask,
                     input_ent, ent_mask, k_v_s):
    if attention_mask is None:
        attention_mask = jnp.ones_like(input_ids)
    if token_type_ids is None:
        token_type_ids = jnp.zeros_like(input_ids)
    ext_attn_mask = (1.0 - attention_mask[:, None, :].astype(F32)) * -10000.0  # (B,1,S)
    # extended_ent_mask would only be used by 'norm' ERNIE layers (not implemented)
    ent_mask_f = ent_mask.astype(F32)

    # BertEmbeddings
    pe = params['embeddings']
    emb = (pe['word'][input_ids]
           + pe['pos'][jnp.arange(input_ids.shape[1])[None, :]]
           + pe['tok'][token_type_ids])
    emb = layernorm_pallas(emb, pe['ln_g'], pe['ln_b'])

    nh = cfg['num_attention_heads']
    # text encoder ('sim' layers): entity states pass through untouched
    hs, hs_ent = emb, input_ent.astype(F32)
    for lp in params['text_layers']:
        hs, hs_ent = sim_layer_fwd(lp, hs, ext_attn_mask, hs_ent, nh)
    hidden_states = hs

    # DK encoder (always executed; zeroed on device if no entities -> no host sync)
    # NOTE: DKEncoder output width is 2*k_v_dim (== entity_size for the reference cfg).
    dk_out = dk_encoder_fwd(params['dk'], input_ent, hidden_states, k_v_s,
                            cfg['k_v_dim'])
    hidden_states_ent = jnp.where(jnp.any(input_ent != 0), dk_out,
                                  jnp.zeros_like(dk_out))

    # knowledge encoder ('mix' layers)
    ent_mask_e = ent_mask_f[:, :, None]
    hs, he = hidden_states, hidden_states_ent
    for lp in params['knowl_layers']:
        hs, he = mix_layer_fwd(lp, hs, ext_attn_mask, he, ent_mask_e, nh)
    sequence_output = hs.astype(F32)

    # BertPooler: dense + tanh on [CLS]
    pooled_output = linear_pallas(sequence_output[:, 0, :],
                                  params['pooler']['w'], params['pooler']['b'],
                                  act='tanh', out_dtype=F32)
    return sequence_output, pooled_output


# ------------------------------- parameters --------------------------------

class KeyGen:
    def __init__(self, seed=0):
        self.key = jax.random.PRNGKey(seed)

    def __call__(self):
        self.key, sub = jax.random.split(self.key)
        return sub


def make_params(cfg):
    """Weights are pre-cast to bf16 and pre-fused (QKV concat, mix-layer bias sum) so
    no per-forward re-pad / re-cast / concat of weights is needed."""
    kg = KeyGen(0)
    std = cfg['initializer_range']
    H, I, E = cfg['hidden_size'], cfg['intermediate_size'], cfg['entity_size']
    kv, qd = cfg['k_v_dim'], cfg['q_dim']

    def w(din, dout):
        return (jax.random.normal(kg(), (din, dout), F32) * std).astype(BF16)

    zeros = lambda d: jnp.zeros((d,), F32)
    ones = lambda d: jnp.ones((d,), F32)

    def attn_params():
        return dict(qkv_w=jnp.concatenate([w(H, H), w(H, H), w(H, H)], axis=1),
                    qkv_b=zeros(3 * H),
                    out_w=w(H, H), out_b=zeros(H),
                    ln_g=ones(H), ln_b=zeros(H))

    def sim_layer_params():
        return dict(attn=attn_params(),
                    inter_w=w(H, I), inter_b=zeros(I),
                    out_w=w(I, H), out_b=zeros(H),
                    out_ln_g=ones(H), out_ln_b=zeros(H))

    def mix_layer_params():
        return dict(attn=attn_params(),
                    inter_w=w(H, I), inter_ent_w=w(E, I),
                    inter_b2=zeros(I),              # inter_b + inter_ent_b (both zero)
                    out_w=w(I, H), out_b=zeros(H),
                    out_ln_g=ones(H), out_ln_b=zeros(H),
                    out_ent_w=w(I, E), out_ent_b=zeros(E),
                    out_ent_ln_g=ones(E), out_ent_ln_b=zeros(E))

    n_sim = sum(1 for t in cfg['layer_types'] if t == 'sim')
    n_knowl = sum(1 for t in cfg['layer_types'] if t != 'sim')

    return dict(
        embeddings=dict(
            word=jax.random.normal(kg(), (cfg['vocab_size'], H), F32) * std,
            pos=jax.random.normal(kg(), (cfg['max_position_embeddings'], H), F32) * std,
            tok=jax.random.normal(kg(), (cfg['type_vocab_size'], H), F32) * std,
            ln_g=ones(H), ln_b=zeros(H)),
        text_layers=[sim_layer_params() for _ in range(n_sim)],
        knowl_layers=[mix_layer_params() for _ in range(n_knowl)],
        dk=dict(layers=[dict(q_w=w(qd, kv), q_b=zeros(kv),
                             k_w=w(kv, kv), k_b=zeros(kv))
                        for _ in range(cfg['dk_layers'])]),
        pooler=dict(w=w(H, H), b=zeros(H)),
    )


# ---------------------------------- main ------------------------------------

if __name__ == "__main__":
    cfg = dict(vocab_size=50, hidden_size=32, entity_size=16, num_attention_heads=4,
               num_attention_heads_ent=2, intermediate_size=64,
               max_position_embeddings=64, type_vocab_size=2, initializer_range=0.02,
               layer_types=['sim', 'mix'], k_v_dim=8, q_dim=32, dk_layers=2)
    assert cfg['entity_size'] == 2 * cfg['k_v_dim']   # DKEncoder output width
    params = make_params(cfg)

    key = jax.random.PRNGKey(0)
    k1, k2, k3, k4, k5 = jax.random.split(key, 5)
    B, S = 2, 8
    EMB_ENT = 8                      # entity embedding width of input_ent
    MAX_ENT, NB1, NB2 = 3, 4, 4      # entities per example / 1-hop / 2-hop neighbors

    input_ids = jax.random.randint(k1, (B, S), 1, cfg['vocab_size'])
    token_type_ids = jnp.zeros((B, S), jnp.int32)
    attention_mask = jnp.ones((B, S), jnp.int32)

    # entity positions: batch 0 -> tokens {1,4}; batch 1 -> tokens {2,5,6}
    input_ent = jnp.zeros((B, S, EMB_ENT), F32)
    ent_mask = jnp.zeros((B, S), jnp.int32)
    for b, positions in enumerate([[1, 4], [2, 5, 6]]):
        for pos in positions:
            input_ent = input_ent.at[b, pos, 0].set(1.0)
            ent_mask = ent_mask.at[b, pos].set(1)

    kv = cfg['k_v_dim']
    k_hop1 = jax.random.normal(k2, (B, MAX_ENT, NB1, kv), F32)
    v_hop1 = jax.random.normal(k3, (B, MAX_ENT, NB1, kv), F32)
    k_hop2 = jax.random.normal(k4, (B, MAX_ENT, NB1, NB2, kv), F32)
    v_hop2 = jax.random.normal(k5, (B, MAX_ENT, NB1, NB2, kv), F32)
    k_v_s = ((k_hop1, v_hop1), (k_hop2, v_hop2))   # k_v_s[-1] (deepest hop) used first

    fwd = jax.jit(lambda p, ids, tt, am, ie, em, kvs:
                  cokebert_forward(p, cfg, ids, tt, am, ie, em, kvs))
    seq_out, pooled = fwd(params, input_ids, token_type_ids, attention_mask,
                          input_ent, ent_mask, k_v_s)
    jax.block_until_ready((seq_out, pooled))
    assert seq_out.shape == (B, S, cfg['hidden_size'])
    assert pooled.shape == (B, cfg['hidden_size'])
    print("KERNEL_OK")
</pallas_src>

<mosaic_0001>
module attributes {stable_mosaic.version = 11 : i64} {
  func.func @_linear_kernel(%arg0: i32, %arg1: i32, %arg2: memref<16x32xbf16, #tpu.memory_space<vmem>>, %arg3: memref<32x96xbf16, #tpu.memory_space<vmem>>, %arg4: memref<1x96xf32, #tpu.memory_space<vmem>>, %arg5: memref<16x96xbf16, #tpu.memory_space<vmem>>) attributes {dimension_semantics = [#tpu.dimension_semantics<parallel>, #tpu.dimension_semantics<parallel>], iteration_bounds = array<i64: 1, 1>, scalar_prefetch = 0 : i64, scratch_operands = 0 : i64, tpu.core_type = #tpu.core_type<tc>, window_params = [{transform_indices = @transform_0, window_bounds = array<i64: 16, 32>}, {transform_indices = @transform_1, window_bounds = array<i64: 32, 96>}, {transform_indices = @transform_2, window_bounds = array<i64: 1, 96>}, {transform_indices = @transform_3, window_bounds = array<i64: 16, 96>}]} {
    %c0 = arith.constant 0 : index
    %c0_0 = arith.constant 0 : index
    %0 = vector.load %arg2[%c0, %c0_0] : memref<16x32xbf16, #tpu.memory_space<vmem>>, vector<16x32xbf16>
    %c0_1 = arith.constant 0 : index
    %c0_2 = arith.constant 0 : index
    %1 = vector.load %arg3[%c0_1, %c0_2] : memref<32x96xbf16, #tpu.memory_space<vmem>>, vector<32x96xbf16>
    %cst = arith.constant dense<0.000000e+00> : vector<16x96xf32>
    %2 = tpu.matmul %0, %1, %cst {dimension_numbers = #tpu.dot_dimension_numbers<[1], [0], [0], [1], [0, 0, 1, 1], [], []>} : vector<16x32xbf16>, vector<32x96xbf16>, vector<16x96xf32> -> vector<16x96xf32>
    %c0_3 = arith.constant 0 : index
    %c0_4 = arith.constant 0 : index
    %3 = vector.load %arg4[%c0_3, %c0_4] : memref<1x96xf32, #tpu.memory_space<vmem>>, vector<1x96xf32>
    %4 = vector.broadcast %3 : vector<1x96xf32> to vector<16x96xf32>
    %5 = arith.addf %2, %4 : vector<16x96xf32>
    %6 = arith.truncf %5 : vector<16x96xf32> to vector<16x96xbf16>
    %c0_5 = arith.constant 0 : index
    %c0_6 = arith.constant 0 : index
    %7 = vector.load %arg5[%c0_5, %c0_6] : memref<16x96xbf16, #tpu.memory_space<vmem>>, vector<16x96xbf16>
    tpu.vector_store %arg5[%c0_5, %c0_6], %6 {strides = array<i32>} : memref<16x96xbf16, #tpu.memory_space<vmem>>, vector<16x96xbf16>,
    return
  }
  func.func @transform_0(%arg0: i32, %arg1: i32) -> (i32, i32) {
    %c0_i32 = arith.constant 0 : i32
    %c0_i32_0 = arith.constant 0 : i32
    return %arg0, %c0_i32 : i32, i32
  }
  func.func @transform_1(%arg0: i32, %arg1: i32) -> (i32, i32) {
    %c0_i32 = arith.constant 0 : i32
    %c0_i32_0 = arith.constant 0 : i32
    return %c0_i32, %arg1 : i32, i32
  }
  func.func @transform_2(%arg0: i32, %arg1: i32) -> (i32, i32) {
    %c0_i32 = arith.constant 0 : i32
    %c0_i32_0 = arith.constant 0 : i32
    return %c0_i32, %arg1 : i32, i32
  }
  func.func @transform_3(%arg0: i32, %arg1: i32) -> (i32, i32) {
    %c0_i32 = arith.constant 0 : i32
    return %arg0, %arg1 : i32, i32
  }
}

module attributes {stable_mosaic.version = 11 : i64} {
  func.func @_mha_kernel(%arg0: i32, %arg1: memref<1x8x96xbf16, #tpu.memory_space<vmem>>, %arg2: memref<1x1x8xf32, #tpu.memory_space<vmem>>, %arg3: memref<1x8x32xbf16, #tpu.memory_space<vmem>>) attributes {dimension_semantics = [#tpu.dimension_semantics<parallel>], iteration_bounds = array<i64: 2>, scalar_prefetch = 0 : i64, scratch_operands = 0 : i64, tpu.core_type = #tpu.core_type<tc>, window_params = [{transform_indices = @transform_0, window_bounds = array<i64: 1, 8, 96>}, {transform_indices = @transform_1, window_bounds = array<i64: 1, 1, 8>}, {transform_indices = @transform_2, window_bounds = array<i64: 1, 8, 32>}]} {
    %c0 = arith.constant 0 : index
    %c0_0 = arith.constant 0 : index
    %c0_1 = arith.constant 0 : index
    %0 = vector.load %arg1[%c0, %c0_0, %c0_1] : memref<1x8x96xbf16, #tpu.memory_space<vmem>>, vector<1x8x96xbf16>
    %1 = vector.shape_cast %0 : vector<1x8x96xbf16> to vector<8x96xbf16>
    %c0_2 = arith.constant 0 : index
    %c0_3 = arith.constant 0 : index
    %c0_4 = arith.constant 0 : index
    %2 = vector.load %arg2[%c0_2, %c0_3, %c0_4] : memref<1x1x8xf32, #tpu.memory_space<vmem>>, vector<1x1x8xf32>
    %3 = vector.shape_cast %2 : vector<1x1x8xf32> to vector<1x8xf32>
    %4 = vector.extract_strided_slice %1 {offsets = [0, 0], sizes = [8, 8], strides = [1, 1]} : vector<8x96xbf16> to vector<8x8xbf16>
    %5 = vector.extract_strided_slice %1 {offsets = [0, 32], sizes = [8, 8], strides = [1, 1]} : vector<8x96xbf16> to vector<8x8xbf16>
    %6 = vector.extract_strided_slice %1 {offsets = [0, 64], sizes = [8, 8], strides = [1, 1]} : vector<8x96xbf16> to vector<8x8xbf16>
    %cst = arith.constant dense<0.000000e+00> : vector<8x8xf32>
    %7 = tpu.matmul %4, %5, %cst {dimension_numbers = #tpu.dot_dimension_numbers<[1], [1], [0], [0], [0, 0, 1, 0], [], []>} : vector<8x8xbf16>, vector<8x8xbf16>, vector<8x8xf32> -> vector<8x8xf32>
    %cst_5 = arith.constant 0.353553385 : f32
    %8 = vector.broadcast %cst_5 : f32 to vector<8x8xf32>
    %9 = arith.mulf %7, %8 : vector<8x8xf32>
    %10 = vector.broadcast %3 : vector<1x8xf32> to vector<8x8xf32>
    %11 = arith.addf %9, %10 : vector<8x8xf32>
    %cst_6 = arith.constant dense<0xFF800000> : vector<8xf32>
    %12 = vector.multi_reduction <maximumf>, %11, %cst_6 [1] : vector<8x8xf32> to vector<8xf32>
    %13 = vector.shape_cast %12 : vector<8xf32> to vector<8x1xf32>
    %14 = vector.broadcast %13 : vector<8x1xf32> to vector<8x8xf32>
    %15 = arith.subf %11, %14 : vector<8x8xf32>
    %16 = math.exp %15 : vector<8x8xf32>
    %cst_7 = arith.constant dense<0.000000e+00> : vector<8xf32>
    %17 = vector.multi_reduction <add>, %16, %cst_7 [1] : vector<8x8xf32> to vector<8xf32>
    %18 = vector.shape_cast %17 : vector<8xf32> to vector<8x1xf32>
    %19 = vector.broadcast %18 : vector<8x1xf32> to vector<8x8xf32>
    %20 = arith.divf %16, %19 : vector<8x8xf32>
    %21 = arith.truncf %20 : vector<8x8xf32> to vector<8x8xbf16>
    %cst_8 = arith.constant dense<0.000000e+00> : vector<8x8xf32>
    %22 = tpu.matmul %21, %6, %cst_8 {dimension_numbers = #tpu.dot_dimension_numbers<[1], [0], [0], [1], [0, 0, 1, 1], [], []>} : vector<8x8xbf16>, vector<8x8xbf16>, vector<8x8xf32> -> vector<8x8xf32>
    %23 = vector.extract_strided_slice %1 {offsets = [0, 8], sizes = [8, 8], strides = [1, 1]} : vector<8x96xbf16> to vector<8x8xbf16>
    %24 = vector.extract_strided_slice %1 {offsets = [0, 40], sizes = [8, 8], strides = [1, 1]} : vector<8x96xbf16> to vector<8x8xbf16>
    %25 = vector.extract_strided_slice %1 {offsets = [0, 72], sizes = [8, 8], strides = [1, 1]} : vector<8x96xbf16> to vector<8x8xbf16>
    %cst_9 = arith.constant dense<0.000000e+00> : vector<8x8xf32>
    %26 = tpu.matmul %23, %24, %cst_9 {dimension_numbers = #tpu.dot_dimension_numbers<[1], [1], [0], [0], [0, 0, 1, 0], [], []>} : vector<8x8xbf16>, vector<8x8xbf16>, vector<8x8xf32> -> vector<8x8xf32>
    %cst_10 = arith.constant 0.353553385 : f32
    %27 = vector.broadcast %cst_10 : f32 to vector<8x8xf32>
    %28 = arith.mulf %26, %27 : vector<8x8xf32>
    %29 = vector.broadcast %3 : vector<1x8xf32> to vector<8x8xf32>
    %30 = arith.addf %28, %29 : vector<8x8xf32>
    %cst_11 = arith.constant dense<0xFF800000> : vector<8xf32>
    %31 = vector.multi_reduction <maximumf>, %30, %cst_11 [1] : vector<8x8xf32> to vector<8xf32>
    %32 = vector.shape_cast %31 : vector<8xf32> to vector<8x1xf32>
    %33 = vector.broadcast %32 : vector<8x1xf32> to vector<8x8xf32>
    %34 = arith.subf %30, %33 : vector<8x8xf32>
    %35 = math.exp %34 : vector<8x8xf32>
    %cst_12 = arith.constant dense<0.000000e+00> : vector<8xf32>
    %36 = vector.multi_reduction <add>, %35, %cst_12 [1] : vector<8x8xf32> to vector<8xf32>
    %37 = vector.shape_cast %36 : vector<8xf32> to vector<8x1xf32>
    %38 = vector.broadcast %37 : vector<8x1xf32> to vector<8x8xf32>
    %39 = arith.divf %35, %38 : vector<8x8xf32>
    %40 = arith.truncf %39 : vector<8x8xf32> to vector<8x8xbf16>
    %cst_13 = arith.constant dense<0.000000e+00> : vector<8x8xf32>
    %41 = tpu.matmul %40, %25, %cst_13 {dimension_numbers = #tpu.dot_dimension_numbers<[1], [0], [0], [1], [0, 0, 1, 1], [], []>} : vector<8x8xbf16>, vector<8x8xbf16>, vector<8x8xf32> -> vector<8x8xf32>
    %42 = vector.extract_strided_slice %1 {offsets = [0, 16], sizes = [8, 8], strides = [1, 1]} : vector<8x96xbf16> to vector<8x8xbf16>
    %43 = vector.extract_strided_slice %1 {offsets = [0, 48], sizes = [8, 8], strides = [1, 1]} : vector<8x96xbf16> to vector<8x8xbf16>
    %44 = vector.extract_strided_slice %1 {offsets = [0, 80], sizes = [8, 8], strides = [1, 1]} : vector<8x96xbf16> to vector<8x8xbf16>
    %cst_14 = arith.constant dense<0.000000e+00> : vector<8x8xf32>
    %45 = tpu.matmul %42, %43, %cst_14 {dimension_numbers = #tpu.dot_dimension_numbers<[1], [1], [0], [0], [0, 0, 1, 0], [], []>} : vector<8x8xbf16>, vector<8x8xbf16>, vector<8x8xf32> -> vector<8x8xf32>
    %cst_15 = arith.constant 0.353553385 : f32
    %46 = vector.broadcast %cst_15 : f32 to vector<8x8xf32>
    %47 = arith.mulf %45, %46 : vector<8x8xf32>
    %48 = vector.broadcast %3 : vector<1x8xf32> to vector<8x8xf32>
    %49 = arith.addf %47, %48 : vector<8x8xf32>
    %cst_16 = arith.constant dense<0xFF800000> : vector<8xf32>
    %50 = vector.multi_reduction <maximumf>, %49, %cst_16 [1] : vector<8x8xf32> to vector<8xf32>
    %51 = vector.shape_cast %50 : vector<8xf32> to vector<8x1xf32>
    %52 = vector.broadcast %51 : vector<8x1xf32> to vector<8x8xf32>
    %53 = arith.subf %49, %52 : vector<8x8xf32>
    %54 = math.exp %53 : vector<8x8xf32>
    %cst_17 = arith.constant dense<0.000000e+00> : vector<8xf32>
    %55 = vector.multi_reduction <add>, %54, %cst_17 [1] : vector<8x8xf32> to vector<8xf32>
    %56 = vector.shape_cast %55 : vector<8xf32> to vector<8x1xf32>
    %57 = vector.broadcast %56 : vector<8x1xf32> to vector<8x8xf32>
    %58 = arith.divf %54, %57 : vector<8x8xf32>
    %59 = arith.truncf %58 : vector<8x8xf32> to vector<8x8xbf16>
    %cst_18 = arith.constant dense<0.000000e+00> : vector<8x8xf32>
    %60 = tpu.matmul %59, %44, %cst_18 {dimension_numbers = #tpu.dot_dimension_numbers<[1], [0], [0], [1], [0, 0, 1, 1], [], []>} : vector<8x8xbf16>, vector<8x8xbf16>, vector<8x8xf32> -> vector<8x8xf32>
    %61 = vector.extract_strided_slice %1 {offsets = [0, 24], sizes = [8, 8], strides = [1, 1]} : vector<8x96xbf16> to vector<8x8xbf16>
    %62 = vector.extract_strided_slice %1 {offsets = [0, 56], sizes = [8, 8], strides = [1, 1]} : vector<8x96xbf16> to vector<8x8xbf16>
    %63 = vector.extract_strided_slice %1 {offsets = [0, 88], sizes = [8, 8], strides = [1, 1]} : vector<8x96xbf16> to vector<8x8xbf16>
    %cst_19 = arith.constant dense<0.000000e+00> : vector<8x8xf32>
    %64 = tpu.matmul %61, %62, %cst_19 {dimension_numbers = #tpu.dot_dimension_numbers<[1], [1], [0], [0], [0, 0, 1, 0], [], []>} : vector<8x8xbf16>, vector<8x8xbf16>, vector<8x8xf32> -> vector<8x8xf32>
    %cst_20 = arith.constant 0.353553385 : f32
    %65 = vector.broadcast %cst_20 : f32 to vector<8x8xf32>
    %66 = arith.mulf %64, %65 : vector<8x8xf32>
    %67 = vector.broadcast %3 : vector<1x8xf32> to vector<8x8xf32>
    %68 = arith.addf %66, %67 : vector<8x8xf32>
    %cst_21 = arith.constant dense<0xFF800000> : vector<8xf32>
    %69 = vector.multi_reduction <maximumf>, %68, %cst_21 [1] : vector<8x8xf32> to vector<8xf32>
    %70 = vector.shape_cast %69 : vector<8xf32> to vector<8x1xf32>
    %71 = vector.broadcast %70 : vector<8x1xf32> to vector<8x8xf32>
    %72 = arith.subf %68, %71 : vector<8x8xf32>
    %73 = math.exp %72 : vector<8x8xf32>
    %cst_22 = arith.constant dense<0.000000e+00> : vector<8xf32>
    %74 = vector.multi_reduction <add>, %73, %cst_22 [1] : vector<8x8xf32> to vector<8xf32>
    %75 = vector.shape_cast %74 : vector<8xf32> to vector<8x1xf32>
    %76 = vector.broadcast %75 : vector<8x1xf32> to vector<8x8xf32>
    %77 = arith.divf %73, %76 : vector<8x8xf32>
    %78 = arith.truncf %77 : vector<8x8xf32> to vector<8x8xbf16>
    %cst_23 = arith.constant dense<0.000000e+00> : vector<8x8xf32>
    %79 = tpu.matmul %78, %63, %cst_23 {dimension_numbers = #tpu.dot_dimension_numbers<[1], [0], [0], [1], [0, 0, 1, 1], [], []>} : vector<8x8xbf16>, vector<8x8xbf16>, vector<8x8xf32> -> vector<8x8xf32>
    %80 = tpu.concatenate %22, %41, %60, %79 in 1 : vector<8x8xf32>, vector<8x8xf32>, vector<8x8xf32>, vector<8x8xf32> -> vector<8x32xf32>
    %81 = arith.truncf %80 : vector<8x32xf32> to vector<8x32xbf16>
    %c0_24 = arith.constant 0 : index
    %c0_25 = arith.constant 0 : index
    %c0_26 = arith.constant 0 : index
    %82 = vector.load %arg3[%c0_24, %c0_25, %c0_26] : memref<1x8x32xbf16, #tpu.memory_space<vmem>>, vector<1x8x32xbf16>
    %83 = vector.shape_cast %82 : vector<1x8x32xbf16> to vector<8x32xbf16>
    %84 = vector.shape_cast %81 : vector<8x32xbf16> to vector<1x8x32xbf16>
    tpu.vector_store %arg3[%c0_24, %c0_25, %c0_26], %84 {strides = array<i32>} : memref<1x8x32xbf16, #tpu.memory_space<vmem>>, vector<1x8x32xbf16>,
    return
  }
  func.func @transform_0(%arg0: i32) -> (i32, i32, i32) {
    %c0_i32 = arith.constant 0 : i32
    %c0_i32_0 = arith.constant 0 : i32
    %c0_i32_1 = arith.constant 0 : i32
    return %arg0, %c0_i32, %c0_i32_0 : i32, i32, i32
  }
  func.func @transform_1(%arg0: i32) -> (i32, i32, i32) {
    %c0_i32 = arith.constant 0 : i32
    %c0_i32_0 = arith.constant 0 : i32
    %c0_i32_1 = arith.constant 0 : i32
    return %arg0, %c0_i32, %c0_i32_0 : i32, i32, i32
  }
  func.func @transform_2(%arg0: i32) -> (i32, i32, i32) {
    %c0_i32 = arith.constant 0 : i32
    %c0_i32_0 = arith.constant 0 : i32
    %c0_i32_1 = arith.constant 0 : i32
    return %arg0, %c0_i32, %c0_i32_0 : i32, i32, i32
  }
}

module attributes {stable_mosaic.version = 11 : i64} {
  func.func @_layernorm_kernel(%arg0: i32, %arg1: memref<16x32xf32, #tpu.memory_space<vmem>>, %arg2: memref<1x32xf32, #tpu.memory_space<vmem>>, %arg3: memref<1x32xf32, #tpu.memory_space<vmem>>, %arg4: memref<16x32xbf16, #tpu.memory_space<vmem>>) attributes {dimension_semantics = [#tpu.dimension_semantics<parallel>], iteration_bounds = array<i64: 1>, scalar_prefetch = 0 : i64, scratch_operands = 0 : i64, tpu.core_type = #tpu.core_type<tc>, window_params = [{transform_indices = @transform_0, window_bounds = array<i64: 16, 32>}, {pipeline_mode = #tpu.pipeline_mode<synchronous>, transform_indices = @transform_1, window_bounds = array<i64: 1, 32>}, {pipeline_mode = #tpu.pipeline_mode<synchronous>, transform_indices = @transform_2, window_bounds = array<i64: 1, 32>}, {transform_indices = @transform_3, window_bounds = array<i64: 16, 32>}]} {
    %c0 = arith.constant 0 : index
    %c0_0 = arith.constant 0 : index
    %0 = vector.load %arg1[%c0, %c0_0] : memref<16x32xf32, #tpu.memory_space<vmem>>, vector<16x32xf32>
    %cst = arith.constant dense<0.000000e+00> : vector<16xf32>
    %1 = vector.multi_reduction <add>, %0, %cst [1] : vector<16x32xf32> to vector<16xf32>
    %2 = vector.shape_cast %1 : vector<16xf32> to vector<16x1xf32>
    %cst_1 = arith.constant 3.200000e+01 : f32
    %3 = vector.broadcast %cst_1 : f32 to vector<16x1xf32>
    %4 = arith.divf %2, %3 : vector<16x1xf32>
    %5 = vector.broadcast %4 : vector<16x1xf32> to vector<16x32xf32>
    %6 = arith.subf %0, %5 : vector<16x32xf32>
    %7 = arith.mulf %6, %6 : vector<16x32xf32>
    %cst_2 = arith.constant dense<0.000000e+00> : vector<16xf32>
    %8 = vector.multi_reduction <add>, %7, %cst_2 [1] : vector<16x32xf32> to vector<16xf32>
    %9 = vector.shape_cast %8 : vector<16xf32> to vector<16x1xf32>
    %cst_3 = arith.constant 3.200000e+01 : f32
    %10 = vector.broadcast %cst_3 : f32 to vector<16x1xf32>
    %11 = arith.divf %9, %10 : vector<16x1xf32>
    %12 = vector.broadcast %4 : vector<16x1xf32> to vector<16x32xf32>
    %13 = arith.subf %0, %12 : vector<16x32xf32>
    %cst_4 = arith.constant 9.99999996E-13 : f32
    %14 = vector.broadcast %cst_4 : f32 to vector<16x1xf32>
    %15 = arith.addf %11, %14 : vector<16x1xf32>
    %16 = math.sqrt %15 : vector<16x1xf32>
    %17 = vector.broadcast %16 : vector<16x1xf32> to vector<16x32xf32>
    %18 = arith.divf %13, %17 : vector<16x32xf32>
    %c0_5 = arith.constant 0 : index
    %c0_6 = arith.constant 0 : index
    %19 = vector.load %arg2[%c0_5, %c0_6] : memref<1x32xf32, #tpu.memory_space<vmem>>, vector<1x32xf32>
    %20 = vector.broadcast %19 : vector<1x32xf32> to vector<16x32xf32>
    %21 = arith.mulf %18, %20 : vector<16x32xf32>
    %c0_7 = arith.constant 0 : index
    %c0_8 = arith.constant 0 : index
    %22 = vector.load %arg3[%c0_7, %c0_8] : memref<1x32xf32, #tpu.memory_space<vmem>>, vector<1x32xf32>
    %23 = vector.broadcast %22 : vector<1x32xf32> to vector<16x32xf32>
    %24 = arith.addf %21, %23 : vector<16x32xf32>
    %25 = arith.truncf %24 : vector<16x32xf32> to vector<16x32xbf16>
    %c0_9 = arith.constant 0 : index
    %c0_10 = arith.constant 0 : index
    %26 = vector.load %arg4[%c0_9, %c0_10] : memref<16x32xbf16, #tpu.memory_space<vmem>>, vector<16x32xbf16>
    tpu.vector_store %arg4[%c0_9, %c0_10], %25 {strides = array<i32>} : memref<16x32xbf16, #tpu.memory_space<vmem>>, vector<16x32xbf16>,
    return
  }
  func.func @transform_0(%arg0: i32) -> (i32, i32) {
    %c0_i32 = arith.constant 0 : i32
    %c0_i32_0 = arith.constant 0 : i32
    return %arg0, %c0_i32 : i32, i32
  }
  func.func @transform_1(%arg0: i32) -> (i32, i32) {
    %c0_i32 = arith.constant 0 : i32
    %c0_i32_0 = arith.constant 0 : i32
    %c0_i32_1 = arith.constant 0 : i32
    return %c0_i32, %c0_i32_0 : i32, i32
  }
  func.func @transform_2(%arg0: i32) -> (i32, i32) {
    %c0_i32 = arith.constant 0 : i32
    %c0_i32_0 = arith.constant 0 : i32
    %c0_i32_1 = arith.constant 0 : i32
    return %c0_i32, %c0_i32_0 : i32, i32
  }
  func.func @transform_3(%arg0: i32) -> (i32, i32) {
    %c0_i32 = arith.constant 0 : i32
    %c0_i32_0 = arith.constant 0 : i32
    return %arg0, %c0_i32 : i32, i32
  }
}

module attributes {stable_mosaic.version = 11 : i64} {
  func.func @_linear_kernel(%arg0: i32, %arg1: i32, %arg2: memref<16x32xbf16, #tpu.memory_space<vmem>>, %arg3: memref<32x32xbf16, #tpu.memory_space<vmem>>, %arg4: memref<1x32xf32, #tpu.memory_space<vmem>>, %arg5: memref<16x32xbf16, #tpu.memory_space<vmem>>) attributes {dimension_semantics = [#tpu.dimension_semantics<parallel>, #tpu.dimension_semantics<parallel>], iteration_bounds = array<i64: 1, 1>, scalar_prefetch = 0 : i64, scratch_operands = 0 : i64, tpu.core_type = #tpu.core_type<tc>, window_params = [{transform_indices = @transform_0, window_bounds = array<i64: 16, 32>}, {transform_indices = @transform_1, window_bounds = array<i64: 32, 32>}, {transform_indices = @transform_2, window_bounds = array<i64: 1, 32>}, {transform_indices = @transform_3, window_bounds = array<i64: 16, 32>}]} {
    %c0 = arith.constant 0 : index
    %c0_0 = arith.constant 0 : index
    %0 = vector.load %arg2[%c0, %c0_0] : memref<16x32xbf16, #tpu.memory_space<vmem>>, vector<16x32xbf16>
    %c0_1 = arith.constant 0 : index
    %c0_2 = arith.constant 0 : index
    %1 = vector.load %arg3[%c0_1, %c0_2] : memref<32x32xbf16, #tpu.memory_space<vmem>>, vector<32x32xbf16>
    %cst = arith.constant dense<0.000000e+00> : vector<16x32xf32>
    %2 = tpu.matmul %0, %1, %cst {dimension_numbers = #tpu.dot_dimension_numbers<[1], [0], [0], [1], [0, 0, 1, 1], [], []>} : vector<16x32xbf16>, vector<32x32xbf16>, vector<16x32xf32> -> vector<16x32xf32>
    %c0_3 = arith.constant 0 : index
    %c0_4 = arith.constant 0 : index
    %3 = vector.load %arg4[%c0_3, %c0_4] : memref<1x32xf32, #tpu.memory_space<vmem>>, vector<1x32xf32>
    %4 = vector.broadcast %3 : vector<1x32xf32> to vector<16x32xf32>
    %5 = arith.addf %2, %4 : vector<16x32xf32>
    %6 = arith.truncf %5 : vector<16x32xf32> to vector<16x32xbf16>
    %c0_5 = arith.constant 0 : index
    %c0_6 = arith.constant 0 : index
    %7 = vector.load %arg5[%c0_5, %c0_6] : memref<16x32xbf16, #tpu.memory_space<vmem>>, vector<16x32xbf16>
    tpu.vector_store %arg5[%c0_5, %c0_6], %6 {strides = array<i32>} : memref<16x32xbf16, #tpu.memory_space<vmem>>, vector<16x32xbf16>,
    return
  }
  func.func @transform_0(%arg0: i32, %arg1: i32) -> (i32, i32) {
    %c0_i32 = arith.constant 0 : i32
    %c0_i32_0 = arith.constant 0 : i32
    return %arg0, %c0_i32 : i32, i32
  }
  func.func @transform_1(%arg0: i32, %arg1: i32) -> (i32, i32) {
    %c0_i32 = arith.constant 0 : i32
    %c0_i32_0 = arith.constant 0 : i32
    return %c0_i32, %arg1 : i32, i32
  }
  func.func @transform_2(%arg0: i32, %arg1: i32) -> (i32, i32) {
    %c0_i32 = arith.constant 0 : i32
    %c0_i32_0 = arith.constant 0 : i32
    return %c0_i32, %arg1 : i32, i32
  }
  func.func @transform_3(%arg0: i32, %arg1: i32) -> (i32, i32) {
    %c0_i32 = arith.constant 0 : i32
    return %arg0, %arg1 : i32, i32
  }
}

module attributes {stable_mosaic.version = 11 : i64} {
  func.func @_layernorm_res_kernel(%arg0: i32, %arg1: memref<16x32xbf16, #tpu.memory_space<vmem>>, %arg2: memref<16x32xbf16, #tpu.memory_space<vmem>>, %arg3: memref<1x32xf32, #tpu.memory_space<vmem>>, %arg4: memref<1x32xf32, #tpu.memory_space<vmem>>, %arg5: memref<16x32xbf16, #tpu.memory_space<vmem>>) attributes {dimension_semantics = [#tpu.dimension_semantics<parallel>], iteration_bounds = array<i64: 1>, scalar_prefetch = 0 : i64, scratch_operands = 0 : i64, tpu.core_type = #tpu.core_type<tc>, window_params = [{transform_indices = @transform_0, window_bounds = array<i64: 16, 32>}, {transform_indices = @transform_1, window_bounds = array<i64: 16, 32>}, {pipeline_mode = #tpu.pipeline_mode<synchronous>, transform_indices = @transform_2, window_bounds = array<i64: 1, 32>}, {pipeline_mode = #tpu.pipeline_mode<synchronous>, transform_indices = @transform_3, window_bounds = array<i64: 1, 32>}, {transform_indices = @transform_4, window_bounds = array<i64: 16, 32>}]} {
    %c0 = arith.constant 0 : index
    %c0_0 = arith.constant 0 : index
    %0 = vector.load %arg1[%c0, %c0_0] : memref<16x32xbf16, #tpu.memory_space<vmem>>, vector<16x32xbf16>
    %1 = arith.extf %0 : vector<16x32xbf16> to vector<16x32xf32>
    %c0_1 = arith.constant 0 : index
    %c0_2 = arith.constant 0 : index
    %2 = vector.load %arg2[%c0_1, %c0_2] : memref<16x32xbf16, #tpu.memory_space<vmem>>, vector<16x32xbf16>
    %3 = arith.extf %2 : vector<16x32xbf16> to vector<16x32xf32>
    %4 = arith.addf %1, %3 : vector<16x32xf32>
    %cst = arith.constant dense<0.000000e+00> : vector<16xf32>
    %5 = vector.multi_reduction <add>, %4, %cst [1] : vector<16x32xf32> to vector<16xf32>
    %6 = vector.shape_cast %5 : vector<16xf32> to vector<16x1xf32>
    %cst_3 = arith.constant 3.200000e+01 : f32
    %7 = vector.broadcast %cst_3 : f32 to vector<16x1xf32>
    %8 = arith.divf %6, %7 : vector<16x1xf32>
    %9 = vector.broadcast %8 : vector<16x1xf32> to vector<16x32xf32>
    %10 = arith.subf %4, %9 : vector<16x32xf32>
    %11 = arith.mulf %10, %10 : vector<16x32xf32>
    %cst_4 = arith.constant dense<0.000000e+00> : vector<16xf32>
    %12 = vector.multi_reduction <add>, %11, %cst_4 [1] : vector<16x32xf32> to vector<16xf32>
    %13 = vector.shape_cast %12 : vector<16xf32> to vector<16x1xf32>
    %cst_5 = arith.constant 3.200000e+01 : f32
    %14 = vector.broadcast %cst_5 : f32 to vector<16x1xf32>
    %15 = arith.divf %13, %14 : vector<16x1xf32>
    %16 = vector.broadcast %8 : vector<16x1xf32> to vector<16x32xf32>
    %17 = arith.subf %4, %16 : vector<16x32xf32>
    %cst_6 = arith.constant 9.99999996E-13 : f32
    %18 = vector.broadcast %cst_6 : f32 to vector<16x1xf32>
    %19 = arith.addf %15, %18 : vector<16x1xf32>
    %20 = math.sqrt %19 : vector<16x1xf32>
    %21 = vector.broadcast %20 : vector<16x1xf32> to vector<16x32xf32>
    %22 = arith.divf %17, %21 : vector<16x32xf32>
    %c0_7 = arith.constant 0 : index
    %c0_8 = arith.constant 0 : index
    %23 = vector.load %arg3[%c0_7, %c0_8] : memref<1x32xf32, #tpu.memory_space<vmem>>, vector<1x32xf32>
    %24 = vector.broadcast %23 : vector<1x32xf32> to vector<16x32xf32>
    %25 = arith.mulf %22, %24 : vector<16x32xf32>
    %c0_9 = arith.constant 0 : index
    %c0_10 = arith.constant 0 : index
    %26 = vector.load %arg4[%c0_9, %c0_10] : memref<1x32xf32, #tpu.memory_space<vmem>>, vector<1x32xf32>
    %27 = vector.broadcast %26 : vector<1x32xf32> to vector<16x32xf32>
    %28 = arith.addf %25, %27 : vector<16x32xf32>
    %29 = arith.truncf %28 : vector<16x32xf32> to vector<16x32xbf16>
    %c0_11 = arith.constant 0 : index
    %c0_12 = arith.constant 0 : index
    %30 = vector.load %arg5[%c0_11, %c0_12] : memref<16x32xbf16, #tpu.memory_space<vmem>>, vector<16x32xbf16>
    tpu.vector_store %arg5[%c0_11, %c0_12], %29 {strides = array<i32>} : memref<16x32xbf16, #tpu.memory_space<vmem>>, vector<16x32xbf16>,
    return
  }
  func.func @transform_0(%arg0: i32) -> (i32, i32) {
    %c0_i32 = arith.constant 0 : i32
    %c0_i32_0 = arith.constant 0 : i32
    return %arg0, %c0_i32 : i32, i32
  }
  func.func @transform_1(%arg0: i32) -> (i32, i32) {
    %c0_i32 = arith.constant 0 : i32
    %c0_i32_0 = arith.constant 0 : i32
    return %arg0, %c0_i32 : i32, i32
  }
  func.func @transform_2(%arg0: i32) -> (i32, i32) {
    %c0_i32 = arith.constant 0 : i32
    %c0_i32_0 = arith.constant 0 : i32
    %c0_i32_1 = arith.constant 0 : i32
    return %c0_i32, %c0_i32_0 : i32, i32
  }
  func.func @transform_3(%arg0: i32) -> (i32, i32) {
    %c0_i32 = arith.constant 0 : i32
    %c0_i32_0 = arith.constant 0 : i32
    %c0_i32_1 = arith.constant 0 : i32
    return %c0_i32, %c0_i32_0 : i32, i32
  }
  func.func @transform_4(%arg0: i32) -> (i32, i32) {
    %c0_i32 = arith.constant 0 : i32
    %c0_i32_0 = arith.constant 0 : i32
    return %arg0, %c0_i32 : i32, i32
  }
}

module attributes {stable_mosaic.version = 11 : i64} {
  func.func @_linear_kernel(%arg0: i32, %arg1: i32, %arg2: memref<16x32xbf16, #tpu.memory_space<vmem>>, %arg3: memref<32x64xbf16, #tpu.memory_space<vmem>>, %arg4: memref<1x64xf32, #tpu.memory_space<vmem>>, %arg5: memref<16x64xbf16, #tpu.memory_space<vmem>>) attributes {dimension_semantics = [#tpu.dimension_semantics<parallel>, #tpu.dimension_semantics<parallel>], iteration_bounds = array<i64: 1, 1>, scalar_prefetch = 0 : i64, scratch_operands = 0 : i64, tpu.core_type = #tpu.core_type<tc>, window_params = [{transform_indices = @transform_0, window_bounds = array<i64: 16, 32>}, {transform_indices = @transform_1, window_bounds = array<i64: 32, 64>}, {transform_indices = @transform_2, window_bounds = array<i64: 1, 64>}, {transform_indices = @transform_3, window_bounds = array<i64: 16, 64>}]} {
    %c0 = arith.constant 0 : index
    %c0_0 = arith.constant 0 : index
    %0 = vector.load %arg2[%c0, %c0_0] : memref<16x32xbf16, #tpu.memory_space<vmem>>, vector<16x32xbf16>
    %c0_1 = arith.constant 0 : index
    %c0_2 = arith.constant 0 : index
    %1 = vector.load %arg3[%c0_1, %c0_2] : memref<32x64xbf16, #tpu.memory_space<vmem>>, vector<32x64xbf16>
    %cst = arith.constant dense<0.000000e+00> : vector<16x64xf32>
    %2 = tpu.matmul %0, %1, %cst {dimension_numbers = #tpu.dot_dimension_numbers<[1], [0], [0], [1], [0, 0, 1, 1], [], []>} : vector<16x32xbf16>, vector<32x64xbf16>, vector<16x64xf32> -> vector<16x64xf32>
    %c0_3 = arith.constant 0 : index
    %c0_4 = arith.constant 0 : index
    %3 = vector.load %arg4[%c0_3, %c0_4] : memref<1x64xf32, #tpu.memory_space<vmem>>, vector<1x64xf32>
    %4 = vector.broadcast %3 : vector<1x64xf32> to vector<16x64xf32>
    %5 = arith.addf %2, %4 : vector<16x64xf32>
    %cst_5 = arith.constant 5.000000e-01 : f32
    %6 = vector.broadcast %cst_5 : f32 to vector<16x64xf32>
    %7 = arith.mulf %6, %5 : vector<16x64xf32>
    %cst_6 = arith.constant 4.471500e-02 : f32
    %8 = vector.broadcast %cst_6 : f32 to vector<16x64xf32>
    %9 = arith.mulf %8, %5 : vector<16x64xf32>
    %10 = arith.mulf %9, %5 : vector<16x64xf32>
    %11 = arith.mulf %10, %5 : vector<16x64xf32>
    %12 = arith.addf %5, %11 : vector<16x64xf32>
    %cst_7 = arith.constant 0.797884583 : f32
    %13 = vector.broadcast %cst_7 : f32 to vector<16x64xf32>
    %14 = arith.mulf %13, %12 : vector<16x64xf32>
    %15 = math.tanh %14 : vector<16x64xf32>
    %cst_8 = arith.constant 1.000000e+00 : f32
    %16 = vector.broadcast %cst_8 : f32 to vector<16x64xf32>
    %17 = arith.addf %16, %15 : vector<16x64xf32>
    %18 = arith.mulf %7, %17 : vector<16x64xf32>
    %19 = arith.truncf %18 : vector<16x64xf32> to vector<16x64xbf16>
    %c0_9 = arith.constant 0 : index
    %c0_10 = arith.constant 0 : index
    %20 = vector.load %arg5[%c0_9, %c0_10] : memref<16x64xbf16, #tpu.memory_space<vmem>>, vector<16x64xbf16>
    tpu.vector_store %arg5[%c0_9, %c0_10], %19 {strides = array<i32>} : memref<16x64xbf16, #tpu.memory_space<vmem>>, vector<16x64xbf16>,
    return
  }
  func.func @transform_0(%arg0: i32, %arg1: i32) -> (i32, i32) {
    %c0_i32 = arith.constant 0 : i32
    %c0_i32_0 = arith.constant 0 : i32
    return %arg0, %c0_i32 : i32, i32
  }
  func.func @transform_1(%arg0: i32, %arg1: i32) -> (i32, i32) {
    %c0_i32 = arith.constant 0 : i32
    %c0_i32_0 = arith.constant 0 : i32
    return %c0_i32, %arg1 : i32, i32
  }
  func.func @transform_2(%arg0: i32, %arg1: i32) -> (i32, i32) {
    %c0_i32 = arith.constant 0 : i32
    %c0_i32_0 = arith.constant 0 : i32
    return %c0_i32, %arg1 : i32, i32
  }
  func.func @transform_3(%arg0: i32, %arg1: i32) -> (i32, i32) {
    %c0_i32 = arith.constant 0 : i32
    return %arg0, %arg1 : i32, i32
  }
}

module attributes {stable_mosaic.version = 11 : i64} {
  func.func @_linear_kernel(%arg0: i32, %arg1: i32, %arg2: memref<16x64xbf16, #tpu.memory_space<vmem>>, %arg3: memref<64x32xbf16, #tpu.memory_space<vmem>>, %arg4: memref<1x32xf32, #tpu.memory_space<vmem>>, %arg5: memref<16x32xbf16, #tpu.memory_space<vmem>>) attributes {dimension_semantics = [#tpu.dimension_semantics<parallel>, #tpu.dimension_semantics<parallel>], iteration_bounds = array<i64: 1, 1>, scalar_prefetch = 0 : i64, scratch_operands = 0 : i64, tpu.core_type = #tpu.core_type<tc>, window_params = [{transform_indices = @transform_0, window_bounds = array<i64: 16, 64>}, {transform_indices = @transform_1, window_bounds = array<i64: 64, 32>}, {transform_indices = @transform_2, window_bounds = array<i64: 1, 32>}, {transform_indices = @transform_3, window_bounds = array<i64: 16, 32>}]} {
    %c0 = arith.constant 0 : index
    %c0_0 = arith.constant 0 : index
    %0 = vector.load %arg2[%c0, %c0_0] : memref<16x64xbf16, #tpu.memory_space<vmem>>, vector<16x64xbf16>
    %c0_1 = arith.constant 0 : index
    %c0_2 = arith.constant 0 : index
    %1 = vector.load %arg3[%c0_1, %c0_2] : memref<64x32xbf16, #tpu.memory_space<vmem>>, vector<64x32xbf16>
    %cst = arith.constant dense<0.000000e+00> : vector<16x32xf32>
    %2 = tpu.matmul %0, %1, %cst {dimension_numbers = #tpu.dot_dimension_numbers<[1], [0], [0], [1], [0, 0, 1, 1], [], []>} : vector<16x64xbf16>, vector<64x32xbf16>, vector<16x32xf32> -> vector<16x32xf32>
    %c0_3 = arith.constant 0 : index
    %c0_4 = arith.constant 0 : index
    %3 = vector.load %arg4[%c0_3, %c0_4] : memref<1x32xf32, #tpu.memory_space<vmem>>, vector<1x32xf32>
    %4 = vector.broadcast %3 : vector<1x32xf32> to vector<16x32xf32>
    %5 = arith.addf %2, %4 : vector<16x32xf32>
    %6 = arith.truncf %5 : vector<16x32xf32> to vector<16x32xbf16>
    %c0_5 = arith.constant 0 : index
    %c0_6 = arith.constant 0 : index
    %7 = vector.load %arg5[%c0_5, %c0_6] : memref<16x32xbf16, #tpu.memory_space<vmem>>, vector<16x32xbf16>
    tpu.vector_store %arg5[%c0_5, %c0_6], %6 {strides = array<i32>} : memref<16x32xbf16, #tpu.memory_space<vmem>>, vector<16x32xbf16>,
    return
  }
  func.func @transform_0(%arg0: i32, %arg1: i32) -> (i32, i32) {
    %c0_i32 = arith.constant 0 : i32
    %c0_i32_0 = arith.constant 0 : i32
    return %arg0, %c0_i32 : i32, i32
  }
  func.func @transform_1(%arg0: i32, %arg1: i32) -> (i32, i32) {
    %c0_i32 = arith.constant 0 : i32
    %c0_i32_0 = arith.constant 0 : i32
    return %c0_i32, %arg1 : i32, i32
  }
  func.func @transform_2(%arg0: i32, %arg1: i32) -> (i32, i32) {
    %c0_i32 = arith.constant 0 : i32
    %c0_i32_0 = arith.constant 0 : i32
    return %c0_i32, %arg1 : i32, i32
  }
  func.func @transform_3(%arg0: i32, %arg1: i32) -> (i32, i32) {
    %c0_i32 = arith.constant 0 : i32
    return %arg0, %arg1 : i32, i32
  }
}

module attributes {stable_mosaic.version = 11 : i64} {
  func.func @_linear_kernel(%arg0: i32, %arg1: i32, %arg2: memref<2x32xbf16, #tpu.memory_space<vmem>>, %arg3: memref<32x8xbf16, #tpu.memory_space<vmem>>, %arg4: memref<1x8xf32, #tpu.memory_space<vmem>>, %arg5: memref<2x8xf32, #tpu.memory_space<vmem>>) attributes {dimension_semantics = [#tpu.dimension_semantics<parallel>, #tpu.dimension_semantics<parallel>], iteration_bounds = array<i64: 1, 1>, scalar_prefetch = 0 : i64, scratch_operands = 0 : i64, tpu.core_type = #tpu.core_type<tc>, window_params = [{transform_indices = @transform_0, window_bounds = array<i64: 2, 32>}, {transform_indices = @transform_1, window_bounds = array<i64: 32, 8>}, {transform_indices = @transform_2, window_bounds = array<i64: 1, 8>}, {transform_indices = @transform_3, window_bounds = array<i64: 2, 8>}]} {
    %c0 = arith.constant 0 : index
    %c0_0 = arith.constant 0 : index
    %0 = vector.load %arg2[%c0, %c0_0] : memref<2x32xbf16, #tpu.memory_space<vmem>>, vector<2x32xbf16>
    %c0_1 = arith.constant 0 : index
    %c0_2 = arith.constant 0 : index
    %1 = vector.load %arg3[%c0_1, %c0_2] : memref<32x8xbf16, #tpu.memory_space<vmem>>, vector<32x8xbf16>
    %cst = arith.constant dense<0.000000e+00> : vector<2x8xf32>
    %2 = tpu.matmul %0, %1, %cst {dimension_numbers = #tpu.dot_dimension_numbers<[1], [0], [0], [1], [0, 0, 1, 1], [], []>} : vector<2x32xbf16>, vector<32x8xbf16>, vector<2x8xf32> -> vector<2x8xf32>
    %c0_3 = arith.constant 0 : index
    %c0_4 = arith.constant 0 : index
    %3 = vector.load %arg4[%c0_3, %c0_4] : memref<1x8xf32, #tpu.memory_space<vmem>>, vector<1x8xf32>
    %4 = vector.broadcast %3 : vector<1x8xf32> to vector<2x8xf32>
    %5 = arith.addf %2, %4 : vector<2x8xf32>
    %6 = math.tanh %5 : vector<2x8xf32>
    %c0_5 = arith.constant 0 : index
    %c0_6 = arith.constant 0 : index
    %7 = vector.load %arg5[%c0_5, %c0_6] : memref<2x8xf32, #tpu.memory_space<vmem>>, vector<2x8xf32>
    tpu.vector_store %arg5[%c0_5, %c0_6], %6 {strides = array<i32>} : memref<2x8xf32, #tpu.memory_space<vmem>>, vector<2x8xf32>,
    return
  }
  func.func @transform_0(%arg0: i32, %arg1: i32) -> (i32, i32) {
    %c0_i32 = arith.constant 0 : i32
    %c0_i32_0 = arith.constant 0 : i32
    return %arg0, %c0_i32 : i32, i32
  }
  func.func @transform_1(%arg0: i32, %arg1: i32) -> (i32, i32) {
    %c0_i32 = arith.constant 0 : i32
    %c0_i32_0 = arith.constant 0 : i32
    return %c0_i32, %arg1 : i32, i32
  }
  func.func @transform_2(%arg0: i32, %arg1: i32) -> (i32, i32) {
    %c0_i32 = arith.constant 0 : i32
    %c0_i32_0 = arith.constant 0 : i32
    return %c0_i32, %arg1 : i32, i32
  }
  func.func @transform_3(%arg0: i32, %arg1: i32) -> (i32, i32) {
    %c0_i32 = arith.constant 0 : i32
    return %arg0, %arg1 : i32, i32
  }
}

module attributes {stable_mosaic.version = 11 : i64} {
  func.func @_linear_kernel(%arg0: i32, %arg1: i32, %arg2: memref<96x8xbf16, #tpu.memory_space<vmem>>, %arg3: memref<8x8xbf16, #tpu.memory_space<vmem>>, %arg4: memref<1x8xf32, #tpu.memory_space<vmem>>, %arg5: memref<96x8xf32, #tpu.memory_space<vmem>>) attributes {dimension_semantics = [#tpu.dimension_semantics<parallel>, #tpu.dimension_semantics<parallel>], iteration_bounds = array<i64: 1, 1>, scalar_prefetch = 0 : i64, scratch_operands = 0 : i64, tpu.core_type = #tpu.core_type<tc>, window_params = [{transform_indices = @transform_0, window_bounds = array<i64: 96, 8>}, {transform_indices = @transform_1, window_bounds = array<i64: 8, 8>}, {transform_indices = @transform_2, window_bounds = array<i64: 1, 8>}, {transform_indices = @transform_3, window_bounds = array<i64: 96, 8>}]} {
    %c0 = arith.constant 0 : index
    %c0_0 = arith.constant 0 : index
    %0 = vector.load %arg2[%c0, %c0_0] : memref<96x8xbf16, #tpu.memory_space<vmem>>, vector<96x8xbf16>
    %c0_1 = arith.constant 0 : index
    %c0_2 = arith.constant 0 : index
    %1 = vector.load %arg3[%c0_1, %c0_2] : memref<8x8xbf16, #tpu.memory_space<vmem>>, vector<8x8xbf16>
    %cst = arith.constant dense<0.000000e+00> : vector<96x8xf32>
    %2 = tpu.matmul %0, %1, %cst {dimension_numbers = #tpu.dot_dimension_numbers<[1], [0], [0], [1], [0, 0, 1, 1], [], []>} : vector<96x8xbf16>, vector<8x8xbf16>, vector<96x8xf32> -> vector<96x8xf32>
    %c0_3 = arith.constant 0 : index
    %c0_4 = arith.constant 0 : index
    %3 = vector.load %arg4[%c0_3, %c0_4] : memref<1x8xf32, #tpu.memory_space<vmem>>, vector<1x8xf32>
    %4 = vector.broadcast %3 : vector<1x8xf32> to vector<96x8xf32>
    %5 = arith.addf %2, %4 : vector<96x8xf32>
    %c0_5 = arith.constant 0 : index
    %c0_6 = arith.constant 0 : index
    %6 = vector.load %arg5[%c0_5, %c0_6] : memref<96x8xf32, #tpu.memory_space<vmem>>, vector<96x8xf32>
    tpu.vector_store %arg5[%c0_5, %c0_6], %5 {strides = array<i32>} : memref<96x8xf32, #tpu.memory_space<vmem>>, vector<96x8xf32>,
    return
  }
  func.func @transform_0(%arg0: i32, %arg1: i32) -> (i32, i32) {
    %c0_i32 = arith.constant 0 : i32
    %c0_i32_0 = arith.constant 0 : i32
    return %arg0, %c0_i32 : i32, i32
  }
  func.func @transform_1(%arg0: i32, %arg1: i32) -> (i32, i32) {
    %c0_i32 = arith.constant 0 : i32
    %c0_i32_0 = arith.constant 0 : i32
    return %c0_i32, %arg1 : i32, i32
  }
  func.func @transform_2(%arg0: i32, %arg1: i32) -> (i32, i32) {
    %c0_i32 = arith.constant 0 : i32
    %c0_i32_0 = arith.constant 0 : i32
    return %c0_i32, %arg1 : i32, i32
  }
  func.func @transform_3(%arg0: i32, %arg1: i32) -> (i32, i32) {
    %c0_i32 = arith.constant 0 : i32
    return %arg0, %arg1 : i32, i32
  }
}

module attributes {stable_mosaic.version = 11 : i64} {
  func.func @_dk_fusion_kernel(%arg0: i32, %arg1: memref<24x8xf32, #tpu.memory_space<vmem>>, %arg2: memref<24x4x8xf32, #tpu.memory_space<vmem>>, %arg3: memref<24x4x8xf32, #tpu.memory_space<vmem>>, %arg4: memref<24x8xf32, #tpu.memory_space<vmem>>) attributes {dimension_semantics = [#tpu.dimension_semantics<parallel>], iteration_bounds = array<i64: 1>, scalar_prefetch = 0 : i64, scratch_operands = 0 : i64, tpu.core_type = #tpu.core_type<tc>, window_params = [{transform_indices = @transform_0, window_bounds = array<i64: 24, 8>}, {transform_indices = @transform_1, window_bounds = array<i64: 24, 4, 8>}, {transform_indices = @transform_2, window_bounds = array<i64: 24, 4, 8>}, {transform_indices = @transform_3, window_bounds = array<i64: 24, 8>}]} {
    %c0 = arith.constant 0 : index
    %c0_0 = arith.constant 0 : index
    %0 = vector.load %arg1[%c0, %c0_0] : memref<24x8xf32, #tpu.memory_space<vmem>>, vector<24x8xf32>
    %c0_1 = arith.constant 0 : index
    %c0_2 = arith.constant 0 : index
    %c0_3 = arith.constant 0 : index
    %1 = vector.load %arg2[%c0_1, %c0_2, %c0_3] : memref<24x4x8xf32, #tpu.memory_space<vmem>>, vector<24x4x8xf32>
    %c0_4 = arith.constant 0 : index
    %c0_5 = arith.constant 0 : index
    %c0_6 = arith.constant 0 : index
    %2 = vector.load %arg3[%c0_4, %c0_5, %c0_6] : memref<24x4x8xf32, #tpu.memory_space<vmem>>, vector<24x4x8xf32>
    %3 = vector.shape_cast %0 : vector<24x8xf32> to vector<24x1x8xf32>
    %4 = vector.broadcast %3 : vector<24x1x8xf32> to vector<24x4x8xf32>
    %5 = arith.mulf %4, %1 : vector<24x4x8xf32>
    %cst = arith.constant dense<0.000000e+00> : vector<24x4xf32>
    %6 = vector.multi_reduction <add>, %5, %cst [2] : vector<24x4x8xf32> to vector<24x4xf32>
    %cst_7 = arith.constant 8.000000e+00 : f32
    %7 = math.sqrt %cst_7 : f32
    %8 = vector.broadcast %7 : f32 to vector<24x4xf32>
    %9 = arith.divf %6, %8 : vector<24x4xf32>
    %cst_8 = arith.constant 0.000000e+00 : f32
    %10 = vector.broadcast %cst_8 : f32 to vector<24x4xf32>
    %11 = arith.cmpf oeq, %9, %10 : vector<24x4xf32>
    %cst_9 = arith.constant -1.000000e+04 : f32
    %12 = vector.broadcast %cst_9 : f32 to vector<24x4xf32>
    %13 = arith.select %11, %12, %9 : vector<24x4xi1>, vector<24x4xf32>
    %cst_10 = arith.constant 0.000000e+00 : f32
    %14 = vector.broadcast %cst_10 : f32 to vector<24x4xf32>
    %15 = arith.cmpf oge, %13, %14 : vector<24x4xf32>
    %cst_11 = arith.constant 0.00999999977 : f32
    %16 = vector.broadcast %cst_11 : f32 to vector<24x4xf32>
    %17 = arith.mulf %16, %13 : vector<24x4xf32>
    %18 = arith.select %15, %13, %17 : vector<24x4xi1>, vector<24x4xf32>
    %cst_12 = arith.constant dense<0xFF800000> : vector<24xf32>
    %19 = vector.multi_reduction <maximumf>, %18, %cst_12 [1] : vector<24x4xf32> to vector<24xf32>
    %20 = vector.shape_cast %19 : vector<24xf32> to vector<24x1xf32>
    %21 = vector.broadcast %20 : vector<24x1xf32> to vector<24x4xf32>
    %22 = arith.subf %18, %21 : vector<24x4xf32>
    %23 = math.exp %22 : vector<24x4xf32>
    %cst_13 = arith.constant dense<0.000000e+00> : vector<24xf32>
    %24 = vector.multi_reduction <add>, %23, %cst_13 [1] : vector<24x4xf32> to vector<24xf32>
    %25 = vector.shape_cast %24 : vector<24xf32> to vector<24x1xf32>
    %26 = vector.broadcast %25 : vector<24x1xf32> to vector<24x4xf32>
    %27 = arith.divf %23, %26 : vector<24x4xf32>
    %cst_14 = arith.constant 2.500000e-01 : f32
    %28 = vector.broadcast %cst_14 : f32 to vector<24x4xf32>
    %29 = arith.cmpf oeq, %27, %28 : vector<24x4xf32>
    %cst_15 = arith.constant 0.000000e+00 : f32
    %30 = vector.broadcast %cst_15 : f32 to vector<24x4xf32>
    %31 = arith.select %29, %30, %27 : vector<24x4xi1>, vector<24x4xf32>
    %32 = vector.shape_cast %31 : vector<24x4xf32> to vector<24x4x1xf32>
    %33 = vector.broadcast %32 : vector<24x4x1xf32> to vector<24x4x8xf32>
    %34 = arith.mulf %33, %2 : vector<24x4x8xf32>
    %cst_16 = arith.constant dense<0.000000e+00> : vector<24x8xf32>
    %35 = vector.multi_reduction <add>, %34, %cst_16 [1] : vector<24x4x8xf32> to vector<24x8xf32>
    %c0_17 = arith.constant 0 : index
    %c0_18 = arith.constant 0 : index
    %36 = vector.load %arg4[%c0_17, %c0_18] : memref<24x8xf32, #tpu.memory_space<vmem>>, vector<24x8xf32>
    tpu.vector_store %arg4[%c0_17, %c0_18], %35 {strides = array<i32>} : memref<24x8xf32, #tpu.memory_space<vmem>>, vector<24x8xf32>,
    return
  }
  func.func @transform_0(%arg0: i32) -> (i32, i32) {
    %c0_i32 = arith.constant 0 : i32
    %c0_i32_0 = arith.constant 0 : i32
    return %arg0, %c0_i32 : i32, i32
  }
  func.func @transform_1(%arg0: i32) -> (i32, i32, i32) {
    %c0_i32 = arith.constant 0 : i32
    %c0_i32_0 = arith.constant 0 : i32
    %c0_i32_1 = arith.constant 0 : i32
    return %arg0, %c0_i32, %c0_i32_0 : i32, i32, i32
  }
  func.func @transform_2(%arg0: i32) -> (i32, i32, i32) {
    %c0_i32 = arith.constant 0 : i32
    %c0_i32_0 = arith.constant 0 : i32
    %c0_i32_1 = arith.constant 0 : i32
    return %arg0, %c0_i32, %c0_i32_0 : i32, i32, i32
  }
  func.func @transform_3(%arg0: i32) -> (i32, i32) {
    %c0_i32 = arith.constant 0 : i32
    %c0_i32_0 = arith.constant 0 : i32
    return %arg0, %c0_i32 : i32, i32
  }
}

module attributes {stable_mosaic.version = 11 : i64} {
  func.func @_linear_kernel(%arg0: i32, %arg1: i32, %arg2: memref<24x8xbf16, #tpu.memory_space<vmem>>, %arg3: memref<8x8xbf16, #tpu.memory_space<vmem>>, %arg4: memref<1x8xf32, #tpu.memory_space<vmem>>, %arg5: memref<24x8xf32, #tpu.memory_space<vmem>>) attributes {dimension_semantics = [#tpu.dimension_semantics<parallel>, #tpu.dimension_semantics<parallel>], iteration_bounds = array<i64: 1, 1>, scalar_prefetch = 0 : i64, scratch_operands = 0 : i64, tpu.core_type = #tpu.core_type<tc>, window_params = [{transform_indices = @transform_0, window_bounds = array<i64: 24, 8>}, {transform_indices = @transform_1, window_bounds = array<i64: 8, 8>}, {transform_indices = @transform_2, window_bounds = array<i64: 1, 8>}, {transform_indices = @transform_3, window_bounds = array<i64: 24, 8>}]} {
    %c0 = arith.constant 0 : index
    %c0_0 = arith.constant 0 : index
    %0 = vector.load %arg2[%c0, %c0_0] : memref<24x8xbf16, #tpu.memory_space<vmem>>, vector<24x8xbf16>
    %c0_1 = arith.constant 0 : index
    %c0_2 = arith.constant 0 : index
    %1 = vector.load %arg3[%c0_1, %c0_2] : memref<8x8xbf16, #tpu.memory_space<vmem>>, vector<8x8xbf16>
    %cst = arith.constant dense<0.000000e+00> : vector<24x8xf32>
    %2 = tpu.matmul %0, %1, %cst {dimension_numbers = #tpu.dot_dimension_numbers<[1], [0], [0], [1], [0, 0, 1, 1], [], []>} : vector<24x8xbf16>, vector<8x8xbf16>, vector<24x8xf32> -> vector<24x8xf32>
    %c0_3 = arith.constant 0 : index
    %c0_4 = arith.constant 0 : index
    %3 = vector.load %arg4[%c0_3, %c0_4] : memref<1x8xf32, #tpu.memory_space<vmem>>, vector<1x8xf32>
    %4 = vector.broadcast %3 : vector<1x8xf32> to vector<24x8xf32>
    %5 = arith.addf %2, %4 : vector<24x8xf32>
    %c0_5 = arith.constant 0 : index
    %c0_6 = arith.constant 0 : index
    %6 = vector.load %arg5[%c0_5, %c0_6] : memref<24x8xf32, #tpu.memory_space<vmem>>, vector<24x8xf32>
    tpu.vector_store %arg5[%c0_5, %c0_6], %5 {strides = array<i32>} : memref<24x8xf32, #tpu.memory_space<vmem>>, vector<24x8xf32>,
    return
  }
  func.func @transform_0(%arg0: i32, %arg1: i32) -> (i32, i32) {
    %c0_i32 = arith.constant 0 : i32
    %c0_i32_0 = arith.constant 0 : i32
    return %arg0, %c0_i32 : i32, i32
  }
  func.func @transform_1(%arg0: i32, %arg1: i32) -> (i32, i32) {
    %c0_i32 = arith.constant 0 : i32
    %c0_i32_0 = arith.constant 0 : i32
    return %c0_i32, %arg1 : i32, i32
  }
  func.func @transform_2(%arg0: i32, %arg1: i32) -> (i32, i32) {
    %c0_i32 = arith.constant 0 : i32
    %c0_i32_0 = arith.constant 0 : i32
    return %c0_i32, %arg1 : i32, i32
  }
  func.func @transform_3(%arg0: i32, %arg1: i32) -> (i32, i32) {
    %c0_i32 = arith.constant 0 : i32
    return %arg0, %arg1 : i32, i32
  }
}

module attributes {stable_mosaic.version = 11 : i64} {
  func.func @_dk_fusion_kernel(%arg0: i32, %arg1: memref<6x8xf32, #tpu.memory_space<vmem>>, %arg2: memref<6x4x8xf32, #tpu.memory_space<vmem>>, %arg3: memref<6x4x16xf32, #tpu.memory_space<vmem>>, %arg4: memref<6x16xf32, #tpu.memory_space<vmem>>) attributes {dimension_semantics = [#tpu.dimension_semantics<parallel>], iteration_bounds = array<i64: 1>, scalar_prefetch = 0 : i64, scratch_operands = 0 : i64, tpu.core_type = #tpu.core_type<tc>, window_params = [{transform_indices = @transform_0, window_bounds = array<i64: 6, 8>}, {transform_indices = @transform_1, window_bounds = array<i64: 6, 4, 8>}, {transform_indices = @transform_2, window_bounds = array<i64: 6, 4, 16>}, {transform_indices = @transform_3, window_bounds = array<i64: 6, 16>}]} {
    %c0 = arith.constant 0 : index
    %c0_0 = arith.constant 0 : index
    %0 = vector.load %arg1[%c0, %c0_0] : memref<6x8xf32, #tpu.memory_space<vmem>>, vector<6x8xf32>
    %c0_1 = arith.constant 0 : index
    %c0_2 = arith.constant 0 : index
    %c0_3 = arith.constant 0 : index
    %1 = vector.load %arg2[%c0_1, %c0_2, %c0_3] : memref<6x4x8xf32, #tpu.memory_space<vmem>>, vector<6x4x8xf32>
    %c0_4 = arith.constant 0 : index
    %c0_5 = arith.constant 0 : index
    %c0_6 = arith.constant 0 : index
    %2 = vector.load %arg3[%c0_4, %c0_5, %c0_6] : memref<6x4x16xf32, #tpu.memory_space<vmem>>, vector<6x4x16xf32>
    %3 = vector.shape_cast %0 : vector<6x8xf32> to vector<6x1x8xf32>
    %4 = vector.broadcast %3 : vector<6x1x8xf32> to vector<6x4x8xf32>
    %5 = arith.mulf %4, %1 : vector<6x4x8xf32>
    %cst = arith.constant dense<0.000000e+00> : vector<6x4xf32>
    %6 = vector.multi_reduction <add>, %5, %cst [2] : vector<6x4x8xf32> to vector<6x4xf32>
    %cst_7 = arith.constant 8.000000e+00 : f32
    %7 = math.sqrt %cst_7 : f32
    %8 = vector.broadcast %7 : f32 to vector<6x4xf32>
    %9 = arith.divf %6, %8 : vector<6x4xf32>
    %cst_8 = arith.constant 0.000000e+00 : f32
    %10 = vector.broadcast %cst_8 : f32 to vector<6x4xf32>
    %11 = arith.cmpf oeq, %9, %10 : vector<6x4xf32>
    %cst_9 = arith.constant -1.000000e+04 : f32
    %12 = vector.broadcast %cst_9 : f32 to vector<6x4xf32>
    %13 = arith.select %11, %12, %9 : vector<6x4xi1>, vector<6x4xf32>
    %cst_10 = arith.constant 0.000000e+00 : f32
    %14 = vector.broadcast %cst_10 : f32 to vector<6x4xf32>
    %15 = arith.cmpf oge, %13, %14 : vector<6x4xf32>
    %cst_11 = arith.constant 0.00999999977 : f32
    %16 = vector.broadcast %cst_11 : f32 to vector<6x4xf32>
    %17 = arith.mulf %16, %13 : vector<6x4xf32>
    %18 = arith.select %15, %13, %17 : vector<6x4xi1>, vector<6x4xf32>
    %cst_12 = arith.constant dense<0xFF800000> : vector<6xf32>
    %19 = vector.multi_reduction <maximumf>, %18, %cst_12 [1] : vector<6x4xf32> to vector<6xf32>
    %20 = vector.shape_cast %19 : vector<6xf32> to vector<6x1xf32>
    %21 = vector.broadcast %20 : vector<6x1xf32> to vector<6x4xf32>
    %22 = arith.subf %18, %21 : vector<6x4xf32>
    %23 = math.exp %22 : vector<6x4xf32>
    %cst_13 = arith.constant dense<0.000000e+00> : vector<6xf32>
    %24 = vector.multi_reduction <add>, %23, %cst_13 [1] : vector<6x4xf32> to vector<6xf32>
    %25 = vector.shape_cast %24 : vector<6xf32> to vector<6x1xf32>
    %26 = vector.broadcast %25 : vector<6x1xf32> to vector<6x4xf32>
    %27 = arith.divf %23, %26 : vector<6x4xf32>
    %cst_14 = arith.constant 2.500000e-01 : f32
    %28 = vector.broadcast %cst_14 : f32 to vector<6x4xf32>
    %29 = arith.cmpf oeq, %27, %28 : vector<6x4xf32>
    %cst_15 = arith.constant 0.000000e+00 : f32
    %30 = vector.broadcast %cst_15 : f32 to vector<6x4xf32>
    %31 = arith.select %29, %30, %27 : vector<6x4xi1>, vector<6x4xf32>
    %32 = vector.shape_cast %31 : vector<6x4xf32> to vector<6x4x1xf32>
    %33 = vector.broadcast %32 : vector<6x4x1xf32> to vector<6x4x16xf32>
    %34 = arith.mulf %33, %2 : vector<6x4x16xf32>
    %cst_16 = arith.constant dense<0.000000e+00> : vector<6x16xf32>
    %35 = vector.multi_reduction <add>, %34, %cst_16 [1] : vector<6x4x16xf32> to vector<6x16xf32>
    %c0_17 = arith.constant 0 : index
    %c0_18 = arith.constant 0 : index
    %36 = vector.load %arg4[%c0_17, %c0_18] : memref<6x16xf32, #tpu.memory_space<vmem>>, vector<6x16xf32>
    tpu.vector_store %arg4[%c0_17, %c0_18], %35 {strides = array<i32>} : memref<6x16xf32, #tpu.memory_space<vmem>>, vector<6x16xf32>,
    return
  }
  func.func @transform_0(%arg0: i32) -> (i32, i32) {
    %c0_i32 = arith.constant 0 : i32
    %c0_i32_0 = arith.constant 0 : i32
    return %arg0, %c0_i32 : i32, i32
  }
  func.func @transform_1(%arg0: i32) -> (i32, i32, i32) {
    %c0_i32 = arith.constant 0 : i32
    %c0_i32_0 = arith.constant 0 : i32
    %c0_i32_1 = arith.constant 0 : i32
    return %arg0, %c0_i32, %c0_i32_0 : i32, i32, i32
  }
  func.func @transform_2(%arg0: i32) -> (i32, i32, i32) {
    %c0_i32 = arith.constant 0 : i32
    %c0_i32_0 = arith.constant 0 : i32
    %c0_i32_1 = arith.constant 0 : i32
    return %arg0, %c0_i32, %c0_i32_0 : i32, i32, i32
  }
  func.func @transform_3(%arg0: i32) -> (i32, i32) {
    %c0_i32 = arith.constant 0 : i32
    %c0_i32_0 = arith.constant 0 : i32
    return %arg0, %c0_i32 : i32, i32
  }
}

module attributes {stable_mosaic.version = 11 : i64} {
  func.func @_linear2_kernel(%arg0: i32, %arg1: i32, %arg2: memref<16x32xbf16, #tpu.memory_space<vmem>>, %arg3: memref<32x64xbf16, #tpu.memory_space<vmem>>, %arg4: memref<16x16xbf16, #tpu.memory_space<vmem>>, %arg5: memref<16x64xbf16, #tpu.memory_space<vmem>>, %arg6: memref<1x64xf32, #tpu.memory_space<vmem>>, %arg7: memref<16x64xbf16, #tpu.memory_space<vmem>>) attributes {dimension_semantics = [#tpu.dimension_semantics<parallel>, #tpu.dimension_semantics<parallel>], iteration_bounds = array<i64: 1, 1>, scalar_prefetch = 0 : i64, scratch_operands = 0 : i64, tpu.core_type = #tpu.core_type<tc>, window_params = [{transform_indices = @transform_0, window_bounds = array<i64: 16, 32>}, {transform_indices = @transform_1, window_bounds = array<i64: 32, 64>}, {transform_indices = @transform_2, window_bounds = array<i64: 16, 16>}, {transform_indices = @transform_3, window_bounds = array<i64: 16, 64>}, {transform_indices = @transform_4, window_bounds = array<i64: 1, 64>}, {transform_indices = @transform_5, window_bounds = array<i64: 16, 64>}]} {
    %c0 = arith.constant 0 : index
    %c0_0 = arith.constant 0 : index
    %0 = vector.load %arg2[%c0, %c0_0] : memref<16x32xbf16, #tpu.memory_space<vmem>>, vector<16x32xbf16>
    %c0_1 = arith.constant 0 : index
    %c0_2 = arith.constant 0 : index
    %1 = vector.load %arg3[%c0_1, %c0_2] : memref<32x64xbf16, #tpu.memory_space<vmem>>, vector<32x64xbf16>
    %cst = arith.constant dense<0.000000e+00> : vector<16x64xf32>
    %2 = tpu.matmul %0, %1, %cst {dimension_numbers = #tpu.dot_dimension_numbers<[1], [0], [0], [1], [0, 0, 1, 1], [], []>} : vector<16x32xbf16>, vector<32x64xbf16>, vector<16x64xf32> -> vector<16x64xf32>
    %c0_3 = arith.constant 0 : index
    %c0_4 = arith.constant 0 : index
    %3 = vector.load %arg4[%c0_3, %c0_4] : memref<16x16xbf16, #tpu.memory_space<vmem>>, vector<16x16xbf16>
    %c0_5 = arith.constant 0 : index
    %c0_6 = arith.constant 0 : index
    %4 = vector.load %arg5[%c0_5, %c0_6] : memref<16x64xbf16, #tpu.memory_space<vmem>>, vector<16x64xbf16>
    %cst_7 = arith.constant dense<0.000000e+00> : vector<16x64xf32>
    %5 = tpu.matmul %3, %4, %cst_7 {dimension_numbers = #tpu.dot_dimension_numbers<[1], [0], [0], [1], [0, 0, 1, 1], [], []>} : vector<16x16xbf16>, vector<16x64xbf16>, vector<16x64xf32> -> vector<16x64xf32>
    %6 = arith.addf %2, %5 : vector<16x64xf32>
    %c0_8 = arith.constant 0 : index
    %c0_9 = arith.constant 0 : index
    %7 = vector.load %arg6[%c0_8, %c0_9] : memref<1x64xf32, #tpu.memory_space<vmem>>, vector<1x64xf32>
    %8 = vector.broadcast %7 : vector<1x64xf32> to vector<16x64xf32>
    %9 = arith.addf %6, %8 : vector<16x64xf32>
    %cst_10 = arith.constant 5.000000e-01 : f32
    %10 = vector.broadcast %cst_10 : f32 to vector<16x64xf32>
    %11 = arith.mulf %10, %9 : vector<16x64xf32>
    %cst_11 = arith.constant 4.471500e-02 : f32
    %12 = vector.broadcast %cst_11 : f32 to vector<16x64xf32>
    %13 = arith.mulf %12, %9 : vector<16x64xf32>
    %14 = arith.mulf %13, %9 : vector<16x64xf32>
    %15 = arith.mulf %14, %9 : vector<16x64xf32>
    %16 = arith.addf %9, %15 : vector<16x64xf32>
    %cst_12 = arith.constant 0.797884583 : f32
    %17 = vector.broadcast %cst_12 : f32 to vector<16x64xf32>
    %18 = arith.mulf %17, %16 : vector<16x64xf32>
    %19 = math.tanh %18 : vector<16x64xf32>
    %cst_13 = arith.constant 1.000000e+00 : f32
    %20 = vector.broadcast %cst_13 : f32 to vector<16x64xf32>
    %21 = arith.addf %20, %19 : vector<16x64xf32>
    %22 = arith.mulf %11, %21 : vector<16x64xf32>
    %23 = arith.truncf %22 : vector<16x64xf32> to vector<16x64xbf16>
    %c0_14 = arith.constant 0 : index
    %c0_15 = arith.constant 0 : index
    %24 = vector.load %arg7[%c0_14, %c0_15] : memref<16x64xbf16, #tpu.memory_space<vmem>>, vector<16x64xbf16>
    tpu.vector_store %arg7[%c0_14, %c0_15], %23 {strides = array<i32>} : memref<16x64xbf16, #tpu.memory_space<vmem>>, vector<16x64xbf16>,
    return
  }
  func.func @transform_0(%arg0: i32, %arg1: i32) -> (i32, i32) {
    %c0_i32 = arith.constant 0 : i32
    %c0_i32_0 = arith.constant 0 : i32
    return %arg0, %c0_i32 : i32, i32
  }
  func.func @transform_1(%arg0: i32, %arg1: i32) -> (i32, i32) {
    %c0_i32 = arith.constant 0 : i32
    %c0_i32_0 = arith.constant 0 : i32
    return %c0_i32, %arg1 : i32, i32
  }
  func.func @transform_2(%arg0: i32, %arg1: i32) -> (i32, i32) {
    %c0_i32 = arith.constant 0 : i32
    %c0_i32_0 = arith.constant 0 : i32
    return %arg0, %c0_i32 : i32, i32
  }
  func.func @transform_3(%arg0: i32, %arg1: i32) -> (i32, i32) {
    %c0_i32 = arith.constant 0 : i32
    %c0_i32_0 = arith.constant 0 : i32
    return %c0_i32, %arg1 : i32, i32
  }
  func.func @transform_4(%arg0: i32, %arg1: i32) -> (i32, i32) {
    %c0_i32 = arith.constant 0 : i32
    %c0_i32_0 = arith.constant 0 : i32
    return %c0_i32, %arg1 : i32, i32
  }
  func.func @transform_5(%arg0: i32, %arg1: i32) -> (i32, i32) {
    %c0_i32 = arith.constant 0 : i32
    return %arg0, %arg1 : i32, i32
  }
}

module attributes {stable_mosaic.version = 11 : i64} {
  func.func @_linear_kernel(%arg0: i32, %arg1: i32, %arg2: memref<2x32xbf16, #tpu.memory_space<vmem>>, %arg3: memref<32x32xbf16, #tpu.memory_space<vmem>>, %arg4: memref<1x32xf32, #tpu.memory_space<vmem>>, %arg5: memref<2x32xf32, #tpu.memory_space<vmem>>) attributes {dimension_semantics = [#tpu.dimension_semantics<parallel>, #tpu.dimension_semantics<parallel>], iteration_bounds = array<i64: 1, 1>, scalar_prefetch = 0 : i64, scratch_operands = 0 : i64, tpu.core_type = #tpu.core_type<tc>, window_params = [{transform_indices = @transform_0, window_bounds = array<i64: 2, 32>}, {transform_indices = @transform_1, window_bounds = array<i64: 32, 32>}, {transform_indices = @transform_2, window_bounds = array<i64: 1, 32>}, {transform_indices = @transform_3, window_bounds = array<i64: 2, 32>}]} {
    %c0 = arith.constant 0 : index
    %c0_0 = arith.constant 0 : index
    %0 = vector.load %arg2[%c0, %c0_0] : memref<2x32xbf16, #tpu.memory_space<vmem>>, vector<2x32xbf16>
    %c0_1 = arith.constant 0 : index
    %c0_2 = arith.constant 0 : index
    %1 = vector.load %arg3[%c0_1, %c0_2] : memref<32x32xbf16, #tpu.memory_space<vmem>>, vector<32x32xbf16>
    %cst = arith.constant dense<0.000000e+00> : vector<2x32xf32>
    %2 = tpu.matmul %0, %1, %cst {dimension_numbers = #tpu.dot_dimension_numbers<[1], [0], [0], [1], [0, 0, 1, 1], [], []>} : vector<2x32xbf16>, vector<32x32xbf16>, vector<2x32xf32> -> vector<2x32xf32>
    %c0_3 = arith.constant 0 : index
    %c0_4 = arith.constant 0 : index
    %3 = vector.load %arg4[%c0_3, %c0_4] : memref<1x32xf32, #tpu.memory_space<vmem>>, vector<1x32xf32>
    %4 = vector.broadcast %3 : vector<1x32xf32> to vector<2x32xf32>
    %5 = arith.addf %2, %4 : vector<2x32xf32>
    %6 = math.tanh %5 : vector<2x32xf32>
    %c0_5 = arith.constant 0 : index
    %c0_6 = arith.constant 0 : index
    %7 = vector.load %arg5[%c0_5, %c0_6] : memref<2x32xf32, #tpu.memory_space<vmem>>, vector<2x32xf32>
    tpu.vector_store %arg5[%c0_5, %c0_6], %6 {strides = array<i32>} : memref<2x32xf32, #tpu.memory_space<vmem>>, vector<2x32xf32>,
    return
  }
  func.func @transform_0(%arg0: i32, %arg1: i32) -> (i32, i32) {
    %c0_i32 = arith.constant 0 : i32
    %c0_i32_0 = arith.constant 0 : i32
    return %arg0, %c0_i32 : i32, i32
  }
  func.func @transform_1(%arg0: i32, %arg1: i32) -> (i32, i32) {
    %c0_i32 = arith.constant 0 : i32
    %c0_i32_0 = arith.constant 0 : i32
    return %c0_i32, %arg1 : i32, i32
  }
  func.func @transform_2(%arg0: i32, %arg1: i32) -> (i32, i32) {
    %c0_i32 = arith.constant 0 : i32
    %c0_i32_0 = arith.constant 0 : i32
    return %c0_i32, %arg1 : i32, i32
  }
  func.func @transform_3(%arg0: i32, %arg1: i32) -> (i32, i32) {
    %c0_i32 = arith.constant 0 : i32
    return %arg0, %arg1 : i32, i32
  }
}

</mosaic_0001>

<llo_original>
// kernel: _lambda_.23
$region0: #{_lambda_.23}
  #allocation0 [shape = 'u32[]', space=smem, size = 0x4, offset = 0x4, fixed_abs, tag = 'smem constant byte address 0x4 - core index']
  #allocation1 [shape = 'u32[72,128]{1,0:T(1,128)}', space=vmem, size = 0x9000, scoped, tag = 'internal scratch']
  %s0 = inlined_call_operand.vmem [shape: bf16[16,32], index: 0, kind: input, shape index: {}]
  %s1 = inlined_call_operand.vmem [shape: bf16[32,96], index: 1, kind: input, shape index: {}]
  %s2 = inlined_call_operand.vmem [shape: f32[1,96], index: 2, kind: input, shape index: {}]
  %s3 = inlined_call_operand.vmem [shape: bf16[16,96], index: 3, kind: output, shape index: {}]
  %s4 = sld [smem:[#allocation0]]
  $region22: #{_lambda_.23} parent=0
    _
  %s6 = ssub.s32 1, %s4
  %s7 = scalar_select 0, %s6, %s4
  // Predicated region
  $region2: #{_lambda_.23} parent=0 // pred_check
    _
  $region3: #{_lambda_.23} parent=0 // pred_check_branch
    %9 = sbr.rel (0) target = $region5
  $region4: #{_lambda_.23} parent=0 // pred_region
    _
  $region5: #{_lambda_.23} parent=0 // pred_fallthru
    _
  // Predicated region
  $region6: #{_lambda_.23} parent=0 // pred_check
    _
  $region7: #{_lambda_.23} parent=0 // pred_check_branch
    %11 = sbr.rel (0) target = $region9
  $region8: #{_lambda_.23} parent=0 // pred_region
    _
  $region9: #{_lambda_.23} parent=0 // pred_fallthru
    _
  // Predicated region
  $region10: #{_lambda_.23} parent=0 // pred_check
    _
  $region11: #{_lambda_.23} parent=0 // pred_check_branch
    %13 = sbr.rel (0) target = $region13
  $region12: #{_lambda_.23} parent=0 // pred_region
    _
  $region13: #{_lambda_.23} parent=0 // pred_fallthru
    _
  %v15 = vld [vmem:[%s0] sm:$0xf]
  %v16 = vld [vmem:[%s0 + $0x4] sm:$0xf]
  %v17 = vld [vmem:[%s1] sm:$0xf]
  %v18 = vld [vmem:[%s1 + $0x4] sm:$0xf]
  %v19 = vld [vmem:[%s1 + $0x8] sm:$0xf]
  %v20 = vld [vmem:[%s1 + $0xc] sm:$0xf]
  %v21 = vld [vmem:[%s2] sm:$0x1]
  %v23 = vperm.slane %v21, 0
  %v27 = vunpack.c.l.b16 %v15
  %v28 = vunpack.c.l.b16 %v16
  %v29 = vpack.c.b16 %v28, %v27
  %v34 = vunpack.c.l.b16 %v17
  %v35 = vunpack.c.l.b16 %v18
  %v36 = vunpack.c.l.b16 %v19
  %v37 = vunpack.c.l.b16 %v20
  %v38 = vpack.c.b16 %v35, %v34
  %v39 = vpack.c.b16 %v37, %v36
  %vm42 = vcmask 261120
  %v44 = vsel %vm42, %v29, 0
  %46 = vmatpush.bf16.msra.mxu0 0
  %47 = vmatpush.bf16.msra.mxu0 0
  %48 = vmatpush.bf16.msra.mxu0 0
  %49 = vmatpush.bf16.msra.mxu0 0
  %50 = vmatpush.bf16.msra.mxu0 0
  %51 = vmatpush.bf16.msra.mxu0 0
  %52 = vmatpush.bf16.msra.mxu0 %v39
  %53 = vmatpush.bf16.msra.mxu0 %v38
  %54 = vmatmul.bf16.gmra.mxu0 %v44
  %v55 = vpop.f32.mrf.mxu0
  %v56 = vadd.f32 %v23, %v55
  %v57 = vpop.f32.mrf.mxu0
  %v58 = vadd.f32 %v23, %v57
  %59 = vdwg.mxu0
  %v60 = vpack.c.bf16 %v56, %v56
  %v61 = vpack.c.bf16 %v58, %v58
  %vm62 = vcmask 781312
  %63 = vst.msk [vmem:[%s3] sm:$0xf] %vm62, %v60
  %64 = vst.msk [vmem:[%s3 + $0x4] sm:$0xf] %vm62, %v61
  // Predicated region
  $region14: #{_lambda_.23} parent=0 // pred_check
    _
  $region15: #{_lambda_.23} parent=0 // pred_check_branch
    %66 = sbr.rel (0) target = $region17
  $region16: #{_lambda_.23} parent=0 // pred_region
    _
  $region17: #{_lambda_.23} parent=0 // pred_fallthru
    _
  // Predicated region
  $region18: #{_lambda_.23} parent=0 // pred_check
    _
  $region19: #{_lambda_.23} parent=0 // pred_check_branch
    %68 = sbr.rel (0) target = $region21
  $region20: #{_lambda_.23} parent=0 // pred_region
    _
  $region21: #{_lambda_.23} parent=0 // pred_fallthru
    _

// kernel: _lambda_.25
$region0: #{_lambda_.25}
  #allocation0 [shape = 'u32[]', space=smem, size = 0x4, offset = 0x4, fixed_abs, tag = 'smem constant byte address 0x4 - core index']
  #allocation1 [shape = 'u32[72,128]{1,0:T(1,128)}', space=vmem, size = 0x9000, scoped, tag = 'internal scratch']
  %s0 = inlined_call_operand.vmem [shape: bf16[16,32], index: 0, kind: input, shape index: {}]
  %s1 = inlined_call_operand.vmem [shape: bf16[32,32], index: 1, kind: input, shape index: {}]
  %s2 = inlined_call_operand.vmem [shape: f32[1,32], index: 2, kind: input, shape index: {}]
  %s3 = inlined_call_operand.vmem [shape: bf16[16,32], index: 3, kind: output, shape index: {}]
  %s4 = sld [smem:[#allocation0]]
  $region22: #{_lambda_.25} parent=0
    _
  %s6 = ssub.s32 1, %s4
  %s7 = scalar_select 0, %s6, %s4
  // Predicated region
  $region2: #{_lambda_.25} parent=0 // pred_check
    _
  $region3: #{_lambda_.25} parent=0 // pred_check_branch
    %9 = sbr.rel (0) target = $region5
  $region4: #{_lambda_.25} parent=0 // pred_region
    _
  $region5: #{_lambda_.25} parent=0 // pred_fallthru
    _
  // Predicated region
  $region6: #{_lambda_.25} parent=0 // pred_check
    _
  $region7: #{_lambda_.25} parent=0 // pred_check_branch
    %11 = sbr.rel (0) target = $region9
  $region8: #{_lambda_.25} parent=0 // pred_region
    _
  $region9: #{_lambda_.25} parent=0 // pred_fallthru
    _
  // Predicated region
  $region10: #{_lambda_.25} parent=0 // pred_check
    _
  $region11: #{_lambda_.25} parent=0 // pred_check_branch
    %13 = sbr.rel (0) target = $region13
  $region12: #{_lambda_.25} parent=0 // pred_region
    _
  $region13: #{_lambda_.25} parent=0 // pred_fallthru
    _
  %v15 = vld [vmem:[%s0] sm:$0xf]
  %v16 = vld [vmem:[%s0 + $0x4] sm:$0xf]
  %v17 = vld [vmem:[%s1] sm:$0xf]
  %v18 = vld [vmem:[%s1 + $0x4] sm:$0xf]
  %v19 = vld [vmem:[%s1 + $0x8] sm:$0xf]
  %v20 = vld [vmem:[%s1 + $0xc] sm:$0xf]
  %v21 = vld [vmem:[%s2] sm:$0x1]
  %v23 = vperm.slane %v21, 0
  %v27 = vunpack.c.l.b16 %v15
  %v28 = vunpack.c.l.b16 %v16
  %v29 = vpack.c.b16 %v28, %v27
  %v34 = vunpack.c.l.b16 %v17
  %v35 = vunpack.c.l.b16 %v18
  %v36 = vunpack.c.l.b16 %v19
  %v37 = vunpack.c.l.b16 %v20
  %v38 = vpack.c.b16 %v35, %v34
  %v39 = vpack.c.b16 %v37, %v36
  %vm42 = vcmask 261120
  %v44 = vsel %vm42, %v29, 0
  %46 = vmatpush.bf16.msra.mxu0 0
  %47 = vmatpush.bf16.msra.mxu0 0
  %48 = vmatpush.bf16.msra.mxu0 0
  %49 = vmatpush.bf16.msra.mxu0 0
  %50 = vmatpush.bf16.msra.mxu0 0
  %51 = vmatpush.bf16.msra.mxu0 0
  %52 = vmatpush.bf16.msra.mxu0 %v39
  %53 = vmatpush.bf16.msra.mxu0 %v38
  %54 = vmatmul.bf16.gmra.mxu0 %v44
  %v55 = vpop.f32.mrf.mxu0
  %v56 = vadd.f32 %v23, %v55
  %v57 = vpop.f32.mrf.mxu0
  %v58 = vadd.f32 %v23, %v57
  %59 = vdwg.mxu0
  %v60 = vpack.c.bf16 %v56, %v56
  %v61 = vpack.c.bf16 %v58, %v58
  %vm62 = vcmask 257024
  %63 = vst.msk [vmem:[%s3] sm:$0xf] %vm62, %v60
  %64 = vst.msk [vmem:[%s3 + $0x4] sm:$0xf] %vm62, %v61
  // Predicated region
  $region14: #{_lambda_.25} parent=0 // pred_check
    _
  $region15: #{_lambda_.25} parent=0 // pred_check_branch
    %66 = sbr.rel (0) target = $region17
  $region16: #{_lambda_.25} parent=0 // pred_region
    _
  $region17: #{_lambda_.25} parent=0 // pred_fallthru
    _
  // Predicated region
  $region18: #{_lambda_.25} parent=0 // pred_check
    _
  $region19: #{_lambda_.25} parent=0 // pred_check_branch
    %68 = sbr.rel (0) target = $region21
  $region20: #{_lambda_.25} parent=0 // pred_region
    _
  $region21: #{_lambda_.25} parent=0 // pred_fallthru
    _

// kernel: _lambda_.22
$region0: #{_lambda_.22}
  #allocation0 [shape = 'u32[]', space=smem, size = 0x4, offset = 0x4, fixed_abs, tag = 'smem constant byte address 0x4 - core index']
  #allocation1 [shape = 'u32[72,128]{1,0:T(1,128)}', space=vmem, size = 0x9000, scoped, tag = 'internal scratch']
  %s0 = inlined_call_operand.vmem [shape: f32[16,32], index: 0, kind: input, shape index: {}]
  %s1 = inlined_call_operand.vmem [shape: f32[1,32], index: 1, kind: input, shape index: {}]
  %s2 = inlined_call_operand.vmem [shape: f32[1,32], index: 2, kind: input, shape index: {}]
  %s3 = inlined_call_operand.vmem [shape: bf16[16,32], index: 3, kind: output, shape index: {}]
  %s4 = sld [smem:[#allocation0]]
  $region22: #{_lambda_.22} parent=0
    _
  %s6 = ssub.s32 1, %s4
  %s7 = scalar_select 0, %s6, %s4
  // Predicated region
  $region2: #{_lambda_.22} parent=0 // pred_check
    _
  $region3: #{_lambda_.22} parent=0 // pred_check_branch
    %9 = sbr.rel (0) target = $region5
  $region4: #{_lambda_.22} parent=0 // pred_region
    _
  $region5: #{_lambda_.22} parent=0 // pred_fallthru
    _
  // Predicated region
  $region6: #{_lambda_.22} parent=0 // pred_check
    _
  $region7: #{_lambda_.22} parent=0 // pred_check_branch
    %11 = sbr.rel (0) target = $region9
  $region8: #{_lambda_.22} parent=0 // pred_region
    _
  $region9: #{_lambda_.22} parent=0 // pred_fallthru
    _
  // Predicated region
  $region10: #{_lambda_.22} parent=0 // pred_check
    _
  $region11: #{_lambda_.22} parent=0 // pred_check_branch
    %13 = sbr.rel (0) target = $region13
  $region12: #{_lambda_.22} parent=0 // pred_region
    _
  $region13: #{_lambda_.22} parent=0 // pred_fallthru
    _
  %v14 = vld [vmem:[%s0] sm:$0xff]
  %v15 = vld [vmem:[%s0 + $0x8] sm:$0xff]
  %vm16 = vcmask 261120
  %v17 = vsel %vm16, %v14, 0.0
  %18 = vadd.xlane.f32.xlu0 %v17
  %v19 = vpop.xlane.xlu0 %18
  %v20 = vsel %vm16, %v15, 0.0
  %21 = vadd.xlane.f32.xlu0 %v20
  %v22 = vpop.xlane.xlu0 %21
  %v23 = vrcp.pop 32.0
  %v24 = vmul.f32 32.0, %v23
  %v25 = vsub.f32 1.0, %v24
  %v26 = vmul.f32 %v23, %v25
  %v27 = vadd.f32 %v23, %v26
  %vm28 = vweird.f32 %v23
  %v29 = vsel %vm28, %v23, %v27
  %v30 = vmul.f32 %v19, %v29
  %v31 = vmul.f32 %v22, %v29
  %v32 = vsub.f32 %v14, %v30
  %v33 = vsub.f32 %v15, %v31
  %v34 = vmul.f32 %v32, %v32
  %v35 = vmul.f32 %v33, %v33
  %v36 = vsel %vm16, %v34, 0.0
  %37 = vadd.xlane.f32.xlu0 %v36
  %v38 = vpop.xlane.xlu0 %37
  %v39 = vsel %vm16, %v35, 0.0
  %40 = vadd.xlane.f32.xlu0 %v39
  %v41 = vpop.xlane.xlu0 %40
  %v42 = vmul.f32 %v38, %v29
  %v43 = vmul.f32 %v41, %v29
  %v44 = vadd.f32 %v42, 1e-12
  %v45 = vadd.f32 %v43, 1e-12
  %v46 = vrsqrt.pop %v44
  %v47 = vmul.f32 %v46, %v44
  %v48 = vmul.f32 %v47, %v46
  %v49 = vmul.f32 0.5, %v48
  %v50 = vsub.f32 1.5, %v49
  %v51 = vmul.f32 %v46, %v50
  %v52 = vmul.f32 %v44, %v51
  %vm53 = vcmp.eq.f32.partialorder %v44, inf
  %v54 = vsel %vm53, %v44, %v52
  %vm55 = vcmp.eq.f32.partialorder %v44, 0.0
  %v56 = vand.u32 %v44, 2147483648
  %v57 = vsel %vm55, %v56, %v54
  %v58 = vrsqrt.pop %v45
  %v59 = vmul.f32 %v58, %v45
  %v60 = vmul.f32 %v59, %v58
  %v61 = vmul.f32 0.5, %v60
  %v62 = vsub.f32 1.5, %v61
  %v63 = vmul.f32 %v58, %v62
  %v64 = vmul.f32 %v45, %v63
  %vm65 = vcmp.eq.f32.partialorder %v45, inf
  %v66 = vsel %vm65, %v45, %v64
  %vm67 = vcmp.eq.f32.partialorder %v45, 0.0
  %v68 = vand.u32 %v45, 2147483648
  %v69 = vsel %vm67, %v68, %v66
  %v70 = vrcp.pop %v57
  %v71 = vmul.f32 %v57, %v70
  %v72 = vsub.f32 1.0, %v71
  %v73 = vmul.f32 %v70, %v72
  %v74 = vadd.f32 %v70, %v73
  %vm75 = vweird.f32 %v57
  %vm76 = vweird.f32 %v70
  %vm77 = vmor %vm75, %vm76
  %v78 = vsel %vm77, %v70, %v74
  %v79 = vand.u32 2147483647, %v57
  %vm80 = vcmp.eq.f32.partialorder %v79, 8.507059e+37
  %v81 = vand.u32 %v57, 2147483648
  %v82 = vor.u32 1.1754944e-38, %v81
  %v83 = vsel %vm80, %v82, %v78
  %v84 = vmul.f32 %v32, %v83
  %v85 = vrcp.pop %v69
  %v86 = vmul.f32 %v69, %v85
  %v87 = vsub.f32 1.0, %v86
  %v88 = vmul.f32 %v85, %v87
  %v89 = vadd.f32 %v85, %v88
  %vm90 = vweird.f32 %v69
  %vm91 = vweird.f32 %v85
  %vm92 = vmor %vm90, %vm91
  %v93 = vsel %vm92, %v85, %v89
  %v94 = vand.u32 2147483647, %v69
  %vm95 = vcmp.eq.f32.partialorder %v94, 8.507059e+37
  %v96 = vand.u32 %v69, 2147483648
  %v97 = vor.u32 1.1754944e-38, %v96
  %v98 = vsel %vm95, %v97, %v93
  %v99 = vmul.f32 %v33, %v98
  %v100 = vld [vmem:[%s1] sm:$0x1]
  %v102 = vperm.slane %v100, 0
  %v104 = vmul.f32 %v84, %v102
  %v105 = vmul.f32 %v99, %v102
  %v106 = vld [vmem:[%s2] sm:$0x1]
  %v108 = vperm.slane %v106, 0
  %v110 = vadd.f32 %v104, %v108
  %v111 = vadd.f32 %v105, %v108
  %v112 = vpack.c.bf16 %v110, %v110
  %v113 = vpack.c.bf16 %v111, %v111
  %vm114 = vcmask 257024
  %115 = vst.msk [vmem:[%s3] sm:$0xf] %vm114, %v112
  %116 = vst.msk [vmem:[%s3 + $0x4] sm:$0xf] %vm114, %v113
  // Predicated region
  $region14: #{_lambda_.22} parent=0 // pred_check
    _
  $region15: #{_lambda_.22} parent=0 // pred_check_branch
    %118 = sbr.rel (0) target = $region17
  $region16: #{_lambda_.22} parent=0 // pred_region
    _
  $region17: #{_lambda_.22} parent=0 // pred_fallthru
    _
  // Predicated region
  $region18: #{_lambda_.22} parent=0 // pred_check
    _
  $region19: #{_lambda_.22} parent=0 // pred_check_branch
    %120 = sbr.rel (0) target = $region21
  $region20: #{_lambda_.22} parent=0 // pred_region
    _
  $region21: #{_lambda_.22} parent=0 // pred_fallthru
    _

// kernel: _lambda_.24
$region0: #{_lambda_.24}
  #allocation0 [shape = 'u32[]', space=smem, size = 0x4, offset = 0x4, fixed_abs, tag = 'smem constant byte address 0x4 - core index']
  #allocation1 [shape = 'u32[72,128]{1,0:T(1,128)}', space=vmem, size = 0x9000, scoped, tag = 'internal scratch']
  %s0 = inlined_call_operand.vmem [shape: bf16[2,8,96], index: 0, kind: input, shape index: {}]
  %s1 = inlined_call_operand.vmem [shape: f32[2,1,8], index: 1, kind: input, shape index: {}]
  %s2 = inlined_call_operand.vmem [shape: bf16[2,8,32], index: 2, kind: output, shape index: {}]
  %s3 = sld [smem:[#allocation0]]
  $region41: #{_lambda_.24} parent=0
    _
  %s5 = ssub.s32 1, %s3
  %s6 = scalar_select 0, %s5, %s3
  loop: start=0, step=1, limit=4
  $region2: #{_lambda_.24} parent=0 // loop_pre_header
    _
  $region3: #{_lambda_.24} parent=0 // loop_header
    %s8 = sphi 0, %s12
    %p9 = scmp.ge.s32.totalorder %s8, 4
    %s18 = sphi 0, %s20
    %s21 = sphi 0, %s18
    %s22 = sphi 0, %s21
    %s38 = sphi 0, %s22
    %s44 = sphi 0, %s46
    %s47 = sphi 0, %s44
    %s48 = sphi 0, %s47
    %s64 = sphi 0, %s48
    %s70 = sphi 0, %s72
    %s73 = sphi 0, %s70
    %s74 = sphi 0, %s73
    %s90 = sphi 0, %s74
  $region4: #{_lambda_.24} parent=0 // loop_header_branch
    %11 = sbr.rel (%p9) target = $region8
  $region5: #{_lambda_.24} parent=0 // loop_body
    %s13 = ssub.s32 %s8, 1
    %s14 = ssub.s32 %s8, 2
    %s15 = sadd.s32 %s8, 1
    %s16 = ssub.s32 %s8, %s15
    %p17 = scmp.eq.s32.totalorder %s16, 0
    %s19 = sadd.s32 %s18, 1
    %s20 = scalar_select %p17, %s18, %s19
    %p23 = pneg %p17
    %p24 = scmp.eq.s32.totalorder %s8, 1
    %p25 = por %p23, %p24
    %p26 = scmp.ne.s32.totalorder %s18, %s21
    %p27 = scmp.eq.s32.totalorder %s8, 0
    %p28 = por %p26, %p27
    %p29 = scmp.ne.s32.totalorder %s18, %s21
    %p30 = scmp.eq.s32.totalorder %s13, 1
    %p31 = por %p29, %p30
    %p32 = scmp.ne.s32.totalorder %s21, %s22
    %p33 = scmp.eq.s32.totalorder %s13, 0
    %p34 = por %p32, %p33
    %p35 = scmp.ne.s32.totalorder %s21, %s22
    %p36 = scmp.eq.s32.totalorder %s14, 1
    %p37 = por %p35, %p36
    %p39 = scmp.ne.s32.totalorder %s22, %s38
    %p40 = scmp.eq.s32.totalorder %s14, 0
    %p41 = por %p39, %p40
    %s42 = ssub.s32 %s8, %s15
    %p43 = scmp.eq.s32.totalorder %s42, 0
    %s45 = sadd.s32 %s44, 1
    %s46 = scalar_select %p43, %s44, %s45
    %p49 = pneg %p43
    %p50 = scmp.eq.s32.totalorder %s8, 1
    %p51 = por %p49, %p50
    %p52 = scmp.ne.s32.totalorder %s44, %s47
    %p53 = scmp.eq.s32.totalorder %s8, 0
    %p54 = por %p52, %p53
    %p55 = scmp.ne.s32.totalorder %s44, %s47
    %p56 = scmp.eq.s32.totalorder %s13, 1
    %p57 = por %p55, %p56
    %p58 = scmp.ne.s32.totalorder %s47, %s48
    %p59 = scmp.eq.s32.totalorder %s13, 0
    %p60 = por %p58, %p59
    %p61 = scmp.ne.s32.totalorder %s47, %s48
    %p62 = scmp.eq.s32.totalorder %s14, 1
    %p63 = por %p61, %p62
    %p65 = scmp.ne.s32.totalorder %s48, %s64
    %p66 = scmp.eq.s32.totalorder %s14, 0
    %p67 = por %p65, %p66
    %s68 = ssub.s32 %s8, %s15
    %p69 = scmp.eq.s32.totalorder %s68, 0
    %s71 = sadd.s32 %s70, 1
    %s72 = scalar_select %p69, %s70, %s71
    %p75 = pneg %p69
    %p76 = scmp.eq.s32.totalorder %s8, 1
    %p77 = por %p75, %p76
    %p78 = scmp.ne.s32.totalorder %s70, %s73
    %p79 = scmp.eq.s32.totalorder %s8, 0
    %p80 = por %p78, %p79
    %p81 = scmp.ne.s32.totalorder %s70, %s73
    %p82 = scmp.eq.s32.totalorder %s13, 1
    %p83 = por %p81, %p82
    %p84 = scmp.ne.s32.totalorder %s73, %s74
    %p85 = scmp.eq.s32.totalorder %s13, 0
    %p86 = por %p84, %p85
    %p87 = scmp.ne.s32.totalorder %s73, %s74
    %p88 = scmp.eq.s32.totalorder %s14, 1
    %p89 = por %p87, %p88
    %p91 = scmp.ne.s32.totalorder %s74, %s90
    %p92 = scmp.eq.s32.totalorder %s14, 0
    %p93 = por %p91, %p92
    %p94 = scmp.le.s32.totalorder 1, %s8
    %p95 = scmp.lt.s32.totalorder %s8, 3
    %p96 = pnand %p94, %p95
    %p97 = pneg %p96
    // Predicated region
    $region9: #{_lambda_.24} parent=5 // pred_check
      _
    $region10: #{_lambda_.24} parent=5 // pred_check_branch
      %99 = sbr.rel (%p96) target = $region12
    $region11: #{_lambda_.24} parent=5 // pred_region
      %s100 = ssub.s32 %s8, 1
    $region12: #{_lambda_.24} parent=5 // pred_fallthru
      _
    %p101 = scmp.lt.s32.totalorder %s8, 2
    // Predicated region
    $region13: #{_lambda_.24} parent=5 // pred_check
      %p102 = pneg %p101
    $region14: #{_lambda_.24} parent=5 // pred_check_branch
      %104 = sbr.rel (%p102) target = $region16
    $region15: #{_lambda_.24} parent=5 // pred_region
      // Predicated region
      $region17: #{_lambda_.24} parent=15 // pred_check
        %p105 = pneg %p28
      $region18: #{_lambda_.24} parent=15 // pred_check_branch
        %107 = sbr.rel (%p105) target = $region20
      $region19: #{_lambda_.24} parent=15 // pred_region
        %p108 = scmp.lt.s32.totalorder %s8, 1
        %s109 = scalar_select %p108, %s8, 1
        %s110 = smul.addr %s109, 4
        %s111 = scalar_lea.vmem %s0, %s110
      $region20: #{_lambda_.24} parent=15 // pred_fallthru
        _
      // Predicated region
      $region21: #{_lambda_.24} parent=15 // pred_check
        %p112 = pneg %p54
      $region22: #{_lambda_.24} parent=15 // pred_check_branch
        %114 = sbr.rel (%p112) target = $region24
      $region23: #{_lambda_.24} parent=15 // pred_region
        %p115 = scmp.lt.s32.totalorder %s8, 1
        %s116 = scalar_select %p115, %s8, 1
        %s117 = scalar_lea.vmem %s1, %s116
      $region24: #{_lambda_.24} parent=15 // pred_fallthru
        _
    $region16: #{_lambda_.24} parent=5 // pred_fallthru
      _
    %p118 = scmp.le.s32.totalorder 1, %s8
    %p119 = scmp.lt.s32.totalorder %s8, 3
    %p120 = pnand %p118, %p119
    %p121 = pneg %p120
    // Predicated region
    $region25: #{_lambda_.24} parent=5 // pred_check
      _
    $region26: #{_lambda_.24} parent=5 // pred_check_branch
      %123 = sbr.rel (%p120) target = $region28
    $region27: #{_lambda_.24} parent=5 // pred_region
      %s124 = ssub.s32 %s8, 1
      %p125 = scmp.lt.s32.totalorder %s13, 1
      %s126 = scalar_select %p125, %s13, 1
      %s127 = smul.addr %s126, 4
      %s128 = scalar_lea.vmem %s0, %s127
      %p129 = pneg %p34
      %p130 = pneg %p31
      %p131 = scmp.lt.s32.totalorder %s13, 1
      %s132 = scalar_select %p131, %s13, 1
      %s133 = scalar_lea.vmem %s1, %s132
      %p134 = pneg %p60
      %p135 = pneg %p57
      %p136 = pneg %p86
      %p137 = pneg %p83
      %p138 = scmp.lt.s32.totalorder %s13, 1
      %s139 = scalar_select %p138, %s13, 1
      %s140 = smul.addr %s139, 4
      %s141 = scalar_lea.vmem %s2, %s140
      %p142 = scmp.lt.s32.totalorder %s13, 1
      %s143 = scalar_select %p142, %s13, 1
      %s144 = smul.addr %s143, 4
      %s145 = scalar_lea.vmem %s0, %s144
      %p146 = scmp.lt.s32.totalorder %s13, 1
      %s147 = scalar_select %p146, %s13, 1
      %s148 = scalar_lea.vmem %s1, %s147
      %p149 = scmp.lt.s32.totalorder %s13, 1
      %s150 = scalar_select %p149, %s13, 1
      %s151 = smul.addr %s150, 4
      %s152 = scalar_lea.vmem %s2, %s151
      %v154 = vld [vmem:[%s145] sm:$0xf]
      %v155 = vld [vmem:[%s148] sm:$0x1]
      %v157 = vunpack.c.l.b16 %v154
      %v158 = vpack.c.b16 %v157, %v157
      %159 = vrot.lane.b32.xlu0 %v158, 96
      %v160 = vpop.permute.xlu0 %159
      %vm161 = vcmask 64512
      %v163 = vsel %vm161, %v154, 0
      %v166 = vsel %vm161, %v160, 0
      %168 = vmatpush.bf16.xpose.msra.mxu0 0
      %169 = vmatpush.bf16.xpose.msra.mxu0 0
      %170 = vmatpush.bf16.xpose.msra.mxu0 0
      %171 = vmatpush.bf16.xpose.msra.mxu0 0
      %172 = vmatpush.bf16.xpose.msra.mxu0 0
      %173 = vmatpush.bf16.xpose.msra.mxu0 0
      %174 = vmatpush.bf16.xpose.msra.mxu0 0
      %175 = vmatpush.bf16.xpose.msra.mxu0 %v166
      %176 = vmatmul.bf16.gmra.mxu0 %v163
      %v177 = vpop.f32.mrf.mxu0
      %v178 = vadd.f32 0.0, %v177
      %v179 = vpop.f32.mrf.mxu0
      %180 = vdwg.mxu0
      %v181 = vmul.f32 %v178, 0.35355338
      %v183 = vperm.slane %v155, 0
      %v185 = vadd.f32 %v181, %v183
      %v186 = vsel %vm161, %v185, -inf
      %187 = vmax.xlane.f32.xlu0 %v186
      %v188 = vpop.xlane.xlu0 %187
      %v189 = vsub.f32 %v185, %v188
      %v190 = vmul.f32 %v189, 1.442695
      %v191 = vpow.pop %v190
      %v192 = vsel %vm161, %v191, 0.0
      %193 = vadd.xlane.f32.xlu0 %v192
      %v194 = vpop.xlane.xlu0 %193
      %v195 = vrcp.pop %v194
      %v196 = vmul.f32 %v194, %v195
      %v197 = vsub.f32 1.0, %v196
      %v198 = vmul.f32 %v195, %v197
      %v199 = vadd.f32 %v195, %v198
      %vm200 = vweird.f32 %v194
      %vm201 = vweird.f32 %v195
      %vm202 = vmor %vm200, %vm201
      %v203 = vsel %vm202, %v195, %v199
      %v204 = vand.u32 2147483647, %v194
      %vm205 = vcmp.eq.f32.partialorder %v204, 8.507059e+37
      %v206 = vand.u32 %v194, 2147483648
      %v207 = vor.u32 1.1754944e-38, %v206
      %v208 = vsel %vm205, %v207, %v203
      %v209 = vmul.f32 %v191, %v208
      %v210 = vpack.c.bf16 %v209, %v209
      %211 = vrot.lane.b32.xlu0 %v158, 64
      %v212 = vpop.permute.xlu0 %211
      %v214 = vsel %vm161, %v210, 0
      %vm216 = vcmask 1043456
      %v218 = vsel %vm216, %v212, 0
      %220 = vmatpush.bf16.msra.mxu0 0
      %221 = vmatpush.bf16.msra.mxu0 0
      %222 = vmatpush.bf16.msra.mxu0 0
      %223 = vmatpush.bf16.msra.mxu0 0
      %224 = vmatpush.bf16.msra.mxu0 0
      %225 = vmatpush.bf16.msra.mxu0 0
      %226 = vmatpush.bf16.msra.mxu0 0
      %227 = vmatpush.bf16.msra.mxu0 %v218
      %228 = vmatmul.bf16.gmra.mxu0 %v214
      %v229 = vpop.f32.mrf.mxu0
      %v230 = vadd.f32 0.0, %v229
      %v231 = vpop.f32.mrf.mxu0
      %232 = vdwg.mxu0
      %233 = vrot.lane.b32.xlu0 %v158, 120
      %v234 = vpop.permute.xlu0 %233
      %235 = vrot.lane.b32.xlu0 %v158, 88
      %v236 = vpop.permute.xlu0 %235
      %v238 = vsel %vm161, %v234, 0
      %v241 = vsel %vm161, %v236, 0
      %243 = vmatpush.bf16.xpose.msra.mxu0 0
      %244 = vmatpush.bf16.xpose.msra.mxu0 0
      %245 = vmatpush.bf16.xpose.msra.mxu0 0
      %246 = vmatpush.bf16.xpose.msra.mxu0 0
      %247 = vmatpush.bf16.xpose.msra.mxu0 0
      %248 = vmatpush.bf16.xpose.msra.mxu0 0
      %249 = vmatpush.bf16.xpose.msra.mxu0 0
      %250 = vmatpush.bf16.xpose.msra.mxu0 %v241
      %251 = vmatmul.bf16.gmra.mxu0 %v238
      %v252 = vpop.f32.mrf.mxu0
      %v253 = vadd.f32 0.0, %v252
      %v254 = vpop.f32.mrf.mxu0
      %255 = vdwg.mxu0
      %v256 = vmul.f32 %v253, 0.35355338
      %v257 = vadd.f32 %v256, %v183
      %v258 = vsel %vm161, %v257, -inf
      %259 = vmax.xlane.f32.xlu0 %v258
      %v260 = vpop.xlane.xlu0 %259
      %v261 = vsub.f32 %v257, %v260
      %v262 = vmul.f32 %v261, 1.442695
      %v263 = vpow.pop %v262
      %v264 = vsel %vm161, %v263, 0.0
      %265 = vadd.xlane.f32.xlu0 %v264
      %v266 = vpop.xlane.xlu0 %265
      %v267 = vrcp.pop %v266
      %v268 = vmul.f32 %v266, %v267
      %v269 = vsub.f32 1.0, %v268
      %v270 = vmul.f32 %v267, %v269
      %v271 = vadd.f32 %v267, %v270
      %vm272 = vweird.f32 %v266
      %vm273 = vweird.f32 %v267
      %vm274 = vmor %vm272, %vm273
      %v275 = vsel %vm274, %v267, %v271
      %v276 = vand.u32 2147483647, %v266
      %vm277 = vcmp.eq.f32.partialorder %v276, 8.507059e+37
      %v278 = vand.u32 %v266, 2147483648
      %v279 = vor.u32 1.1754944e-38, %v278
      %v280 = vsel %vm277, %v279, %v275
      %v281 = vmul.f32 %v263, %v280
      %v282 = vpack.c.bf16 %v281, %v281
      %283 = vrot.lane.b32.xlu0 %v158, 56
      %v284 = vpop.permute.xlu0 %283
      %v286 = vsel %vm161, %v282, 0
      %v289 = vsel %vm216, %v284, 0
      %291 = vmatpush.bf16.msra.mxu0 0
      %292 = vmatpush.bf16.msra.mxu0 0
      %293 = vmatpush.bf16.msra.mxu0 0
      %294 = vmatpush.bf16.msra.mxu0 0
      %295 = vmatpush.bf16.msra.mxu0 0
      %296 = vmatpush.bf16.msra.mxu0 0
      %297 = vmatpush.bf16.msra.mxu0 0
      %298 = vmatpush.bf16.msra.mxu0 %v289
      %299 = vmatmul.bf16.gmra.mxu0 %v286
      %v300 = vpop.f32.mrf.mxu0
      %v301 = vadd.f32 0.0, %v300
      %v302 = vpop.f32.mrf.mxu0
      %303 = vdwg.mxu0
      %304 = vrot.lane.b32.xlu0 %v158, 112
      %v305 = vpop.permute.xlu0 %304
      %306 = vrot.lane.b32.xlu0 %v158, 80
      %v307 = vpop.permute.xlu0 %306
      %v309 = vsel %vm161, %v305, 0
      %v312 = vsel %vm161, %v307, 0
      %314 = vmatpush.bf16.xpose.msra.mxu0 0
      %315 = vmatpush.bf16.xpose.msra.mxu0 0
      %316 = vmatpush.bf16.xpose.msra.mxu0 0
      %317 = vmatpush.bf16.xpose.msra.mxu0 0
      %318 = vmatpush.bf16.xpose.msra.mxu0 0
      %319 = vmatpush.bf16.xpose.msra.mxu0 0
      %320 = vmatpush.bf16.xpose.msra.mxu0 0
      %321 = vmatpush.bf16.xpose.msra.mxu0 %v312
      %322 = vmatmul.bf16.gmra.mxu0 %v309
      %v323 = vpop.f32.mrf.mxu0
      %v324 = vadd.f32 0.0, %v323
      %v325 = vpop.f32.mrf.mxu0
      %326 = vdwg.mxu0
      %v327 = vmul.f32 %v324, 0.35355338
      %v328 = vadd.f32 %v327, %v183
      %v329 = vsel %vm161, %v328, -inf
      %330 = vmax.xlane.f32.xlu0 %v329
      %v331 = vpop.xlane.xlu0 %330
      %v332 = vsub.f32 %v328, %v331
      %v333 = vmul.f32 %v332, 1.442695
      %v334 = vpow.pop %v333
      %v335 = vsel %vm161, %v334, 0.0
      %336 = vadd.xlane.f32.xlu0 %v335
      %v337 = vpop.xlane.xlu0 %336
      %v338 = vrcp.pop %v337
      %v339 = vmul.f32 %v337, %v338
      %v340 = vsub.f32 1.0, %v339
      %v341 = vmul.f32 %v338, %v340
      %v342 = vadd.f32 %v338, %v341
      %vm343 = vweird.f32 %v337
      %vm344 = vweird.f32 %v338
      %vm345 = vmor %vm343, %vm344
      %v346 = vsel %vm345, %v338, %v342
      %v347 = vand.u32 2147483647, %v337
      %vm348 = vcmp.eq.f32.partialorder %v347, 8.507059e+37
      %v349 = vand.u32 %v337, 2147483648
      %v350 = vor.u32 1.1754944e-38, %v349
      %v351 = vsel %vm348, %v350, %v346
      %v352 = vmul.f32 %v334, %v351
      %v353 = vpack.c.bf16 %v352, %v352
      %354 = vrot.lane.b32.xlu0 %v158, 48
      %v355 = vpop.permute.xlu0 %354
      %v357 = vsel %vm161, %v353, 0
      %v360 = vsel %vm216, %v355, 0
      %362 = vmatpush.bf16.msra.mxu0 0
      %363 = vmatpush.bf16.msra.mxu0 0
      %364 = vmatpush.bf16.msra.mxu0 0
      %365 = vmatpush.bf16.msra.mxu0 0
      %366 = vmatpush.bf16.msra.mxu0 0
      %367 = vmatpush.bf16.msra.mxu0 0
      %368 = vmatpush.bf16.msra.mxu0 0
      %369 = vmatpush.bf16.msra.mxu0 %v360
      %370 = vmatmul.bf16.gmra.mxu0 %v357
      %v371 = vpop.f32.mrf.mxu0
      %v372 = vadd.f32 0.0, %v371
      %v373 = vpop.f32.mrf.mxu0
      %374 = vdwg.mxu0
      %375 = vrot.lane.b32.xlu0 %v158, 104
      %v376 = vpop.permute.xlu0 %375
      %377 = vrot.lane.b32.xlu0 %v158, 72
      %v378 = vpop.permute.xlu0 %377
      %v380 = vsel %vm161, %v376, 0
      %v383 = vsel %vm161, %v378, 0
      %385 = vmatpush.bf16.xpose.msra.mxu0 0
      %386 = vmatpush.bf16.xpose.msra.mxu0 0
      %387 = vmatpush.bf16.xpose.msra.mxu0 0
      %388 = vmatpush.bf16.xpose.msra.mxu0 0
      %389 = vmatpush.bf16.xpose.msra.mxu0 0
      %390 = vmatpush.bf16.xpose.msra.mxu0 0
      %391 = vmatpush.bf16.xpose.msra.mxu0 0
      %392 = vmatpush.bf16.xpose.msra.mxu0 %v383
      %393 = vmatmul.bf16.gmra.mxu0 %v380
      %v394 = vpop.f32.mrf.mxu0
      %v395 = vadd.f32 0.0, %v394
      %v396 = vpop.f32.mrf.mxu0
      %397 = vdwg.mxu0
      %v398 = vmul.f32 %v395, 0.35355338
      %v399 = vadd.f32 %v398, %v183
      %v400 = vsel %vm161, %v399, -inf
      %401 = vmax.xlane.f32.xlu0 %v400
      %v402 = vpop.xlane.xlu0 %401
      %v403 = vsub.f32 %v399, %v402
      %v404 = vmul.f32 %v403, 1.442695
      %v405 = vpow.pop %v404
      %v406 = vsel %vm161, %v405, 0.0
      %407 = vadd.xlane.f32.xlu0 %v406
      %v408 = vpop.xlane.xlu0 %407
      %v409 = vrcp.pop %v408
      %v410 = vmul.f32 %v408, %v409
      %v411 = vsub.f32 1.0, %v410
      %v412 = vmul.f32 %v409, %v411
      %v413 = vadd.f32 %v409, %v412
      %vm414 = vweird.f32 %v408
      %vm415 = vweird.f32 %v409
      %vm416 = vmor %vm414, %vm415
      %v417 = vsel %vm416, %v409, %v413
      %v418 = vand.u32 2147483647, %v408
      %vm419 = vcmp.eq.f32.partialorder %v418, 8.507059e+37
      %v420 = vand.u32 %v408, 2147483648
      %v421 = vor.u32 1.1754944e-38, %v420
      %v422 = vsel %vm419, %v421, %v417
      %v423 = vmul.f32 %v405, %v422
      %v424 = vpack.c.bf16 %v423, %v423
      %425 = vrot.lane.b32.xlu0 %v158, 40
      %v426 = vpop.permute.xlu0 %425
      %v428 = vsel %vm161, %v424, 0
      %v431 = vsel %vm216, %v426, 0
      %433 = vmatpush.bf16.msra.mxu0 0
      %434 = vmatpush.bf16.msra.mxu0 0
      %435 = vmatpush.bf16.msra.mxu0 0
      %436 = vmatpush.bf16.msra.mxu0 0
      %437 = vmatpush.bf16.msra.mxu0 0
      %438 = vmatpush.bf16.msra.mxu0 0
      %439 = vmatpush.bf16.msra.mxu0 0
      %440 = vmatpush.bf16.msra.mxu0 %v431
      %441 = vmatmul.bf16.gmra.mxu0 %v428
      %v442 = vpop.f32.mrf.mxu0
      %v443 = vadd.f32 0.0, %v442
      %v444 = vpop.f32.mrf.mxu0
      %445 = vdwg.mxu0
      %447 = vrot.lane.b32.xlu0 %v301, 8
      %v448 = vpop.permute.xlu0 %447
      %451 = vrot.lane.b32.xlu0 %v372, 16
      %v452 = vpop.permute.xlu0 %451
      %455 = vrot.lane.b32.xlu0 %v443, 24
      %v456 = vpop.permute.xlu0 %455
      %v458 = vsel %vm161, %v230, %v448
      %vm459 = vcmask 130048
      %v460 = vsel %vm459, %v458, %v452
      %vm461 = vcmask 195584
      %v462 = vsel %vm461, %v460, %v456
      %v463 = vpack.c.bf16 %v462, %v462
      %vm464 = vcmask 257024
      %465 = vst.msk [vmem:[%s152] sm:$0xf] %vm464, %v463
      %p466 = scmp.lt.s32.totalorder %s13, 1
      %s467 = scalar_select %p466, %s13, 1
      %s468 = smul.addr %s467, 4
      %s469 = scalar_lea.vmem %s2, %s468
      // Predicated region
      $region29: #{_lambda_.24} parent=27 // pred_check
        %p470 = pneg %p83
      $region30: #{_lambda_.24} parent=27 // pred_check_branch
        %472 = sbr.rel (%p470) target = $region32
      $region31: #{_lambda_.24} parent=27 // pred_region
        _
      $region32: #{_lambda_.24} parent=27 // pred_fallthru
        _
    $region28: #{_lambda_.24} parent=5 // pred_fallthru
      _
    %p473 = scmp.le.s32.totalorder 2, %s8
    // Predicated region
    $region33: #{_lambda_.24} parent=5 // pred_check
      %p474 = pneg %p473
    $region34: #{_lambda_.24} parent=5 // pred_check_branch
      %476 = sbr.rel (%p474) target = $region36
    $region35: #{_lambda_.24} parent=5 // pred_region
      %s477 = ssub.s32 %s8, 2
      // Predicated region
      $region37: #{_lambda_.24} parent=35 // pred_check
        %p478 = pneg %p89
      $region38: #{_lambda_.24} parent=35 // pred_check_branch
        %480 = sbr.rel (%p478) target = $region40
      $region39: #{_lambda_.24} parent=35 // pred_region
        %p481 = scmp.lt.s32.totalorder %s14, 1
        %s482 = scalar_select %p481, %s14, 1
        %s483 = smul.addr %s482, 4
        %s484 = scalar_lea.vmem %s2, %s483
      $region40: #{_lambda_.24} parent=35 // pred_fallthru
        _
    $region36: #{_lambda_.24} parent=5 // pred_fallthru
      _
  $region6: #{_lambda_.24} parent=0 // loop_footer
    %s12 = sadd.s32 1, %s8
  $region7: #{_lambda_.24} parent=0 // loop_footer_branch
    %7 = sbr.rel target = $region3
  $region8: #{_lambda_.24} parent=0 // loop_exit
    _

// kernel: _lambda_.26
$region0: #{_lambda_.26}
  #allocation0 [shape = 'u32[]', space=smem, size = 0x4, offset = 0x4, fixed_abs, tag = 'smem constant byte address 0x4 - core index']
  #allocation1 [shape = 'u32[72,128]{1,0:T(1,128)}', space=vmem, size = 0x9000, scoped, tag = 'internal scratch']
  %s0 = inlined_call_operand.vmem [shape: bf16[16,32], index: 0, kind: input, shape index: {}]
  %s1 = inlined_call_operand.vmem [shape: bf16[16,32], index: 1, kind: input, shape index: {}]
  %s2 = inlined_call_operand.vmem [shape: f32[1,32], index: 2, kind: input, shape index: {}]
  %s3 = inlined_call_operand.vmem [shape: f32[1,32], index: 3, kind: input, shape index: {}]
  %s4 = inlined_call_operand.vmem [shape: bf16[16,32], index: 4, kind: output, shape index: {}]
  %s5 = sld [smem:[#allocation0]]
  $region26: #{_lambda_.26} parent=0
    _
  %s7 = ssub.s32 1, %s5
  %s8 = scalar_select 0, %s7, %s5
  // Predicated region
  $region2: #{_lambda_.26} parent=0 // pred_check
    _
  $region3: #{_lambda_.26} parent=0 // pred_check_branch
    %10 = sbr.rel (0) target = $region5
  $region4: #{_lambda_.26} parent=0 // pred_region
    _
  $region5: #{_lambda_.26} parent=0 // pred_fallthru
    _
  // Predicated region
  $region6: #{_lambda_.26} parent=0 // pred_check
    _
  $region7: #{_lambda_.26} parent=0 // pred_check_branch
    %12 = sbr.rel (0) target = $region9
  $region8: #{_lambda_.26} parent=0 // pred_region
    _
  $region9: #{_lambda_.26} parent=0 // pred_fallthru
    _
  // Predicated region
  $region10: #{_lambda_.26} parent=0 // pred_check
    _
  $region11: #{_lambda_.26} parent=0 // pred_check_branch
    %14 = sbr.rel (0) target = $region13
  $region12: #{_lambda_.26} parent=0 // pred_region
    _
  $region13: #{_lambda_.26} parent=0 // pred_fallthru
    _
  // Predicated region
  $region14: #{_lambda_.26} parent=0 // pred_check
    _
  $region15: #{_lambda_.26} parent=0 // pred_check_branch
    %16 = sbr.rel (0) target = $region17
  $region16: #{_lambda_.26} parent=0 // pred_region
    _
  $region17: #{_lambda_.26} parent=0 // pred_fallthru
    _
  %v17 = vld [vmem:[%s0] sm:$0xf]
  %v18 = vld [vmem:[%s0 + $0x4] sm:$0xf]
  %v19 = vunpack.c.l.bf16 %v17
  %v20 = vunpack.c.l.bf16 %v18
  %v21 = vld [vmem:[%s1] sm:$0xf]
  %v22 = vld [vmem:[%s1 + $0x4] sm:$0xf]
  %v23 = vunpack.c.l.bf16 %v21
  %v24 = vunpack.c.l.bf16 %v22
  %v25 = vadd.f32 %v19, %v23
  %v26 = vadd.f32 %v20, %v24
  %vm27 = vcmask 261120
  %v28 = vsel %vm27, %v25, 0.0
  %29 = vadd.xlane.f32.xlu0 %v28
  %v30 = vpop.xlane.xlu0 %29
  %v31 = vsel %vm27, %v26, 0.0
  %32 = vadd.xlane.f32.xlu0 %v31
  %v33 = vpop.xlane.xlu0 %32
  %v34 = vrcp.pop 32.0
  %v35 = vmul.f32 32.0, %v34
  %v36 = vsub.f32 1.0, %v35
  %v37 = vmul.f32 %v34, %v36
  %v38 = vadd.f32 %v34, %v37
  %vm39 = vweird.f32 %v34
  %v40 = vsel %vm39, %v34, %v38
  %v41 = vmul.f32 %v30, %v40
  %v42 = vmul.f32 %v33, %v40
  %v43 = vsub.f32 %v25, %v41
  %v44 = vsub.f32 %v26, %v42
  %v45 = vmul.f32 %v43, %v43
  %v46 = vmul.f32 %v44, %v44
  %v47 = vsel %vm27, %v45, 0.0
  %48 = vadd.xlane.f32.xlu0 %v47
  %v49 = vpop.xlane.xlu0 %48
  %v50 = vsel %vm27, %v46, 0.0
  %51 = vadd.xlane.f32.xlu0 %v50
  %v52 = vpop.xlane.xlu0 %51
  %v53 = vmul.f32 %v49, %v40
  %v54 = vmul.f32 %v52, %v40
  %v55 = vadd.f32 %v53, 1e-12
  %v56 = vadd.f32 %v54, 1e-12
  %v57 = vrsqrt.pop %v55
  %v58 = vmul.f32 %v57, %v55
  %v59 = vmul.f32 %v58, %v57
  %v60 = vmul.f32 0.5, %v59
  %v61 = vsub.f32 1.5, %v60
  %v62 = vmul.f32 %v57, %v61
  %v63 = vmul.f32 %v55, %v62
  %vm64 = vcmp.eq.f32.partialorder %v55, inf
  %v65 = vsel %vm64, %v55, %v63
  %vm66 = vcmp.eq.f32.partialorder %v55, 0.0
  %v67 = vand.u32 %v55, 2147483648
  %v68 = vsel %vm66, %v67, %v65
  %v69 = vrsqrt.pop %v56
  %v70 = vmul.f32 %v69, %v56
  %v71 = vmul.f32 %v70, %v69
  %v72 = vmul.f32 0.5, %v71
  %v73 = vsub.f32 1.5, %v72
  %v74 = vmul.f32 %v69, %v73
  %v75 = vmul.f32 %v56, %v74
  %vm76 = vcmp.eq.f32.partialorder %v56, inf
  %v77 = vsel %vm76, %v56, %v75
  %vm78 = vcmp.eq.f32.partialorder %v56, 0.0
  %v79 = vand.u32 %v56, 2147483648
  %v80 = vsel %vm78, %v79, %v77
  %v81 = vrcp.pop %v68
  %v82 = vmul.f32 %v68, %v81
  %v83 = vsub.f32 1.0, %v82
  %v84 = vmul.f32 %v81, %v83
  %v85 = vadd.f32 %v81, %v84
  %vm86 = vweird.f32 %v68
  %vm87 = vweird.f32 %v81
  %vm88 = vmor %vm86, %vm87
  %v89 = vsel %vm88, %v81, %v85
  %v90 = vand.u32 2147483647, %v68
  %vm91 = vcmp.eq.f32.partialorder %v90, 8.507059e+37
  %v92 = vand.u32 %v68, 2147483648
  %v93 = vor.u32 1.1754944e-38, %v92
  %v94 = vsel %vm91, %v93, %v89
  %v95 = vmul.f32 %v43, %v94
  %v96 = vrcp.pop %v80
  %v97 = vmul.f32 %v80, %v96
  %v98 = vsub.f32 1.0, %v97
  %v99 = vmul.f32 %v96, %v98
  %v100 = vadd.f32 %v96, %v99
  %vm101 = vweird.f32 %v80
  %vm102 = vweird.f32 %v96
  %vm103 = vmor %vm101, %vm102
  %v104 = vsel %vm103, %v96, %v100
  %v105 = vand.u32 2147483647, %v80
  %vm106 = vcmp.eq.f32.partialorder %v105, 8.507059e+37
  %v107 = vand.u32 %v80, 2147483648
  %v108 = vor.u32 1.1754944e-38, %v107
  %v109 = vsel %vm106, %v108, %v104
  %v110 = vmul.f32 %v44, %v109
  %v111 = vld [vmem:[%s2] sm:$0x1]
  %v113 = vperm.slane %v111, 0
  %v115 = vmul.f32 %v95, %v113
  %v116 = vmul.f32 %v110, %v113
  %v117 = vld [vmem:[%s3] sm:$0x1]
  %v119 = vperm.slane %v117, 0
  %v121 = vadd.f32 %v115, %v119
  %v122 = vadd.f32 %v116, %v119
  %v123 = vpack.c.bf16 %v121, %v121
  %v124 = vpack.c.bf16 %v122, %v122
  %vm125 = vcmask 257024
  %126 = vst.msk [vmem:[%s4] sm:$0xf] %vm125, %v123
  %127 = vst.msk [vmem:[%s4 + $0x4] sm:$0xf] %vm125, %v124
  // Predicated region
  $region18: #{_lambda_.26} parent=0 // pred_check
    _
  $region19: #{_lambda_.26} parent=0 // pred_check_branch
    %129 = sbr.rel (0) target = $region21
  $region20: #{_lambda_.26} parent=0 // pred_region
    _
  $region21: #{_lambda_.26} parent=0 // pred_fallthru
    _
  // Predicated region
  $region22: #{_lambda_.26} parent=0 // pred_check
    _
  $region23: #{_lambda_.26} parent=0 // pred_check_branch
    %131 = sbr.rel (0) target = $region25
  $region24: #{_lambda_.26} parent=0 // pred_region
    _
  $region25: #{_lambda_.26} parent=0 // pred_fallthru
    _

// kernel: _lambda_.27
$region0: #{_lambda_.27}
  #allocation0 [shape = 'u32[]', space=smem, size = 0x4, offset = 0x4, fixed_abs, tag = 'smem constant byte address 0x4 - core index']
  #allocation1 [shape = 'u32[72,128]{1,0:T(1,128)}', space=vmem, size = 0x9000, scoped, tag = 'internal scratch']
  %s0 = inlined_call_operand.vmem [shape: bf16[16,32], index: 0, kind: input, shape index: {}]
  %s1 = inlined_call_operand.vmem [shape: bf16[32,64], index: 1, kind: input, shape index: {}]
  %s2 = inlined_call_operand.vmem [shape: f32[1,64], index: 2, kind: input, shape index: {}]
  %s3 = inlined_call_operand.vmem [shape: bf16[16,64], index: 3, kind: output, shape index: {}]
  %s4 = sld [smem:[#allocation0]]
  $region22: #{_lambda_.27} parent=0
    _
  %s6 = ssub.s32 1, %s4
  %s7 = scalar_select 0, %s6, %s4
  // Predicated region
  $region2: #{_lambda_.27} parent=0 // pred_check
    _
  $region3: #{_lambda_.27} parent=0 // pred_check_branch
    %9 = sbr.rel (0) target = $region5
  $region4: #{_lambda_.27} parent=0 // pred_region
    _
  $region5: #{_lambda_.27} parent=0 // pred_fallthru
    _
  // Predicated region
  $region6: #{_lambda_.27} parent=0 // pred_check
    _
  $region7: #{_lambda_.27} parent=0 // pred_check_branch
    %11 = sbr.rel (0) target = $region9
  $region8: #{_lambda_.27} parent=0 // pred_region
    _
  $region9: #{_lambda_.27} parent=0 // pred_fallthru
    _
  // Predicated region
  $region10: #{_lambda_.27} parent=0 // pred_check
    _
  $region11: #{_lambda_.27} parent=0 // pred_check_branch
    %13 = sbr.rel (0) target = $region13
  $region12: #{_lambda_.27} parent=0 // pred_region
    _
  $region13: #{_lambda_.27} parent=0 // pred_fallthru
    _
  %v15 = vld [vmem:[%s0] sm:$0xf]
  %v16 = vld [vmem:[%s0 + $0x4] sm:$0xf]
  %v17 = vld [vmem:[%s1] sm:$0xf]
  %v18 = vld [vmem:[%s1 + $0x4] sm:$0xf]
  %v19 = vld [vmem:[%s1 + $0x8] sm:$0xf]
  %v20 = vld [vmem:[%s1 + $0xc] sm:$0xf]
  %v21 = vld [vmem:[%s2] sm:$0x1]
  %v23 = vperm.slane %v21, 0
  %v27 = vunpack.c.l.b16 %v15
  %v28 = vunpack.c.l.b16 %v16
  %v29 = vpack.c.b16 %v28, %v27
  %v34 = vunpack.c.l.b16 %v17
  %v35 = vunpack.c.l.b16 %v18
  %v36 = vunpack.c.l.b16 %v19
  %v37 = vunpack.c.l.b16 %v20
  %v38 = vpack.c.b16 %v35, %v34
  %v39 = vpack.c.b16 %v37, %v36
  %vm42 = vcmask 261120
  %v44 = vsel %vm42, %v29, 0
  %46 = vmatpush.bf16.msra.mxu0 0
  %47 = vmatpush.bf16.msra.mxu0 0
  %48 = vmatpush.bf16.msra.mxu0 0
  %49 = vmatpush.bf16.msra.mxu0 0
  %50 = vmatpush.bf16.msra.mxu0 0
  %51 = vmatpush.bf16.msra.mxu0 0
  %52 = vmatpush.bf16.msra.mxu0 %v39
  %53 = vmatpush.bf16.msra.mxu0 %v38
  %54 = vmatmul.bf16.gmra.mxu0 %v44
  %v55 = vpop.f32.mrf.mxu0
  %v56 = vadd.f32 %v23, %v55
  %v57 = vpop.f32.mrf.mxu0
  %v58 = vadd.f32 %v23, %v57
  %59 = vdwg.mxu0
  %v60 = vmul.f32 %v56, 0.5
  %v61 = vmul.f32 %v58, 0.5
  %v62 = vmul.f32 %v56, 0.044715
  %v63 = vmul.f32 %v58, 0.044715
  %v64 = vmul.f32 %v62, %v56
  %v65 = vmul.f32 %v63, %v58
  %v66 = vmul.f32 %v64, %v56
  %v67 = vmul.f32 %v65, %v58
  %v68 = vadd.f32 %v56, %v66
  %v69 = vadd.f32 %v58, %v67
  %v70 = vmul.f32 %v68, 0.7978846
  %v71 = vmul.f32 %v69, 0.7978846
  %v72 = vtanh.pop %v70
  %v73 = vtanh.pop %v71
  %v74 = vadd.f32 %v72, 1.0
  %v75 = vadd.f32 %v73, 1.0
  %v76 = vmul.f32 %v60, %v74
  %v77 = vmul.f32 %v61, %v75
  %v78 = vpack.c.bf16 %v76, %v76
  %v79 = vpack.c.bf16 %v77, %v77
  %vm80 = vcmask 519168
  %81 = vst.msk [vmem:[%s3] sm:$0xf] %vm80, %v78
  %82 = vst.msk [vmem:[%s3 + $0x4] sm:$0xf] %vm80, %v79
  // Predicated region
  $region14: #{_lambda_.27} parent=0 // pred_check
    _
  $region15: #{_lambda_.27} parent=0 // pred_check_branch
    %84 = sbr.rel (0) target = $region17
  $region16: #{_lambda_.27} parent=0 // pred_region
    _
  $region17: #{_lambda_.27} parent=0 // pred_fallthru
    _
  // Predicated region
  $region18: #{_lambda_.27} parent=0 // pred_check
    _
  $region19: #{_lambda_.27} parent=0 // pred_check_branch
    %86 = sbr.rel (0) target = $region21
  $region20: #{_lambda_.27} parent=0 // pred_region
    _
  $region21: #{_lambda_.27} parent=0 // pred_fallthru
    _

// kernel: _lambda_.28
$region0: #{_lambda_.28}
  #allocation0 [shape = 'u32[]', space=smem, size = 0x4, offset = 0x4, fixed_abs, tag = 'smem constant byte address 0x4 - core index']
  #allocation1 [shape = 'u32[72,128]{1,0:T(1,128)}', space=vmem, size = 0x9000, scoped, tag = 'internal scratch']
  %s0 = inlined_call_operand.vmem [shape: bf16[16,64], index: 0, kind: input, shape index: {}]
  %s1 = inlined_call_operand.vmem [shape: bf16[64,32], index: 1, kind: input, shape index: {}]
  %s2 = inlined_call_operand.vmem [shape: f32[1,32], index: 2, kind: input, shape index: {}]
  %s3 = inlined_call_operand.vmem [shape: bf16[16,32], index: 3, kind: output, shape index: {}]
  %s4 = sld [smem:[#allocation0]]
  $region22: #{_lambda_.28} parent=0
    _
  %s6 = ssub.s32 1, %s4
  %s7 = scalar_select 0, %s6, %s4
  // Predicated region
  $region2: #{_lambda_.28} parent=0 // pred_check
    _
  $region3: #{_lambda_.28} parent=0 // pred_check_branch
    %9 = sbr.rel (0) target = $region5
  $region4: #{_lambda_.28} parent=0 // pred_region
    _
  $region5: #{_lambda_.28} parent=0 // pred_fallthru
    _
  // Predicated region
  $region6: #{_lambda_.28} parent=0 // pred_check
    _
  $region7: #{_lambda_.28} parent=0 // pred_check_branch
    %11 = sbr.rel (0) target = $region9
  $region8: #{_lambda_.28} parent=0 // pred_region
    _
  $region9: #{_lambda_.28} parent=0 // pred_fallthru
    _
  // Predicated region
  $region10: #{_lambda_.28} parent=0 // pred_check
    _
  $region11: #{_lambda_.28} parent=0 // pred_check_branch
    %13 = sbr.rel (0) target = $region13
  $region12: #{_lambda_.28} parent=0 // pred_region
    _
  $region13: #{_lambda_.28} parent=0 // pred_fallthru
    _
  %v15 = vld [vmem:[%s0] sm:$0xf]
  %v16 = vld [vmem:[%s0 + $0x4] sm:$0xf]
  %v17 = vld [vmem:[%s1] sm:$0xf]
  %v18 = vld [vmem:[%s1 + $0x4] sm:$0xf]
  %v19 = vld [vmem:[%s1 + $0x8] sm:$0xf]
  %v20 = vld [vmem:[%s1 + $0xc] sm:$0xf]
  %v21 = vld [vmem:[%s1 + $0x10] sm:$0xf]
  %v22 = vld [vmem:[%s1 + $0x14] sm:$0xf]
  %v23 = vld [vmem:[%s1 + $0x18] sm:$0xf]
  %v24 = vld [vmem:[%s1 + $0x1c] sm:$0xf]
  %v25 = vld [vmem:[%s2] sm:$0x1]
  %v27 = vperm.slane %v25, 0
  %v31 = vunpack.c.l.b16 %v15
  %v32 = vunpack.c.l.b16 %v16
  %v33 = vpack.c.b16 %v32, %v31
  %v42 = vunpack.c.l.b16 %v17
  %v43 = vunpack.c.l.b16 %v18
  %v44 = vunpack.c.l.b16 %v19
  %v45 = vunpack.c.l.b16 %v20
  %v46 = vunpack.c.l.b16 %v21
  %v47 = vunpack.c.l.b16 %v22
  %v48 = vunpack.c.l.b16 %v23
  %v49 = vunpack.c.l.b16 %v24
  %v50 = vpack.c.b16 %v43, %v42
  %v51 = vpack.c.b16 %v45, %v44
  %v52 = vpack.c.b16 %v47, %v46
  %v53 = vpack.c.b16 %v49, %v48
  %vm58 = vcmask 523264
  %v60 = vsel %vm58, %v33, 0
  %62 = vmatpush.bf16.msra.mxu0 0
  %63 = vmatpush.bf16.msra.mxu0 0
  %64 = vmatpush.bf16.msra.mxu0 0
  %65 = vmatpush.bf16.msra.mxu0 0
  %66 = vmatpush.bf16.msra.mxu0 %v53
  %67 = vmatpush.bf16.msra.mxu0 %v52
  %68 = vmatpush.bf16.msra.mxu0 %v51
  %69 = vmatpush.bf16.msra.mxu0 %v50
  %70 = vmatmul.bf16.gmra.mxu0 %v60
  %v71 = vpop.f32.mrf.mxu0
  %v72 = vadd.f32 %v27, %v71
  %v73 = vpop.f32.mrf.mxu0
  %v74 = vadd.f32 %v27, %v73
  %75 = vdwg.mxu0
  %v76 = vpack.c.bf16 %v72, %v72
  %v77 = vpack.c.bf16 %v74, %v74
  %vm78 = vcmask 257024
  %79 = vst.msk [vmem:[%s3] sm:$0xf] %vm78, %v76
  %80 = vst.msk [vmem:[%s3 + $0x4] sm:$0xf] %vm78, %v77
  // Predicated region
  $region14: #{_lambda_.28} parent=0 // pred_check
    _
  $region15: #{_lambda_.28} parent=0 // pred_check_branch
    %82 = sbr.rel (0) target = $region17
  $region16: #{_lambda_.28} parent=0 // pred_region
    _
  $region17: #{_lambda_.28} parent=0 // pred_fallthru
    _
  // Predicated region
  $region18: #{_lambda_.28} parent=0 // pred_check
    _
  $region19: #{_lambda_.28} parent=0 // pred_check_branch
    %84 = sbr.rel (0) target = $region21
  $region20: #{_lambda_.28} parent=0 // pred_region
    _
  $region21: #{_lambda_.28} parent=0 // pred_fallthru
    _

// kernel: _lambda_.30
$region0: #{_lambda_.30}
  #allocation0 [shape = 'u32[]', space=smem, size = 0x4, offset = 0x4, fixed_abs, tag = 'smem constant byte address 0x4 - core index']
  #allocation1 [shape = 'u32[72,128]{1,0:T(1,128)}', space=vmem, size = 0x9000, scoped, tag = 'internal scratch']
  %s0 = inlined_call_operand.vmem [shape: bf16[2,32], index: 0, kind: input, shape index: {}]
  %s1 = inlined_call_operand.vmem [shape: bf16[32,8], index: 1, kind: input, shape index: {}]
  %s2 = inlined_call_operand.vmem [shape: f32[1,8], index: 2, kind: input, shape index: {}]
  %s3 = inlined_call_operand.vmem [shape: f32[2,8], index: 3, kind: output, shape index: {}]
  %s4 = sld [smem:[#allocation0]]
  $region22: #{_lambda_.30} parent=0
    _
  %s6 = ssub.s32 1, %s4
  %s7 = scalar_select 0, %s6, %s4
  // Predicated region
  $region2: #{_lambda_.30} parent=0 // pred_check
    _
  $region3: #{_lambda_.30} parent=0 // pred_check_branch
    %9 = sbr.rel (0) target = $region5
  $region4: #{_lambda_.30} parent=0 // pred_region
    _
  $region5: #{_lambda_.30} parent=0 // pred_fallthru
    _
  // Predicated region
  $region6: #{_lambda_.30} parent=0 // pred_check
    _
  $region7: #{_lambda_.30} parent=0 // pred_check_branch
    %11 = sbr.rel (0) target = $region9
  $region8: #{_lambda_.30} parent=0 // pred_region
    _
  $region9: #{_lambda_.30} parent=0 // pred_fallthru
    _
  // Predicated region
  $region10: #{_lambda_.30} parent=0 // pred_check
    _
  $region11: #{_lambda_.30} parent=0 // pred_check_branch
    %13 = sbr.rel (0) target = $region13
  $region12: #{_lambda_.30} parent=0 // pred_region
    _
  $region13: #{_lambda_.30} parent=0 // pred_fallthru
    _
  %v15 = vld [vmem:[%s0] sm:$0x1]
  %v16 = vld [vmem:[%s1] sm:$0xf]
  %v17 = vld [vmem:[%s1 + $0x4] sm:$0xf]
  %v18 = vld [vmem:[%s1 + $0x8] sm:$0xf]
  %v19 = vld [vmem:[%s1 + $0xc] sm:$0xf]
  %v20 = vld [vmem:[%s2] sm:$0x1]
  %v22 = vperm.slane %v20, 0
  %v28 = vunpack.c.l.b16 %v16
  %v29 = vunpack.c.l.b16 %v17
  %v30 = vunpack.c.l.b16 %v18
  %v31 = vunpack.c.l.b16 %v19
  %v32 = vpack.c.b16 %v29, %v28
  %v33 = vpack.c.b16 %v31, %v30
  %vm36 = vcmask 261120
  %v38 = vsel %vm36, %v15, 0
  %40 = vmatpush.bf16.msra.mxu0 0
  %41 = vmatpush.bf16.msra.mxu0 0
  %42 = vmatpush.bf16.msra.mxu0 0
  %43 = vmatpush.bf16.msra.mxu0 0
  %44 = vmatpush.bf16.msra.mxu0 0
  %45 = vmatpush.bf16.msra.mxu0 0
  %46 = vmatpush.bf16.msra.mxu0 %v33
  %47 = vmatpush.bf16.msra.mxu0 %v32
  %48 = vmatmul.bf16.gmra.mxu0 %v38
  %v49 = vpop.f32.mrf.mxu0
  %v50 = vadd.f32 %v22, %v49
  %v51 = vpop.f32.mrf.mxu0
  %52 = vdwg.mxu0
  %v53 = vtanh.pop %v50
  %vm54 = vcmask 58368
  %55 = vst.msk [vmem:[%s3] sm:$0x3] %vm54, %v53
  // Predicated region
  $region14: #{_lambda_.30} parent=0 // pred_check
    _
  $region15: #{_lambda_.30} parent=0 // pred_check_branch
    %57 = sbr.rel (0) target = $region17
  $region16: #{_lambda_.30} parent=0 // pred_region
    _
  $region17: #{_lambda_.30} parent=0 // pred_fallthru
    _
  // Predicated region
  $region18: #{_lambda_.30} parent=0 // pred_check
    _
  $region19: #{_lambda_.30} parent=0 // pred_check_branch
    %59 = sbr.rel (0) target = $region21
  $region20: #{_lambda_.30} parent=0 // pred_region
    _
  $region21: #{_lambda_.30} parent=0 // pred_fallthru
    _

// kernel: _lambda_.31
$region0: #{_lambda_.31}
  #allocation0 [shape = 'u32[]', space=smem, size = 0x4, offset = 0x4, fixed_abs, tag = 'smem constant byte address 0x4 - core index']
  #allocation1 [shape = 'u32[72,128]{1,0:T(1,128)}', space=vmem, size = 0x9000, scoped, tag = 'internal scratch']
  %s0 = inlined_call_operand.vmem [shape: bf16[96,8], index: 0, kind: input, shape index: {}]
  %s1 = inlined_call_operand.vmem [shape: bf16[8,8], index: 1, kind: input, shape index: {}]
  %s2 = inlined_call_operand.vmem [shape: f32[1,8], index: 2, kind: input, shape index: {}]
  %s3 = inlined_call_operand.vmem [shape: f32[96,8], index: 3, kind: output, shape index: {}]
  %s4 = sld [smem:[#allocation0]]
  $region22: #{_lambda_.31} parent=0
    _
  %s6 = ssub.s32 1, %s4
  %s7 = scalar_select 0, %s6, %s4
  // Predicated region
  $region2: #{_lambda_.31} parent=0 // pred_check
    _
  $region3: #{_lambda_.31} parent=0 // pred_check_branch
    %9 = sbr.rel (0) target = $region5
  $region4: #{_lambda_.31} parent=0 // pred_region
    _
  $region5: #{_lambda_.31} parent=0 // pred_fallthru
    _
  // Predicated region
  $region6: #{_lambda_.31} parent=0 // pred_check
    _
  $region7: #{_lambda_.31} parent=0 // pred_check_branch
    %11 = sbr.rel (0) target = $region9
  $region8: #{_lambda_.31} parent=0 // pred_region
    _
  $region9: #{_lambda_.31} parent=0 // pred_fallthru
    _
  // Predicated region
  $region10: #{_lambda_.31} parent=0 // pred_check
    _
  $region11: #{_lambda_.31} parent=0 // pred_check_branch
    %13 = sbr.rel (0) target = $region13
  $region12: #{_lambda_.31} parent=0 // pred_region
    _
  $region13: #{_lambda_.31} parent=0 // pred_fallthru
    _
  %v15 = vld [vmem:[%s0] sm:$0xf]
  %v16 = vld [vmem:[%s0 + $0x4] sm:$0xf]
  %v17 = vld [vmem:[%s0 + $0x8] sm:$0xf]
  %v18 = vld [vmem:[%s0 + $0xc] sm:$0xf]
  %v19 = vld [vmem:[%s0 + $0x10] sm:$0xf]
  %v20 = vld [vmem:[%s0 + $0x14] sm:$0xf]
  %v21 = vld [vmem:[%s0 + $0x18] sm:$0xf]
  %v22 = vld [vmem:[%s0 + $0x1c] sm:$0xf]
  %v23 = vld [vmem:[%s0 + $0x20] sm:$0xf]
  %v24 = vld [vmem:[%s0 + $0x24] sm:$0xf]
  %v25 = vld [vmem:[%s0 + $0x28] sm:$0xf]
  %v26 = vld [vmem:[%s0 + $0x2c] sm:$0xf]
  %v27 = vld [vmem:[%s1] sm:$0xf]
  %v28 = vld [vmem:[%s2] sm:$0x1]
  %v30 = vperm.slane %v28, 0
  %v44 = vunpack.c.l.b16 %v15
  %v45 = vunpack.c.l.b16 %v16
  %v46 = vunpack.c.l.b16 %v17
  %v47 = vunpack.c.l.b16 %v18
  %v48 = vunpack.c.l.b16 %v19
  %v49 = vunpack.c.l.b16 %v20
  %v50 = vunpack.c.l.b16 %v21
  %v51 = vunpack.c.l.b16 %v22
  %v52 = vunpack.c.l.b16 %v23
  %v53 = vunpack.c.l.b16 %v24
  %v54 = vunpack.c.l.b16 %v25
  %v55 = vunpack.c.l.b16 %v26
  %v56 = vpack.c.b16 %v45, %v44
  %v57 = vpack.c.b16 %v47, %v46
  %v58 = vpack.c.b16 %v49, %v48
  %v59 = vpack.c.b16 %v51, %v50
  %v60 = vpack.c.b16 %v53, %v52
  %v61 = vpack.c.b16 %v55, %v54
  %vm62 = vcmask 64512
  %v64 = vsel %vm62, %v56, 0
  %v67 = vsel %vm62, %v57, 0
  %v70 = vsel %vm62, %v58, 0
  %v73 = vsel %vm62, %v59, 0
  %v76 = vsel %vm62, %v60, 0
  %v79 = vsel %vm62, %v61, 0
  %vm81 = vcmask 1043456
  %v83 = vsel %vm81, %v27, 0
  %85 = vmatpush.bf16.msra.mxu0 0
  %86 = vmatpush.bf16.msra.mxu0 0
  %87 = vmatpush.bf16.msra.mxu0 0
  %88 = vmatpush.bf16.msra.mxu0 0
  %89 = vmatpush.bf16.msra.mxu0 0
  %90 = vmatpush.bf16.msra.mxu0 0
  %91 = vmatpush.bf16.msra.mxu0 0
  %92 = vmatpush.bf16.msra.mxu0 %v83
  %93 = vmatmul.bf16.gmra.mxu0 %v64
  %v94 = vpop.f32.mrf.mxu0
  %v95 = vadd.f32 %v30, %v94
  %v96 = vpop.f32.mrf.mxu0
  %v97 = vadd.f32 %v30, %v96
  %98 = vmatmul.bf16.gmra.mxu0 %v67
  %v99 = vpop.f32.mrf.mxu0
  %v100 = vadd.f32 %v30, %v99
  %v101 = vpop.f32.mrf.mxu0
  %v102 = vadd.f32 %v30, %v101
  %103 = vmatmul.bf16.gmra.mxu0 %v70
  %v104 = vpop.f32.mrf.mxu0
  %v105 = vadd.f32 %v30, %v104
  %v106 = vpop.f32.mrf.mxu0
  %v107 = vadd.f32 %v30, %v106
  %108 = vmatmul.bf16.gmra.mxu0 %v73
  %v109 = vpop.f32.mrf.mxu0
  %v110 = vadd.f32 %v30, %v109
  %v111 = vpop.f32.mrf.mxu0
  %v112 = vadd.f32 %v30, %v111
  %113 = vmatmul.bf16.gmra.mxu0 %v76
  %v114 = vpop.f32.mrf.mxu0
  %v115 = vadd.f32 %v30, %v114
  %v116 = vpop.f32.mrf.mxu0
  %v117 = vadd.f32 %v30, %v116
  %118 = vmatmul.bf16.gmra.mxu0 %v79
  %v119 = vpop.f32.mrf.mxu0
  %v120 = vadd.f32 %v30, %v119
  %v121 = vpop.f32.mrf.mxu0
  %v122 = vadd.f32 %v30, %v121
  %123 = vdwg.mxu0
  %124 = vst.msk [vmem:[%s3] sm:$0xff] %vm62, %v95
  %125 = vst.msk [vmem:[%s3 + $0x8] sm:$0xff] %vm62, %v97
  %126 = vst.msk [vmem:[%s3 + $0x10] sm:$0xff] %vm62, %v100
  %127 = vst.msk [vmem:[%s3 + $0x18] sm:$0xff] %vm62, %v102
  %128 = vst.msk [vmem:[%s3 + $0x20] sm:$0xff] %vm62, %v105
  %129 = vst.msk [vmem:[%s3 + $0x28] sm:$0xff] %vm62, %v107
  %130 = vst.msk [vmem:[%s3 + $0x30] sm:$0xff] %vm62, %v110
  %131 = vst.msk [vmem:[%s3 + $0x38] sm:$0xff] %vm62, %v112
  %132 = vst.msk [vmem:[%s3 + $0x40] sm:$0xff] %vm62, %v115
  %133 = vst.msk [vmem:[%s3 + $0x48] sm:$0xff] %vm62, %v117
  %134 = vst.msk [vmem:[%s3 + $0x50] sm:$0xff] %vm62, %v120
  %135 = vst.msk [vmem:[%s3 + $0x58] sm:$0xff] %vm62, %v122
  // Predicated region
  $region14: #{_lambda_.31} parent=0 // pred_check
    _
  $region15: #{_lambda_.31} parent=0 // pred_check_branch
    %137 = sbr.rel (0) target = $region17
  $region16: #{_lambda_.31} parent=0 // pred_region
    _
  $region17: #{_lambda_.31} parent=0 // pred_fallthru
    _
  // Predicated region
  $region18: #{_lambda_.31} parent=0 // pred_check
    _
  $region19: #{_lambda_.31} parent=0 // pred_check_branch
    %139 = sbr.rel (0) target = $region21
  $region20: #{_lambda_.31} parent=0 // pred_region
    _
  $region21: #{_lambda_.31} parent=0 // pred_fallthru
    _

// kernel: _lambda_.34
$region0: #{_lambda_.34}
  #allocation0 [shape = 'u32[]', space=smem, size = 0x4, offset = 0x4, fixed_abs, tag = 'smem constant byte address 0x4 - core index']
  #allocation1 [shape = 'u32[72,128]{1,0:T(1,128)}', space=vmem, size = 0x9000, scoped, tag = 'internal scratch']
  %s0 = inlined_call_operand.vmem [shape: bf16[24,8], index: 0, kind: input, shape index: {}]
  %s1 = inlined_call_operand.vmem [shape: bf16[8,8], index: 1, kind: input, shape index: {}]
  %s2 = inlined_call_operand.vmem [shape: f32[1,8], index: 2, kind: input, shape index: {}]
  %s3 = inlined_call_operand.vmem [shape: f32[24,8], index: 3, kind: output, shape index: {}]
  %s4 = sld [smem:[#allocation0]]
  $region22: #{_lambda_.34} parent=0
    _
  %s6 = ssub.s32 1, %s4
  %s7 = scalar_select 0, %s6, %s4
  // Predicated region
  $region2: #{_lambda_.34} parent=0 // pred_check
    _
  $region3: #{_lambda_.34} parent=0 // pred_check_branch
    %9 = sbr.rel (0) target = $region5
  $region4: #{_lambda_.34} parent=0 // pred_region
    _
  $region5: #{_lambda_.34} parent=0 // pred_fallthru
    _
  // Predicated region
  $region6: #{_lambda_.34} parent=0 // pred_check
    _
  $region7: #{_lambda_.34} parent=0 // pred_check_branch
    %11 = sbr.rel (0) target = $region9
  $region8: #{_lambda_.34} parent=0 // pred_region
    _
  $region9: #{_lambda_.34} parent=0 // pred_fallthru
    _
  // Predicated region
  $region10: #{_lambda_.34} parent=0 // pred_check
    _
  $region11: #{_lambda_.34} parent=0 // pred_check_branch
    %13 = sbr.rel (0) target = $region13
  $region12: #{_lambda_.34} parent=0 // pred_region
    _
  $region13: #{_lambda_.34} parent=0 // pred_fallthru
    _
  %v15 = vld [vmem:[%s0] sm:$0xf]
  %v16 = vld [vmem:[%s0 + $0x4] sm:$0xf]
  %v17 = vld [vmem:[%s0 + $0x8] sm:$0xf]
  %v18 = vld [vmem:[%s1] sm:$0xf]
  %v19 = vld [vmem:[%s2] sm:$0x1]
  %v21 = vperm.slane %v19, 0
  %v26 = vunpack.c.l.b16 %v15
  %v27 = vunpack.c.l.b16 %v16
  %v28 = vunpack.c.l.b16 %v17
  %v29 = vpack.c.b16 %v27, %v26
  %v30 = vpack.c.b16 %v28, %v28
  %vm31 = vcmask 64512
  %v33 = vsel %vm31, %v29, 0
  %v36 = vsel %vm31, %v30, 0
  %vm38 = vcmask 1043456
  %v40 = vsel %vm38, %v18, 0
  %42 = vmatpush.bf16.msra.mxu0 0
  %43 = vmatpush.bf16.msra.mxu0 0
  %44 = vmatpush.bf16.msra.mxu0 0
  %45 = vmatpush.bf16.msra.mxu0 0
  %46 = vmatpush.bf16.msra.mxu0 0
  %47 = vmatpush.bf16.msra.mxu0 0
  %48 = vmatpush.bf16.msra.mxu0 0
  %49 = vmatpush.bf16.msra.mxu0 %v40
  %50 = vmatmul.bf16.gmra.mxu0 %v33
  %v51 = vpop.f32.mrf.mxu0
  %v52 = vadd.f32 %v21, %v51
  %v53 = vpop.f32.mrf.mxu0
  %v54 = vadd.f32 %v21, %v53
  %55 = vmatmul.bf16.gmra.mxu0 %v36
  %v56 = vpop.f32.mrf.mxu0
  %v57 = vadd.f32 %v21, %v56
  %v58 = vpop.f32.mrf.mxu0
  %59 = vdwg.mxu0
  %60 = vst.msk [vmem:[%s3] sm:$0xff] %vm31, %v52
  %61 = vst.msk [vmem:[%s3 + $0x8] sm:$0xff] %vm31, %v54
  %62 = vst.msk [vmem:[%s3 + $0x10] sm:$0xff] %vm31, %v57
  // Predicated region
  $region14: #{_lambda_.34} parent=0 // pred_check
    _
  $region15: #{_lambda_.34} parent=0 // pred_check_branch
    %64 = sbr.rel (0) target = $region17
  $region16: #{_lambda_.34} parent=0 // pred_region
    _
  $region17: #{_lambda_.34} parent=0 // pred_fallthru
    _
  // Predicated region
  $region18: #{_lambda_.34} parent=0 // pred_check
    _
  $region19: #{_lambda_.34} parent=0 // pred_check_branch
    %66 = sbr.rel (0) target = $region21
  $region20: #{_lambda_.34} parent=0 // pred_region
    _
  $region21: #{_lambda_.34} parent=0 // pred_fallthru
    _

// kernel: _lambda_.35
$region0: #{_lambda_.35}
  #allocation0 [shape = 'u32[]', space=smem, size = 0x4, offset = 0x4, fixed_abs, tag = 'smem constant byte address 0x4 - core index']
  #allocation1 [shape = 'u32[72,128]{1,0:T(1,128)}', space=vmem, size = 0x9000, scoped, tag = 'internal scratch']
  %s0 = inlined_call_operand.vmem [shape: f32[6,8], index: 0, kind: input, shape index: {}]
  %s1 = inlined_call_operand.vmem [shape: f32[6,4,8], index: 1, kind: input, shape index: {}]
  %s2 = inlined_call_operand.vmem [shape: f32[6,4,16], index: 2, kind: input, shape index: {}]
  %s3 = inlined_call_operand.vmem [shape: f32[6,16], index: 3, kind: output, shape index: {}]
  %s4 = sld [smem:[#allocation0]]
  $region22: #{_lambda_.35} parent=0
    _
  %s6 = ssub.s32 1, %s4
  %s7 = scalar_select 0, %s6, %s4
  // Predicated region
  $region2: #{_lambda_.35} parent=0 // pred_check
    _
  $region3: #{_lambda_.35} parent=0 // pred_check_branch
    %9 = sbr.rel (0) target = $region5
  $region4: #{_lambda_.35} parent=0 // pred_region
    _
  $region5: #{_lambda_.35} parent=0 // pred_fallthru
    _
  // Predicated region
  $region6: #{_lambda_.35} parent=0 // pred_check
    _
  $region7: #{_lambda_.35} parent=0 // pred_check_branch
    %11 = sbr.rel (0) target = $region9
  $region8: #{_lambda_.35} parent=0 // pred_region
    _
  $region9: #{_lambda_.35} parent=0 // pred_fallthru
    _
  // Predicated region
  $region10: #{_lambda_.35} parent=0 // pred_check
    _
  $region11: #{_lambda_.35} parent=0 // pred_check_branch
    %13 = sbr.rel (0) target = $region13
  $region12: #{_lambda_.35} parent=0 // pred_region
    _
  $region13: #{_lambda_.35} parent=0 // pred_fallthru
    _
  %v14 = vld [vmem:[%s0] sm:$0x3f]
  %v15 = vld [vmem:[%s1] sm:$0xf]
  %v16 = vld [vmem:[%s1 + $0x4] sm:$0xf]
  %v17 = vld [vmem:[%s1 + $0x8] sm:$0xf]
  %v18 = vld [vmem:[%s1 + $0xc] sm:$0xf]
  %v19 = vld [vmem:[%s1 + $0x10] sm:$0xf]
  %v20 = vld [vmem:[%s1 + $0x14] sm:$0xf]
  %v21 = vld [vmem:[%s2] sm:$0xf]
  %v22 = vld [vmem:[%s2 + $0x4] sm:$0xf]
  %v23 = vld [vmem:[%s2 + $0x8] sm:$0xf]
  %v24 = vld [vmem:[%s2 + $0xc] sm:$0xf]
  %v25 = vld [vmem:[%s2 + $0x10] sm:$0xf]
  %v26 = vld [vmem:[%s2 + $0x14] sm:$0xf]
  %v28 = vrot.slane %v14, 1
  %v29 = vrot.slane %v14, 2
  %v30 = vrot.slane %v14, 3
  %v31 = vrot.slane %v14, 4
  %v32 = vrot.slane %v14, 5
  %v33 = vperm.slane %v14, 0
  %v34 = vperm.slane %v28, 0
  %v35 = vperm.slane %v29, 0
  %v36 = vperm.slane %v30, 0
  %v37 = vperm.slane %v31, 0
  %v38 = vperm.slane %v32, 0
  %v45 = vmul.f32 %v33, %v15
  %v46 = vmul.f32 %v34, %v16
  %v47 = vmul.f32 %v35, %v17
  %v48 = vmul.f32 %v36, %v18
  %v49 = vmul.f32 %v37, %v19
  %v50 = vmul.f32 %v38, %v20
  %vm51 = vcmask 60416
  %v52 = vsel %vm51, %v45, 0.0
  %53 = vadd.xlane.f32.xlu0 %v52
  %v54 = vpop.xlane.xlu0 %53
  %v55 = vsel %vm51, %v46, 0.0
  %56 = vadd.xlane.f32.xlu0 %v55
  %v57 = vpop.xlane.xlu0 %56
  %v58 = vsel %vm51, %v47, 0.0
  %59 = vadd.xlane.f32.xlu0 %v58
  %v60 = vpop.xlane.xlu0 %59
  %v61 = vsel %vm51, %v48, 0.0
  %62 = vadd.xlane.f32.xlu0 %v61
  %v63 = vpop.xlane.xlu0 %62
  %v64 = vsel %vm51, %v49, 0.0
  %65 = vadd.xlane.f32.xlu0 %v64
  %v66 = vpop.xlane.xlu0 %65
  %v67 = vsel %vm51, %v50, 0.0
  %68 = vadd.xlane.f32.xlu0 %v67
  %v69 = vpop.xlane.xlu0 %68
  %v70 = vrcp.pop 2.828427
  %v71 = vmul.f32 2.828427, %v70
  %v72 = vsub.f32 1.0, %v71
  %v73 = vmul.f32 %v70, %v72
  %v74 = vadd.f32 %v70, %v73
  %vm75 = vweird.f32 %v70
  %v76 = vsel %vm75, %v70, %v74
  %v77 = vmul.f32 %v54, %v76
  %v78 = vmul.f32 %v57, %v76
  %v79 = vmul.f32 %v60, %v76
  %v80 = vmul.f32 %v63, %v76
  %v81 = vmul.f32 %v66, %v76
  %v82 = vmul.f32 %v69, %v76
  %vm83 = vcmp.eq.f32.partialorder %v77, 0.0
  %vm84 = vcmp.eq.f32.partialorder %v78, 0.0
  %vm85 = vcmp.eq.f32.partialorder %v79, 0.0
  %vm86 = vcmp.eq.f32.partialorder %v80, 0.0
  %vm87 = vcmp.eq.f32.partialorder %v81, 0.0
  %vm88 = vcmp.eq.f32.partialorder %v82, 0.0
  %v89 = vsel %vm83, -10000.0, %v77
  %v90 = vsel %vm84, -10000.0, %v78
  %v91 = vsel %vm85, -10000.0, %v79
  %v92 = vsel %vm86, -10000.0, %v80
  %v93 = vsel %vm87, -10000.0, %v81
  %v94 = vsel %vm88, -10000.0, %v82
  %vm95 = vcmp.ge.f32.partialorder %v89, 0.0
  %vm96 = vcmp.ge.f32.partialorder %v90, 0.0
  %vm97 = vcmp.ge.f32.partialorder %v91, 0.0
  %vm98 = vcmp.ge.f32.partialorder %v92, 0.0
  %vm99 = vcmp.ge.f32.partialorder %v93, 0.0
  %vm100 = vcmp.ge.f32.partialorder %v94, 0.0
  %v101 = vmul.f32 %v89, 0.01
  %v102 = vmul.f32 %v90, 0.01
  %v103 = vmul.f32 %v91, 0.01
  %v104 = vmul.f32 %v92, 0.01
  %v105 = vmul.f32 %v93, 0.01
  %v106 = vmul.f32 %v94, 0.01
  %v107 = vsel %vm95, %v89, %v101
  %v108 = vsel %vm96, %v90, %v102
  %v109 = vsel %vm97, %v91, %v103
  %v110 = vsel %vm98, %v92, %v104
  %v111 = vsel %vm99, %v93, %v105
  %v112 = vsel %vm100, %v94, %v106
  %v119 = vlaneseq
  %v120 = vand.u32 %v119, 127
  %v121 = vperm.slane %v107, %v120
  %v122 = vperm.slane %v108, %v120
  %v123 = vperm.slane %v109, %v120
  %v124 = vperm.slane %v110, %v120
  %v125 = vperm.slane %v111, %v120
  %v126 = vperm.slane %v112, %v120
  %vm127 = vcmask 1041409
  %v128 = vsel %vm127, %v122, %v121
  %vm129 = vcmask 1042434
  %v130 = vsel %vm129, %v123, %v128
  %vm131 = vcmask 1043459
  %v132 = vsel %vm131, %v124, %v130
  %vm133 = vcmask 1044484
  %v134 = vsel %vm133, %v125, %v132
  %vm135 = vcmask 1045509
  %v136 = vsel %vm135, %v126, %v134
  %vm138 = vcmask 29696
  %v139 = vsel %vm138, %v136, -inf
  %140 = vmax.xlane.f32.xlu0 %v139
  %v141 = vpop.xlane.xlu0 %140
  %v143 = vperm.slane %v141, 0
  %v144 = vperm.slane %v141, 1
  %v145 = vperm.slane %v141, 2
  %v146 = vperm.slane %v141, 3
  %v147 = vperm.slane %v141, 4
  %v148 = vperm.slane %v141, 5
  %v155 = vsub.f32 %v107, %v143
  %v156 = vsub.f32 %v108, %v144
  %v157 = vsub.f32 %v109, %v145
  %v158 = vsub.f32 %v110, %v146
  %v159 = vsub.f32 %v111, %v147
  %v160 = vsub.f32 %v112, %v148
  %v161 = vmul.f32 %v155, 1.442695
  %v162 = vpow.pop %v161
  %v163 = vmul.f32 %v156, 1.442695
  %v164 = vpow.pop %v163
  %v165 = vmul.f32 %v157, 1.442695
  %v166 = vpow.pop %v165
  %v167 = vmul.f32 %v158, 1.442695
  %v168 = vpow.pop %v167
  %v169 = vmul.f32 %v159, 1.442695
  %v170 = vpow.pop %v169
  %v171 = vmul.f32 %v160, 1.442695
  %v172 = vpow.pop %v171
  %179 = vset.pattern.permute.xlu0 0
  %180 = vperm.xlu0 %179, %v162
  %v181 = vpop.permute.xlu0 %180
  %182 = vset.pattern.permute.xlu0 0
  %183 = vperm.xlu0 %182, %v164
  %v184 = vpop.permute.xlu0 %183
  %185 = vset.pattern.permute.xlu0 0
  %186 = vperm.xlu0 %185, %v166
  %v187 = vpop.permute.xlu0 %186
  %188 = vset.pattern.permute.xlu0 0
  %189 = vperm.xlu0 %188, %v168
  %v190 = vpop.permute.xlu0 %189
  %191 = vset.pattern.permute.xlu0 0
  %192 = vperm.xlu0 %191, %v170
  %v193 = vpop.permute.xlu0 %192
  %194 = vset.pattern.permute.xlu0 0
  %195 = vperm.xlu0 %194, %v172
  %v196 = vpop.permute.xlu0 %195
  %v197 = vperm.slane %v181, %v120
  %v198 = vperm.slane %v184, %v120
  %v199 = vperm.slane %v187, %v120
  %v200 = vperm.slane %v190, %v120
  %v201 = vperm.slane %v193, %v120
  %v202 = vperm.slane %v196, %v120
  %v203 = vsel %vm127, %v198, %v197
  %v204 = vsel %vm129, %v199, %v203
  %v205 = vsel %vm131, %v200, %v204
  %v206 = vsel %vm133, %v201, %v205
  %v207 = vsel %vm135, %v202, %v206
  %v209 = vsel %vm138, %v207, 0.0
  %210 = vadd.xlane.f32.xlu0 %v209
  %v211 = vpop.xlane.xlu0 %210
  %v213 = vperm.slane %v211, 0
  %v214 = vperm.slane %v211, 1
  %v215 = vperm.slane %v211, 2
  %v216 = vperm.slane %v211, 3
  %v217 = vperm.slane %v211, 4
  %v218 = vperm.slane %v211, 5
  %v225 = vrcp.pop %v213
  %v226 = vmul.f32 %v213, %v225
  %v227 = vsub.f32 1.0, %v226
  %v228 = vmul.f32 %v225, %v227
  %v229 = vadd.f32 %v225, %v228
  %vm230 = vweird.f32 %v213
  %vm231 = vweird.f32 %v225
  %vm232 = vmor %vm230, %vm231
  %v233 = vsel %vm232, %v225, %v229
  %v234 = vand.u32 2147483647, %v213
  %vm235 = vcmp.eq.f32.partialorder %v234, 8.507059e+37
  %v236 = vand.u32 %v213, 2147483648
  %v237 = vor.u32 1.1754944e-38, %v236
  %v238 = vsel %vm235, %v237, %v233
  %v239 = vmul.f32 %v162, %v238
  %v240 = vrcp.pop %v214
  %v241 = vmul.f32 %v214, %v240
  %v242 = vsub.f32 1.0, %v241
  %v243 = vmul.f32 %v240, %v242
  %v244 = vadd.f32 %v240, %v243
  %vm245 = vweird.f32 %v214
  %vm246 = vweird.f32 %v240
  %vm247 = vmor %vm245, %vm246
  %v248 = vsel %vm247, %v240, %v244
  %v249 = vand.u32 2147483647, %v214
  %vm250 = vcmp.eq.f32.partialorder %v249, 8.507059e+37
  %v251 = vand.u32 %v214, 2147483648
  %v252 = vor.u32 1.1754944e-38, %v251
  %v253 = vsel %vm250, %v252, %v248
  %v254 = vmul.f32 %v164, %v253
  %v255 = vrcp.pop %v215
  %v256 = vmul.f32 %v215, %v255
  %v257 = vsub.f32 1.0, %v256
  %v258 = vmul.f32 %v255, %v257
  %v259 = vadd.f32 %v255, %v258
  %vm260 = vweird.f32 %v215
  %vm261 = vweird.f32 %v255
  %vm262 = vmor %vm260, %vm261
  %v263 = vsel %vm262, %v255, %v259
  %v264 = vand.u32 2147483647, %v215
  %vm265 = vcmp.eq.f32.partialorder %v264, 8.507059e+37
  %v266 = vand.u32 %v215, 2147483648
  %v267 = vor.u32 1.1754944e-38, %v266
  %v268 = vsel %vm265, %v267, %v263
  %v269 = vmul.f32 %v166, %v268
  %v270 = vrcp.pop %v216
  %v271 = vmul.f32 %v216, %v270
  %v272 = vsub.f32 1.0, %v271
  %v273 = vmul.f32 %v270, %v272
  %v274 = vadd.f32 %v270, %v273
  %vm275 = vweird.f32 %v216
  %vm276 = vweird.f32 %v270
  %vm277 = vmor %vm275, %vm276
  %v278 = vsel %vm277, %v270, %v274
  %v279 = vand.u32 2147483647, %v216
  %vm280 = vcmp.eq.f32.partialorder %v279, 8.507059e+37
  %v281 = vand.u32 %v216, 2147483648
  %v282 = vor.u32 1.1754944e-38, %v281
  %v283 = vsel %vm280, %v282, %v278
  %v284 = vmul.f32 %v168, %v283
  %v285 = vrcp.pop %v217
  %v286 = vmul.f32 %v217, %v285
  %v287 = vsub.f32 1.0, %v286
  %v288 = vmul.f32 %v285, %v287
  %v289 = vadd.f32 %v285, %v288
  %vm290 = vweird.f32 %v217
  %vm291 = vweird.f32 %v285
  %vm292 = vmor %vm290, %vm291
  %v293 = vsel %vm292, %v285, %v289
  %v294 = vand.u32 2147483647, %v217
  %vm295 = vcmp.eq.f32.partialorder %v294, 8.507059e+37
  %v296 = vand.u32 %v217, 2147483648
  %v297 = vor.u32 1.1754944e-38, %v296
  %v298 = vsel %vm295, %v297, %v293
  %v299 = vmul.f32 %v170, %v298
  %v300 = vrcp.pop %v218
  %v301 = vmul.f32 %v218, %v300
  %v302 = vsub.f32 1.0, %v301
  %v303 = vmul.f32 %v300, %v302
  %v304 = vadd.f32 %v300, %v303
  %vm305 = vweird.f32 %v218
  %vm306 = vweird.f32 %v300
  %vm307 = vmor %vm305, %vm306
  %v308 = vsel %vm307, %v300, %v304
  %v309 = vand.u32 2147483647, %v218
  %vm310 = vcmp.eq.f32.partialorder %v309, 8.507059e+37
  %v311 = vand.u32 %v218, 2147483648
  %v312 = vor.u32 1.1754944e-38, %v311
  %v313 = vsel %vm310, %v312, %v308
  %v314 = vmul.f32 %v172, %v313
  %vm315 = vcmp.eq.f32.partialorder %v239, 0.25
  %vm316 = vcmp.eq.f32.partialorder %v254, 0.25
  %vm317 = vcmp.eq.f32.partialorder %v269, 0.25
  %vm318 = vcmp.eq.f32.partialorder %v284, 0.25
  %vm319 = vcmp.eq.f32.partialorder %v299, 0.25
  %vm320 = vcmp.eq.f32.partialorder %v314, 0.25
  %v321 = vsel %vm315, 0.0, %v239
  %v322 = vsel %vm316, 0.0, %v254
  %v323 = vsel %vm317, 0.0, %v269
  %v324 = vsel %vm318, 0.0, %v284
  %v325 = vsel %vm319, 0.0, %v299
  %v326 = vsel %vm320, 0.0, %v314
  %328 = vset.pattern.permute.xlu0 0
  %329 = vperm.xlu0 %328, %v321
  %v330 = vpop.permute.xlu0 %329
  %333 = vset.pattern.permute.xlu0 0
  %334 = vperm.xlu0 %333, %v322
  %v335 = vpop.permute.xlu0 %334
  %338 = vset.pattern.permute.xlu0 0
  %339 = vperm.xlu0 %338, %v323
  %v340 = vpop.permute.xlu0 %339
  %343 = vset.pattern.permute.xlu0 0
  %344 = vperm.xlu0 %343, %v324
  %v345 = vpop.permute.xlu0 %344
  %348 = vset.pattern.permute.xlu0 0
  %349 = vperm.xlu0 %348, %v325
  %v350 = vpop.permute.xlu0 %349
  %353 = vset.pattern.permute.xlu0 0
  %354 = vperm.xlu0 %353, %v326
  %v355 = vpop.permute.xlu0 %354
  %v357 = vmul.f32 %v330, %v21
  %v358 = vmul.f32 %v335, %v22
  %v359 = vmul.f32 %v340, %v23
  %v360 = vmul.f32 %v345, %v24
  %v361 = vmul.f32 %v350, %v25
  %v362 = vmul.f32 %v355, %v26
  %vm363 = vcmask 125952
  %v364 = vsel %vm363, %v357, 0.0
  %v365 = vrot.slane %v364, 4
  %v366 = vadd.f32 %v364, %v365
  %v367 = vrot.slane %v366, 2
  %v368 = vadd.f32 %v366, %v367
  %v369 = vrot.slane %v368, 1
  %v370 = vadd.f32 %v368, %v369
  %v371 = vsel %vm363, %v358, 0.0
  %v372 = vrot.slane %v371, 4
  %v373 = vadd.f32 %v371, %v372
  %v374 = vrot.slane %v373, 2
  %v375 = vadd.f32 %v373, %v374
  %v376 = vrot.slane %v375, 1
  %v377 = vadd.f32 %v375, %v376
  %v378 = vsel %vm363, %v359, 0.0
  %v379 = vrot.slane %v378, 4
  %v380 = vadd.f32 %v378, %v379
  %v381 = vrot.slane %v380, 2
  %v382 = vadd.f32 %v380, %v381
  %v383 = vrot.slane %v382, 1
  %v384 = vadd.f32 %v382, %v383
  %v385 = vsel %vm363, %v360, 0.0
  %v386 = vrot.slane %v385, 4
  %v387 = vadd.f32 %v385, %v386
  %v388 = vrot.slane %v387, 2
  %v389 = vadd.f32 %v387, %v388
  %v390 = vrot.slane %v389, 1
  %v391 = vadd.f32 %v389, %v390
  %v392 = vsel %vm363, %v361, 0.0
  %v393 = vrot.slane %v392, 4
  %v394 = vadd.f32 %v392, %v393
  %v395 = vrot.slane %v394, 2
  %v396 = vadd.f32 %v394, %v395
  %v397 = vrot.slane %v396, 1
  %v398 = vadd.f32 %v396, %v397
  %v399 = vsel %vm363, %v362, 0.0
  %v400 = vrot.slane %v399, 4
  %v401 = vadd.f32 %v399, %v400
  %v402 = vrot.slane %v401, 2
  %v403 = vadd.f32 %v401, %v402
  %v404 = vrot.slane %v403, 1
  %v405 = vadd.f32 %v403, %v404
  %v412 = vsel %vm127, %v377, %v370
  %v413 = vsel %vm129, %v384, %v412
  %v414 = vsel %vm131, %v391, %v413
  %v415 = vsel %vm133, %v398, %v414
  %v416 = vsel %vm135, %v405, %v415
  %vm418 = vcmask 128000
  %419 = vst.msk [vmem:[%s3] sm:$0x3f] %vm418, %v416
  // Predicated region
  $region14: #{_lambda_.35} parent=0 // pred_check
    _
  $region15: #{_lambda_.35} parent=0 // pred_check_branch
    %421 = sbr.rel (0) target = $region17
  $region16: #{_lambda_.35} parent=0 // pred_region
    _
  $region17: #{_lambda_.35} parent=0 // pred_fallthru
    _
  // Predicated region
  $region18: #{_lambda_.35} parent=0 // pred_check
    _
  $region19: #{_lambda_.35} parent=0 // pred_check_branch
    %423 = sbr.rel (0) target = $region21
  $region20: #{_lambda_.35} parent=0 // pred_region
    _
  $region21: #{_lambda_.35} parent=0 // pred_fallthru
    _

// kernel: _lambda_.32
$region0: #{_lambda_.32}
  #allocation0 [shape = 'u32[]', space=smem, size = 0x4, offset = 0x4, fixed_abs, tag = 'smem constant byte address 0x4 - core index']
  #allocation1 [shape = 'u32[72,128]{1,0:T(1,128)}', space=vmem, size = 0x9000, scoped, tag = 'internal scratch']
  %s0 = inlined_call_operand.vmem [shape: f32[24,8], index: 0, kind: input, shape index: {}]
  %s1 = inlined_call_operand.vmem [shape: f32[24,4,8], index: 1, kind: input, shape index: {}]
  %s2 = inlined_call_operand.vmem [shape: f32[24,4,8], index: 2, kind: input, shape index: {}]
  %s3 = inlined_call_operand.vmem [shape: f32[24,8], index: 3, kind: output, shape index: {}]
  %s4 = sld [smem:[#allocation0]]
  $region22: #{_lambda_.32} parent=0
    _
  %s6 = ssub.s32 1, %s4
  %s7 = scalar_select 0, %s6, %s4
  // Predicated region
  $region2: #{_lambda_.32} parent=0 // pred_check
    _
  $region3: #{_lambda_.32} parent=0 // pred_check_branch
    %9 = sbr.rel (0) target = $region5
  $region4: #{_lambda_.32} parent=0 // pred_region
    _
  $region5: #{_lambda_.32} parent=0 // pred_fallthru
    _
  // Predicated region
  $region6: #{_lambda_.32} parent=0 // pred_check
    _
  $region7: #{_lambda_.32} parent=0 // pred_check_branch
    %11 = sbr.rel (0) target = $region9
  $region8: #{_lambda_.32} parent=0 // pred_region
    _
  $region9: #{_lambda_.32} parent=0 // pred_fallthru
    _
  // Predicated region
  $region10: #{_lambda_.32} parent=0 // pred_check
    _
  $region11: #{_lambda_.32} parent=0 // pred_check_branch
    %13 = sbr.rel (0) target = $region13
  $region12: #{_lambda_.32} parent=0 // pred_region
    _
  $region13: #{_lambda_.32} parent=0 // pred_fallthru
    _
  %v14 = vld [vmem:[%s0] sm:$0xff]
  %v15 = vld [vmem:[%s0 + $0x8] sm:$0xff]
  %v16 = vld [vmem:[%s0 + $0x10] sm:$0xff]
  %v17 = vld [vmem:[%s1] sm:$0xf]
  %v18 = vld [vmem:[%s1 + $0x4] sm:$0xf]
  %v19 = vld [vmem:[%s1 + $0x8] sm:$0xf]
  %v20 = vld [vmem:[%s1 + $0xc] sm:$0xf]
  %v21 = vld [vmem:[%s1 + $0x10] sm:$0xf]
  %v22 = vld [vmem:[%s1 + $0x14] sm:$0xf]
  %v23 = vld [vmem:[%s1 + $0x18] sm:$0xf]
  %v24 = vld [vmem:[%s1 + $0x1c] sm:$0xf]
  %v25 = vld [vmem:[%s1 + $0x20] sm:$0xf]
  %v26 = vld [vmem:[%s1 + $0x24] sm:$0xf]
  %v27 = vld [vmem:[%s1 + $0x28] sm:$0xf]
  %v28 = vld [vmem:[%s1 + $0x2c] sm:$0xf]
  %v29 = vld [vmem:[%s1 + $0x30] sm:$0xf]
  %v30 = vld [vmem:[%s1 + $0x34] sm:$0xf]
  %v31 = vld [vmem:[%s1 + $0x38] sm:$0xf]
  %v32 = vld [vmem:[%s1 + $0x3c] sm:$0xf]
  %v33 = vld [vmem:[%s1 + $0x40] sm:$0xf]
  %v34 = vld [vmem:[%s1 + $0x44] sm:$0xf]
  %v35 = vld [vmem:[%s1 + $0x48] sm:$0xf]
  %v36 = vld [vmem:[%s1 + $0x4c] sm:$0xf]
  %v37 = vld [vmem:[%s1 + $0x50] sm:$0xf]
  %v38 = vld [vmem:[%s1 + $0x54] sm:$0xf]
  %v39 = vld [vmem:[%s1 + $0x58] sm:$0xf]
  %v40 = vld [vmem:[%s1 + $0x5c] sm:$0xf]
  %v41 = vld [vmem:[%s2] sm:$0xf]
  %v42 = vld [vmem:[%s2 + $0x4] sm:$0xf]
  %v43 = vld [vmem:[%s2 + $0x8] sm:$0xf]
  %v44 = vld [vmem:[%s2 + $0xc] sm:$0xf]
  %v45 = vld [vmem:[%s2 + $0x10] sm:$0xf]
  %v46 = vld [vmem:[%s2 + $0x14] sm:$0xf]
  %v47 = vld [vmem:[%s2 + $0x18] sm:$0xf]
  %v48 = vld [vmem:[%s2 + $0x1c] sm:$0xf]
  %v49 = vld [vmem:[%s2 + $0x20] sm:$0xf]
  %v50 = vld [vmem:[%s2 + $0x24] sm:$0xf]
  %v51 = vld [vmem:[%s2 + $0x28] sm:$0xf]
  %v52 = vld [vmem:[%s2 + $0x2c] sm:$0xf]
  %v53 = vld [vmem:[%s2 + $0x30] sm:$0xf]
  %v54 = vld [vmem:[%s2 + $0x34] sm:$0xf]
  %v55 = vld [vmem:[%s2 + $0x38] sm:$0xf]
  %v56 = vld [vmem:[%s2 + $0x3c] sm:$0xf]
  %v57 = vld [vmem:[%s2 + $0x40] sm:$0xf]
  %v58 = vld [vmem:[%s2 + $0x44] sm:$0xf]
  %v59 = vld [vmem:[%s2 + $0x48] sm:$0xf]
  %v60 = vld [vmem:[%s2 + $0x4c] sm:$0xf]
  %v61 = vld [vmem:[%s2 + $0x50] sm:$0xf]
  %v62 = vld [vmem:[%s2 + $0x54] sm:$0xf]
  %v63 = vld [vmem:[%s2 + $0x58] sm:$0xf]
  %v64 = vld [vmem:[%s2 + $0x5c] sm:$0xf]
  %v68 = vrot.slane %v14, 1
  %v69 = vrot.slane %v14, 2
  %v70 = vrot.slane %v14, 3
  %v71 = vrot.slane %v14, 4
  %v72 = vrot.slane %v14, 5
  %v73 = vrot.slane %v14, 6
  %v74 = vrot.slane %v14, 7
  %v75 = vrot.slane %v15, 1
  %v76 = vrot.slane %v15, 2
  %v77 = vrot.slane %v15, 3
  %v78 = vrot.slane %v15, 4
  %v79 = vrot.slane %v15, 5
  %v80 = vrot.slane %v15, 6
  %v81 = vrot.slane %v15, 7
  %v82 = vrot.slane %v16, 1
  %v83 = vrot.slane %v16, 2
  %v84 = vrot.slane %v16, 3
  %v85 = vrot.slane %v16, 4
  %v86 = vrot.slane %v16, 5
  %v87 = vrot.slane %v16, 6
  %v88 = vrot.slane %v16, 7
  %v89 = vperm.slane %v14, 0
  %v90 = vperm.slane %v68, 0
  %v91 = vperm.slane %v69, 0
  %v92 = vperm.slane %v70, 0
  %v93 = vperm.slane %v71, 0
  %v94 = vperm.slane %v72, 0
  %v95 = vperm.slane %v73, 0
  %v96 = vperm.slane %v74, 0
  %v97 = vperm.slane %v15, 0
  %v98 = vperm.slane %v75, 0
  %v99 = vperm.slane %v76, 0
  %v100 = vperm.slane %v77, 0
  %v101 = vperm.slane %v78, 0
  %v102 = vperm.slane %v79, 0
  %v103 = vperm.slane %v80, 0
  %v104 = vperm.slane %v81, 0
  %v105 = vperm.slane %v16, 0
  %v106 = vperm.slane %v82, 0
  %v107 = vperm.slane %v83, 0
  %v108 = vperm.slane %v84, 0
  %v109 = vperm.slane %v85, 0
  %v110 = vperm.slane %v86, 0
  %v111 = vperm.slane %v87, 0
  %v112 = vperm.slane %v88, 0
  %v137 = vmul.f32 %v89, %v17
  %v138 = vmul.f32 %v90, %v18
  %v139 = vmul.f32 %v91, %v19
  %v140 = vmul.f32 %v92, %v20
  %v141 = vmul.f32 %v93, %v21
  %v142 = vmul.f32 %v94, %v22
  %v143 = vmul.f32 %v95, %v23
  %v144 = vmul.f32 %v96, %v24
  %v145 = vmul.f32 %v97, %v25
  %v146 = vmul.f32 %v98, %v26
  %v147 = vmul.f32 %v99, %v27
  %v148 = vmul.f32 %v100, %v28
  %v149 = vmul.f32 %v101, %v29
  %v150 = vmul.f32 %v102, %v30
  %v151 = vmul.f32 %v103, %v31
  %v152 = vmul.f32 %v104, %v32
  %v153 = vmul.f32 %v105, %v33
  %v154 = vmul.f32 %v106, %v34
  %v155 = vmul.f32 %v107, %v35
  %v156 = vmul.f32 %v108, %v36
  %v157 = vmul.f32 %v109, %v37
  %v158 = vmul.f32 %v110, %v38
  %v159 = vmul.f32 %v111, %v39
  %v160 = vmul.f32 %v112, %v40
  %vm161 = vcmask 60416
  %v162 = vsel %vm161, %v137, 0.0
  %163 = vadd.xlane.f32.xlu0 %v162
  %v164 = vpop.xlane.xlu0 %163
  %v165 = vsel %vm161, %v138, 0.0
  %166 = vadd.xlane.f32.xlu0 %v165
  %v167 = vpop.xlane.xlu0 %166
  %v168 = vsel %vm161, %v139, 0.0
  %169 = vadd.xlane.f32.xlu0 %v168
  %v170 = vpop.xlane.xlu0 %169
  %v171 = vsel %vm161, %v140, 0.0
  %172 = vadd.xlane.f32.xlu0 %v171
  %v173 = vpop.xlane.xlu0 %172
  %v174 = vsel %vm161, %v141, 0.0
  %175 = vadd.xlane.f32.xlu0 %v174
  %v176 = vpop.xlane.xlu0 %175
  %v177 = vsel %vm161, %v142, 0.0
  %178 = vadd.xlane.f32.xlu0 %v177
  %v179 = vpop.xlane.xlu0 %178
  %v180 = vsel %vm161, %v143, 0.0
  %181 = vadd.xlane.f32.xlu0 %v180
  %v182 = vpop.xlane.xlu0 %181
  %v183 = vsel %vm161, %v144, 0.0
  %184 = vadd.xlane.f32.xlu0 %v183
  %v185 = vpop.xlane.xlu0 %184
  %v186 = vsel %vm161, %v145, 0.0
  %187 = vadd.xlane.f32.xlu0 %v186
  %v188 = vpop.xlane.xlu0 %187
  %v189 = vsel %vm161, %v146, 0.0
  %190 = vadd.xlane.f32.xlu0 %v189
  %v191 = vpop.xlane.xlu0 %190
  %v192 = vsel %vm161, %v147, 0.0
  %193 = vadd.xlane.f32.xlu0 %v192
  %v194 = vpop.xlane.xlu0 %193
  %v195 = vsel %vm161, %v148, 0.0
  %196 = vadd.xlane.f32.xlu0 %v195
  %v197 = vpop.xlane.xlu0 %196
  %v198 = vsel %vm161, %v149, 0.0
  %199 = vadd.xlane.f32.xlu0 %v198
  %v200 = vpop.xlane.xlu0 %199
  %v201 = vsel %vm161, %v150, 0.0
  %202 = vadd.xlane.f32.xlu0 %v201
  %v203 = vpop.xlane.xlu0 %202
  %v204 = vsel %vm161, %v151, 0.0
  %205 = vadd.xlane.f32.xlu0 %v204
  %v206 = vpop.xlane.xlu0 %205
  %v207 = vsel %vm161, %v152, 0.0
  %208 = vadd.xlane.f32.xlu0 %v207
  %v209 = vpop.xlane.xlu0 %208
  %v210 = vsel %vm161, %v153, 0.0
  %211 = vadd.xlane.f32.xlu0 %v210
  %v212 = vpop.xlane.xlu0 %211
  %v213 = vsel %vm161, %v154, 0.0
  %214 = vadd.xlane.f32.xlu0 %v213
  %v215 = vpop.xlane.xlu0 %214
  %v216 = vsel %vm161, %v155, 0.0
  %217 = vadd.xlane.f32.xlu0 %v216
  %v218 = vpop.xlane.xlu0 %217
  %v219 = vsel %vm161, %v156, 0.0
  %220 = vadd.xlane.f32.xlu0 %v219
  %v221 = vpop.xlane.xlu0 %220
  %v222 = vsel %vm161, %v157, 0.0
  %223 = vadd.xlane.f32.xlu0 %v222
  %v224 = vpop.xlane.xlu0 %223
  %v225 = vsel %vm161, %v158, 0.0
  %226 = vadd.xlane.f32.xlu0 %v225
  %v227 = vpop.xlane.xlu0 %226
  %v228 = vsel %vm161, %v159, 0.0
  %229 = vadd.xlane.f32.xlu0 %v228
  %v230 = vpop.xlane.xlu0 %229
  %v231 = vsel %vm161, %v160, 0.0
  %232 = vadd.xlane.f32.xlu0 %v231
  %v233 = vpop.xlane.xlu0 %232
  %v234 = vrcp.pop 2.828427
  %v235 = vmul.f32 2.828427, %v234
  %v236 = vsub.f32 1.0, %v235
  %v237 = vmul.f32 %v234, %v236
  %v238 = vadd.f32 %v234, %v237
  %vm239 = vweird.f32 %v234
  %v240 = vsel %vm239, %v234, %v238
  %v241 = vmul.f32 %v164, %v240
  %v242 = vmul.f32 %v167, %v240
  %v243 = vmul.f32 %v170, %v240
  %v244 = vmul.f32 %v173, %v240
  %v245 = vmul.f32 %v176, %v240
  %v246 = vmul.f32 %v179, %v240
  %v247 = vmul.f32 %v182, %v240
  %v248 = vmul.f32 %v185, %v240
  %v249 = vmul.f32 %v188, %v240
  %v250 = vmul.f32 %v191, %v240
  %v251 = vmul.f32 %v194, %v240
  %v252 = vmul.f32 %v197, %v240
  %v253 = vmul.f32 %v200, %v240
  %v254 = vmul.f32 %v203, %v240
  %v255 = vmul.f32 %v206, %v240
  %v256 = vmul.f32 %v209, %v240
  %v257 = vmul.f32 %v212, %v240
  %v258 = vmul.f32 %v215, %v240
  %v259 = vmul.f32 %v218, %v240
  %v260 = vmul.f32 %v221, %v240
  %v261 = vmul.f32 %v224, %v240
  %v262 = vmul.f32 %v227, %v240
  %v263 = vmul.f32 %v230, %v240
  %v264 = vmul.f32 %v233, %v240
  %vm265 = vcmp.eq.f32.partialorder %v241, 0.0
  %vm266 = vcmp.eq.f32.partialorder %v242, 0.0
  %vm267 = vcmp.eq.f32.partialorder %v243, 0.0
  %vm268 = vcmp.eq.f32.partialorder %v244, 0.0
  %vm269 = vcmp.eq.f32.partialorder %v245, 0.0
  %vm270 = vcmp.eq.f32.partialorder %v246, 0.0
  %vm271 = vcmp.eq.f32.partialorder %v247, 0.0
  %vm272 = vcmp.eq.f32.partialorder %v248, 0.0
  %vm273 = vcmp.eq.f32.partialorder %v249, 0.0
  %vm274 = vcmp.eq.f32.partialorder %v250, 0.0
  %vm275 = vcmp.eq.f32.partialorder %v251, 0.0
  %vm276 = vcmp.eq.f32.partialorder %v252, 0.0
  %vm277 = vcmp.eq.f32.partialorder %v253, 0.0
  %vm278 = vcmp.eq.f32.partialorder %v254, 0.0
  %vm279 = vcmp.eq.f32.partialorder %v255, 0.0
  %vm280 = vcmp.eq.f32.partialorder %v256, 0.0
  %vm281 = vcmp.eq.f32.partialorder %v257, 0.0
  %vm282 = vcmp.eq.f32.partialorder %v258, 0.0
  %vm283 = vcmp.eq.f32.partialorder %v259, 0.0
  %vm284 = vcmp.eq.f32.partialorder %v260, 0.0
  %vm285 = vcmp.eq.f32.partialorder %v261, 0.0
  %vm286 = vcmp.eq.f32.partialorder %v262, 0.0
  %vm287 = vcmp.eq.f32.partialorder %v263, 0.0
  %vm288 = vcmp.eq.f32.partialorder %v264, 0.0
  %v289 = vsel %vm265, -10000.0, %v241
  %v290 = vsel %vm266, -10000.0, %v242
  %v291 = vsel %vm267, -10000.0, %v243
  %v292 = vsel %vm268, -10000.0, %v244
  %v293 = vsel %vm269, -10000.0, %v245
  %v294 = vsel %vm270, -10000.0, %v246
  %v295 = vsel %vm271, -10000.0, %v247
  %v296 = vsel %vm272, -10000.0, %v248
  %v297 = vsel %vm273, -10000.0, %v249
  %v298 = vsel %vm274, -10000.0, %v250
  %v299 = vsel %vm275, -10000.0, %v251
  %v300 = vsel %vm276, -10000.0, %v252
  %v301 = vsel %vm277, -10000.0, %v253
  %v302 = vsel %vm278, -10000.0, %v254
  %v303 = vsel %vm279, -10000.0, %v255
  %v304 = vsel %vm280, -10000.0, %v256
  %v305 = vsel %vm281, -10000.0, %v257
  %v306 = vsel %vm282, -10000.0, %v258
  %v307 = vsel %vm283, -10000.0, %v259
  %v308 = vsel %vm284, -10000.0, %v260
  %v309 = vsel %vm285, -10000.0, %v261
  %v310 = vsel %vm286, -10000.0, %v262
  %v311 = vsel %vm287, -10000.0, %v263
  %v312 = vsel %vm288, -10000.0, %v264
  %vm313 = vcmp.ge.f32.partialorder %v289, 0.0
  %vm314 = vcmp.ge.f32.partialorder %v290, 0.0
  %vm315 = vcmp.ge.f32.partialorder %v291, 0.0
  %vm316 = vcmp.ge.f32.partialorder %v292, 0.0
  %vm317 = vcmp.ge.f32.partialorder %v293, 0.0
  %vm318 = vcmp.ge.f32.partialorder %v294, 0.0
  %vm319 = vcmp.ge.f32.partialorder %v295, 0.0
  %vm320 = vcmp.ge.f32.partialorder %v296, 0.0
  %vm321 = vcmp.ge.f32.partialorder %v297, 0.0
  %vm322 = vcmp.ge.f32.partialorder %v298, 0.0
  %vm323 = vcmp.ge.f32.partialorder %v299, 0.0
  %vm324 = vcmp.ge.f32.partialorder %v300, 0.0
  %vm325 = vcmp.ge.f32.partialorder %v301, 0.0
  %vm326 = vcmp.ge.f32.partialorder %v302, 0.0
  %vm327 = vcmp.ge.f32.partialorder %v303, 0.0
  %vm328 = vcmp.ge.f32.partialorder %v304, 0.0
  %vm329 = vcmp.ge.f32.partialorder %v305, 0.0
  %vm330 = vcmp.ge.f32.partialorder %v306, 0.0
  %vm331 = vcmp.ge.f32.partialorder %v307, 0.0
  %vm332 = vcmp.ge.f32.partialorder %v308, 0.0
  %vm333 = vcmp.ge.f32.partialorder %v309, 0.0
  %vm334 = vcmp.ge.f32.partialorder %v310, 0.0
  %vm335 = vcmp.ge.f32.partialorder %v311, 0.0
  %vm336 = vcmp.ge.f32.partialorder %v312, 0.0
  %v337 = vmul.f32 %v289, 0.01
  %v338 = vmul.f32 %v290, 0.01
  %v339 = vmul.f32 %v291, 0.01
  %v340 = vmul.f32 %v292, 0.01
  %v341 = vmul.f32 %v293, 0.01
  %v342 = vmul.f32 %v294, 0.01
  %v343 = vmul.f32 %v295, 0.01
  %v344 = vmul.f32 %v296, 0.01
  %v345 = vmul.f32 %v297, 0.01
  %v346 = vmul.f32 %v298, 0.01
  %v347 = vmul.f32 %v299, 0.01
  %v348 = vmul.f32 %v300, 0.01
  %v349 = vmul.f32 %v301, 0.01
  %v350 = vmul.f32 %v302, 0.01
  %v351 = vmul.f32 %v303, 0.01
  %v352 = vmul.f32 %v304, 0.01
  %v353 = vmul.f32 %v305, 0.01
  %v354 = vmul.f32 %v306, 0.01
  %v355 = vmul.f32 %v307, 0.01
  %v356 = vmul.f32 %v308, 0.01
  %v357 = vmul.f32 %v309, 0.01
  %v358 = vmul.f32 %v310, 0.01
  %v359 = vmul.f32 %v311, 0.01
  %v360 = vmul.f32 %v312, 0.01
  %v361 = vsel %vm313, %v289, %v337
  %v362 = vsel %vm314, %v290, %v338
  %v363 = vsel %vm315, %v291, %v339
  %v364 = vsel %vm316, %v292, %v340
  %v365 = vsel %vm317, %v293, %v341
  %v366 = vsel %vm318, %v294, %v342
  %v367 = vsel %vm319, %v295, %v343
  %v368 = vsel %vm320, %v296, %v344
  %v369 = vsel %vm321, %v297, %v345
  %v370 = vsel %vm322, %v298, %v346
  %v371 = vsel %vm323, %v299, %v347
  %v372 = vsel %vm324, %v300, %v348
  %v373 = vsel %vm325, %v301, %v349
  %v374 = vsel %vm326, %v302, %v350
  %v375 = vsel %vm327, %v303, %v351
  %v376 = vsel %vm328, %v304, %v352
  %v377 = vsel %vm329, %v305, %v353
  %v378 = vsel %vm330, %v306, %v354
  %v379 = vsel %vm331, %v307, %v355
  %v380 = vsel %vm332, %v308, %v356
  %v381 = vsel %vm333, %v309, %v357
  %v382 = vsel %vm334, %v310, %v358
  %v383 = vsel %vm335, %v311, %v359
  %v384 = vsel %vm336, %v312, %v360
  %v409 = vlaneseq
  %v410 = vand.u32 %v409, 127
  %v411 = vperm.slane %v361, %v410
  %v412 = vperm.slane %v362, %v410
  %v413 = vperm.slane %v363, %v410
  %v414 = vperm.slane %v364, %v410
  %v415 = vperm.slane %v365, %v410
  %v416 = vperm.slane %v366, %v410
  %v417 = vperm.slane %v367, %v410
  %v418 = vperm.slane %v368, %v410
  %v419 = vperm.slane %v369, %v410
  %v420 = vperm.slane %v370, %v410
  %v421 = vperm.slane %v371, %v410
  %v422 = vperm.slane %v372, %v410
  %v423 = vperm.slane %v373, %v410
  %v424 = vperm.slane %v374, %v410
  %v425 = vperm.slane %v375, %v410
  %v426 = vperm.slane %v376, %v410
  %v427 = vperm.slane %v377, %v410
  %v428 = vperm.slane %v378, %v410
  %v429 = vperm.slane %v379, %v410
  %v430 = vperm.slane %v380, %v410
  %v431 = vperm.slane %v381, %v410
  %v432 = vperm.slane %v382, %v410
  %v433 = vperm.slane %v383, %v410
  %v434 = vperm.slane %v384, %v410
  %vm435 = vcmask 1041409
  %v436 = vsel %vm435, %v412, %v411
  %vm437 = vcmask 1042434
  %v438 = vsel %vm437, %v413, %v436
  %vm439 = vcmask 1043459
  %v440 = vsel %vm439, %v414, %v438
  %vm441 = vcmask 1044484
  %v442 = vsel %vm441, %v415, %v440
  %vm443 = vcmask 1045509
  %v444 = vsel %vm443, %v416, %v442
  %vm445 = vcmask 1046534
  %v446 = vsel %vm445, %v417, %v444
  %vm447 = vcmask 1047559
  %v448 = vsel %vm447, %v418, %v446
  %v449 = vsel %vm435, %v420, %v419
  %v450 = vsel %vm437, %v421, %v449
  %v451 = vsel %vm439, %v422, %v450
  %v452 = vsel %vm441, %v423, %v451
  %v453 = vsel %vm443, %v424, %v452
  %v454 = vsel %vm445, %v425, %v453
  %v455 = vsel %vm447, %v426, %v454
  %v456 = vsel %vm435, %v428, %v427
  %v457 = vsel %vm437, %v429, %v456
  %v458 = vsel %vm439, %v430, %v457
  %v459 = vsel %vm441, %v431, %v458
  %v460 = vsel %vm443, %v432, %v459
  %v461 = vsel %vm445, %v433, %v460
  %v462 = vsel %vm447, %v434, %v461
  %vm466 = vcmask 31744
  %v467 = vsel %vm466, %v448, -inf
  %468 = vmax.xlane.f32.xlu0 %v467
  %v469 = vpop.xlane.xlu0 %468
  %v470 = vsel %vm466, %v455, -inf
  %471 = vmax.xlane.f32.xlu0 %v470
  %v472 = vpop.xlane.xlu0 %471
  %v473 = vsel %vm466, %v462, -inf
  %474 = vmax.xlane.f32.xlu0 %v473
  %v475 = vpop.xlane.xlu0 %474
  %v479 = vperm.slane %v469, 0
  %v480 = vperm.slane %v469, 1
  %v481 = vperm.slane %v469, 2
  %v482 = vperm.slane %v469, 3
  %v483 = vperm.slane %v469, 4
  %v484 = vperm.slane %v469, 5
  %v485 = vperm.slane %v469, 6
  %v486 = vperm.slane %v469, 7
  %v487 = vperm.slane %v472, 0
  %v488 = vperm.slane %v472, 1
  %v489 = vperm.slane %v472, 2
  %v490 = vperm.slane %v472, 3
  %v491 = vperm.slane %v472, 4
  %v492 = vperm.slane %v472, 5
  %v493 = vperm.slane %v472, 6
  %v494 = vperm.slane %v472, 7
  %v495 = vperm.slane %v475, 0
  %v496 = vperm.slane %v475, 1
  %v497 = vperm.slane %v475, 2
  %v498 = vperm.slane %v475, 3
  %v499 = vperm.slane %v475, 4
  %v500 = vperm.slane %v475, 5
  %v501 = vperm.slane %v475, 6
  %v502 = vperm.slane %v475, 7
  %v527 = vsub.f32 %v361, %v479
  %v528 = vsub.f32 %v362, %v480
  %v529 = vsub.f32 %v363, %v481
  %v530 = vsub.f32 %v364, %v482
  %v531 = vsub.f32 %v365, %v483
  %v532 = vsub.f32 %v366, %v484
  %v533 = vsub.f32 %v367, %v485
  %v534 = vsub.f32 %v368, %v486
  %v535 = vsub.f32 %v369, %v487
  %v536 = vsub.f32 %v370, %v488
  %v537 = vsub.f32 %v371, %v489
  %v538 = vsub.f32 %v372, %v490
  %v539 = vsub.f32 %v373, %v491
  %v540 = vsub.f32 %v374, %v492
  %v541 = vsub.f32 %v375, %v493
  %v542 = vsub.f32 %v376, %v494
  %v543 = vsub.f32 %v377, %v495
  %v544 = vsub.f32 %v378, %v496
  %v545 = vsub.f32 %v379, %v497
  %v546 = vsub.f32 %v380, %v498
  %v547 = vsub.f32 %v381, %v499
  %v548 = vsub.f32 %v382, %v500
  %v549 = vsub.f32 %v383, %v501
  %v550 = vsub.f32 %v384, %v502
  %v551 = vmul.f32 %v527, 1.442695
  %v552 = vpow.pop %v551
  %v553 = vmul.f32 %v528, 1.442695
  %v554 = vpow.pop %v553
  %v555 = vmul.f32 %v529, 1.442695
  %v556 = vpow.pop %v555
  %v557 = vmul.f32 %v530, 1.442695
  %v558 = vpow.pop %v557
  %v559 = vmul.f32 %v531, 1.442695
  %v560 = vpow.pop %v559
  %v561 = vmul.f32 %v532, 1.442695
  %v562 = vpow.pop %v561
  %v563 = vmul.f32 %v533, 1.442695
  %v564 = vpow.pop %v563
  %v565 = vmul.f32 %v534, 1.442695
  %v566 = vpow.pop %v565
  %v567 = vmul.f32 %v535, 1.442695
  %v568 = vpow.pop %v567
  %v569 = vmul.f32 %v536, 1.442695
  %v570 = vpow.pop %v569
  %v571 = vmul.f32 %v537, 1.442695
  %v572 = vpow.pop %v571
  %v573 = vmul.f32 %v538, 1.442695
  %v574 = vpow.pop %v573
  %v575 = vmul.f32 %v539, 1.442695
  %v576 = vpow.pop %v575
  %v577 = vmul.f32 %v540, 1.442695
  %v578 = vpow.pop %v577
  %v579 = vmul.f32 %v541, 1.442695
  %v580 = vpow.pop %v579
  %v581 = vmul.f32 %v542, 1.442695
  %v582 = vpow.pop %v581
  %v583 = vmul.f32 %v543, 1.442695
  %v584 = vpow.pop %v583
  %v585 = vmul.f32 %v544, 1.442695
  %v586 = vpow.pop %v585
  %v587 = vmul.f32 %v545, 1.442695
  %v588 = vpow.pop %v587
  %v589 = vmul.f32 %v546, 1.442695
  %v590 = vpow.pop %v589
  %v591 = vmul.f32 %v547, 1.442695
  %v592 = vpow.pop %v591
  %v593 = vmul.f32 %v548, 1.442695
  %v594 = vpow.pop %v593
  %v595 = vmul.f32 %v549, 1.442695
  %v596 = vpow.pop %v595
  %v597 = vmul.f32 %v550, 1.442695
  %v598 = vpow.pop %v597
  %623 = vset.pattern.permute.xlu0 0
  %624 = vperm.xlu0 %623, %v552
  %v625 = vpop.permute.xlu0 %624
  %626 = vset.pattern.permute.xlu0 0
  %627 = vperm.xlu0 %626, %v554
  %v628 = vpop.permute.xlu0 %627
  %629 = vset.pattern.permute.xlu0 0
  %630 = vperm.xlu0 %629, %v556
  %v631 = vpop.permute.xlu0 %630
  %632 = vset.pattern.permute.xlu0 0
  %633 = vperm.xlu0 %632, %v558
  %v634 = vpop.permute.xlu0 %633
  %635 = vset.pattern.permute.xlu0 0
  %636 = vperm.xlu0 %635, %v560
  %v637 = vpop.permute.xlu0 %636
  %638 = vset.pattern.permute.xlu0 0
  %639 = vperm.xlu0 %638, %v562
  %v640 = vpop.permute.xlu0 %639
  %641 = vset.pattern.permute.xlu0 0
  %642 = vperm.xlu0 %641, %v564
  %v643 = vpop.permute.xlu0 %642
  %644 = vset.pattern.permute.xlu0 0
  %645 = vperm.xlu0 %644, %v566
  %v646 = vpop.permute.xlu0 %645
  %647 = vset.pattern.permute.xlu0 0
  %648 = vperm.xlu0 %647, %v568
  %v649 = vpop.permute.xlu0 %648
  %650 = vset.pattern.permute.xlu0 0
  %651 = vperm.xlu0 %650, %v570
  %v652 = vpop.permute.xlu0 %651
  %653 = vset.pattern.permute.xlu0 0
  %654 = vperm.xlu0 %653, %v572
  %v655 = vpop.permute.xlu0 %654
  %656 = vset.pattern.permute.xlu0 0
  %657 = vperm.xlu0 %656, %v574
  %v658 = vpop.permute.xlu0 %657
  %659 = vset.pattern.permute.xlu0 0
  %660 = vperm.xlu0 %659, %v576
  %v661 = vpop.permute.xlu0 %660
  %662 = vset.pattern.permute.xlu0 0
  %663 = vperm.xlu0 %662, %v578
  %v664 = vpop.permute.xlu0 %663
  %665 = vset.pattern.permute.xlu0 0
  %666 = vperm.xlu0 %665, %v580
  %v667 = vpop.permute.xlu0 %666
  %668 = vset.pattern.permute.xlu0 0
  %669 = vperm.xlu0 %668, %v582
  %v670 = vpop.permute.xlu0 %669
  %671 = vset.pattern.permute.xlu0 0
  %672 = vperm.xlu0 %671, %v584
  %v673 = vpop.permute.xlu0 %672
  %674 = vset.pattern.permute.xlu0 0
  %675 = vperm.xlu0 %674, %v586
  %v676 = vpop.permute.xlu0 %675
  %677 = vset.pattern.permute.xlu0 0
  %678 = vperm.xlu0 %677, %v588
  %v679 = vpop.permute.xlu0 %678
  %680 = vset.pattern.permute.xlu0 0
  %681 = vperm.xlu0 %680, %v590
  %v682 = vpop.permute.xlu0 %681
  %683 = vset.pattern.permute.xlu0 0
  %684 = vperm.xlu0 %683, %v592
  %v685 = vpop.permute.xlu0 %684
  %686 = vset.pattern.permute.xlu0 0
  %687 = vperm.xlu0 %686, %v594
  %v688 = vpop.permute.xlu0 %687
  %689 = vset.pattern.permute.xlu0 0
  %690 = vperm.xlu0 %689, %v596
  %v691 = vpop.permute.xlu0 %690
  %692 = vset.pattern.permute.xlu0 0
  %693 = vperm.xlu0 %692, %v598
  %v694 = vpop.permute.xlu0 %693
  %v695 = vperm.slane %v625, %v410
  %v696 = vperm.slane %v628, %v410
  %v697 = vperm.slane %v631, %v410
  %v698 = vperm.slane %v634, %v410
  %v699 = vperm.slane %v637, %v410
  %v700 = vperm.slane %v640, %v410
  %v701 = vperm.slane %v643, %v410
  %v702 = vperm.slane %v646, %v410
  %v703 = vperm.slane %v649, %v410
  %v704 = vperm.slane %v652, %v410
  %v705 = vperm.slane %v655, %v410
  %v706 = vperm.slane %v658, %v410
  %v707 = vperm.slane %v661, %v410
  %v708 = vperm.slane %v664, %v410
  %v709 = vperm.slane %v667, %v410
  %v710 = vperm.slane %v670, %v410
  %v711 = vperm.slane %v673, %v410
  %v712 = vperm.slane %v676, %v410
  %v713 = vperm.slane %v679, %v410
  %v714 = vperm.slane %v682, %v410
  %v715 = vperm.slane %v685, %v410
  %v716 = vperm.slane %v688, %v410
  %v717 = vperm.slane %v691, %v410
  %v718 = vperm.slane %v694, %v410
  %v719 = vsel %vm435, %v696, %v695
  %v720 = vsel %vm437, %v697, %v719
  %v721 = vsel %vm439, %v698, %v720
  %v722 = vsel %vm441, %v699, %v721
  %v723 = vsel %vm443, %v700, %v722
  %v724 = vsel %vm445, %v701, %v723
  %v725 = vsel %vm447, %v702, %v724
  %v726 = vsel %vm435, %v704, %v703
  %v727 = vsel %vm437, %v705, %v726
  %v728 = vsel %vm439, %v706, %v727
  %v729 = vsel %vm441, %v707, %v728
  %v730 = vsel %vm443, %v708, %v729
  %v731 = vsel %vm445, %v709, %v730
  %v732 = vsel %vm447, %v710, %v731
  %v733 = vsel %vm435, %v712, %v711
  %v734 = vsel %vm437, %v713, %v733
  %v735 = vsel %vm439, %v714, %v734
  %v736 = vsel %vm441, %v715, %v735
  %v737 = vsel %vm443, %v716, %v736
  %v738 = vsel %vm445, %v717, %v737
  %v739 = vsel %vm447, %v718, %v738
  %v743 = vsel %vm466, %v725, 0.0
  %744 = vadd.xlane.f32.xlu0 %v743
  %v745 = vpop.xlane.xlu0 %744
  %v746 = vsel %vm466, %v732, 0.0
  %747 = vadd.xlane.f32.xlu0 %v746
  %v748 = vpop.xlane.xlu0 %747
  %v749 = vsel %vm466, %v739, 0.0
  %750 = vadd.xlane.f32.xlu0 %v749
  %v751 = vpop.xlane.xlu0 %750
  %v755 = vperm.slane %v745, 0
  %v756 = vperm.slane %v745, 1
  %v757 = vperm.slane %v745, 2
  %v758 = vperm.slane %v745, 3
  %v759 = vperm.slane %v745, 4
  %v760 = vperm.slane %v745, 5
  %v761 = vperm.slane %v745, 6
  %v762 = vperm.slane %v745, 7
  %v763 = vperm.slane %v748, 0
  %v764 = vperm.slane %v748, 1
  %v765 = vperm.slane %v748, 2
  %v766 = vperm.slane %v748, 3
  %v767 = vperm.slane %v748, 4
  %v768 = vperm.slane %v748, 5
  %v769 = vperm.slane %v748, 6
  %v770 = vperm.slane %v748, 7
  %v771 = vperm.slane %v751, 0
  %v772 = vperm.slane %v751, 1
  %v773 = vperm.slane %v751, 2
  %v774 = vperm.slane %v751, 3
  %v775 = vperm.slane %v751, 4
  %v776 = vperm.slane %v751, 5
  %v777 = vperm.slane %v751, 6
  %v778 = vperm.slane %v751, 7
  %v803 = vrcp.pop %v755
  %v804 = vmul.f32 %v755, %v803
  %v805 = vsub.f32 1.0, %v804
  %v806 = vmul.f32 %v803, %v805
  %v807 = vadd.f32 %v803, %v806
  %vm808 = vweird.f32 %v755
  %vm809 = vweird.f32 %v803
  %vm810 = vmor %vm808, %vm809
  %v811 = vsel %vm810, %v803, %v807
  %v812 = vand.u32 2147483647, %v755
  %vm813 = vcmp.eq.f32.partialorder %v812, 8.507059e+37
  %v814 = vand.u32 %v755, 2147483648
  %v815 = vor.u32 1.1754944e-38, %v814
  %v816 = vsel %vm813, %v815, %v811
  %v817 = vmul.f32 %v552, %v816
  %v818 = vrcp.pop %v756
  %v819 = vmul.f32 %v756, %v818
  %v820 = vsub.f32 1.0, %v819
  %v821 = vmul.f32 %v818, %v820
  %v822 = vadd.f32 %v818, %v821
  %vm823 = vweird.f32 %v756
  %vm824 = vweird.f32 %v818
  %vm825 = vmor %vm823, %vm824
  %v826 = vsel %vm825, %v818, %v822
  %v827 = vand.u32 2147483647, %v756
  %vm828 = vcmp.eq.f32.partialorder %v827, 8.507059e+37
  %v829 = vand.u32 %v756, 2147483648
  %v830 = vor.u32 1.1754944e-38, %v829
  %v831 = vsel %vm828, %v830, %v826
  %v832 = vmul.f32 %v554, %v831
  %v833 = vrcp.pop %v757
  %v834 = vmul.f32 %v757, %v833
  %v835 = vsub.f32 1.0, %v834
  %v836 = vmul.f32 %v833, %v835
  %v837 = vadd.f32 %v833, %v836
  %vm838 = vweird.f32 %v757
  %vm839 = vweird.f32 %v833
  %vm840 = vmor %vm838, %vm839
  %v841 = vsel %vm840, %v833, %v837
  %v842 = vand.u32 2147483647, %v757
  %vm843 = vcmp.eq.f32.partialorder %v842, 8.507059e+37
  %v844 = vand.u32 %v757, 2147483648
  %v845 = vor.u32 1.1754944e-38, %v844
  %v846 = vsel %vm843, %v845, %v841
  %v847 = vmul.f32 %v556, %v846
  %v848 = vrcp.pop %v758
  %v849 = vmul.f32 %v758, %v848
  %v850 = vsub.f32 1.0, %v849
  %v851 = vmul.f32 %v848, %v850
  %v852 = vadd.f32 %v848, %v851
  %vm853 = vweird.f32 %v758
  %vm854 = vweird.f32 %v848
  %vm855 = vmor %vm853, %vm854
  %v856 = vsel %vm855, %v848, %v852
  %v857 = vand.u32 2147483647, %v758
  %vm858 = vcmp.eq.f32.partialorder %v857, 8.507059e+37
  %v859 = vand.u32 %v758, 2147483648
  %v860 = vor.u32 1.1754944e-38, %v859
  %v861 = vsel %vm858, %v860, %v856
  %v862 = vmul.f32 %v558, %v861
  %v863 = vrcp.pop %v759
  %v864 = vmul.f32 %v759, %v863
  %v865 = vsub.f32 1.0, %v864
  %v866 = vmul.f32 %v863, %v865
  %v867 = vadd.f32 %v863, %v866
  %vm868 = vweird.f32 %v759
  %vm869 = vweird.f32 %v863
  %vm870 = vmor %vm868, %vm869
  %v871 = vsel %vm870, %v863, %v867
  %v872 = vand.u32 2147483647, %v759
  %vm873 = vcmp.eq.f32.partialorder %v872, 8.507059e+37
  %v874 = vand.u32 %v759, 2147483648
  %v875 = vor.u32 1.1754944e-38, %v874
  %v876 = vsel %vm873, %v875, %v871
  %v877 = vmul.f32 %v560, %v876
  %v878 = vrcp.pop %v760
  %v879 = vmul.f32 %v760, %v878
  %v880 = vsub.f32 1.0, %v879
  %v881 = vmul.f32 %v878, %v880
  %v882 = vadd.f32 %v878, %v881
  %vm883 = vweird.f32 %v760
  %vm884 = vweird.f32 %v878
  %vm885 = vmor %vm883, %vm884
  %v886 = vsel %vm885, %v878, %v882
  %v887 = vand.u32 2147483647, %v760
  %vm888 = vcmp.eq.f32.partialorder %v887, 8.507059e+37
  %v889 = vand.u32 %v760, 2147483648
  %v890 = vor.u32 1.1754944e-38, %v889
  %v891 = vsel %vm888, %v890, %v886
  %v892 = vmul.f32 %v562, %v891
  %v893 = vrcp.pop %v761
  %v894 = vmul.f32 %v761, %v893
  %v895 = vsub.f32 1.0, %v894
  %v896 = vmul.f32 %v893, %v895
  %v897 = vadd.f32 %v893, %v896
  %vm898 = vweird.f32 %v761
  %vm899 = vweird.f32 %v893
  %vm900 = vmor %vm898, %vm899
  %v901 = vsel %vm900, %v893, %v897
  %v902 = vand.u32 2147483647, %v761
  %vm903 = vcmp.eq.f32.partialorder %v902, 8.507059e+37
  %v904 = vand.u32 %v761, 2147483648
  %v905 = vor.u32 1.1754944e-38, %v904
  %v906 = vsel %vm903, %v905, %v901
  %v907 = vmul.f32 %v564, %v906
  %v908 = vrcp.pop %v762
  %v909 = vmul.f32 %v762, %v908
  %v910 = vsub.f32 1.0, %v909
  %v911 = vmul.f32 %v908, %v910
  %v912 = vadd.f32 %v908, %v911
  %vm913 = vweird.f32 %v762
  %vm914 = vweird.f32 %v908
  %vm915 = vmor %vm913, %vm914
  %v916 = vsel %vm915, %v908, %v912
  %v917 = vand.u32 2147483647, %v762
  %vm918 = vcmp.eq.f32.partialorder %v917, 8.507059e+37
  %v919 = vand.u32 %v762, 2147483648
  %v920 = vor.u32 1.1754944e-38, %v919
  %v921 = vsel %vm918, %v920, %v916
  %v922 = vmul.f32 %v566, %v921
  %v923 = vrcp.pop %v763
  %v924 = vmul.f32 %v763, %v923
  %v925 = vsub.f32 1.0, %v924
  %v926 = vmul.f32 %v923, %v925
  %v927 = vadd.f32 %v923, %v926
  %vm928 = vweird.f32 %v763
  %vm929 = vweird.f32 %v923
  %vm930 = vmor %vm928, %vm929
  %v931 = vsel %vm930, %v923, %v927
  %v932 = vand.u32 2147483647, %v763
  %vm933 = vcmp.eq.f32.partialorder %v932, 8.507059e+37
  %v934 = vand.u32 %v763, 2147483648
  %v935 = vor.u32 1.1754944e-38, %v934
  %v936 = vsel %vm933, %v935, %v931
  %v937 = vmul.f32 %v568, %v936
  %v938 = vrcp.pop %v764
  %v939 = vmul.f32 %v764, %v938
  %v940 = vsub.f32 1.0, %v939
  %v941 = vmul.f32 %v938, %v940
  %v942 = vadd.f32 %v938, %v941
  %vm943 = vweird.f32 %v764
  %vm944 = vweird.f32 %v938
  %vm945 = vmor %vm943, %vm944
  %v946 = vsel %vm945, %v938, %v942
  %v947 = vand.u32 2147483647, %v764
  %vm948 = vcmp.eq.f32.partialorder %v947, 8.507059e+37
  %v949 = vand.u32 %v764, 2147483648
  %v950 = vor.u32 1.1754944e-38, %v949
  %v951 = vsel %vm948, %v950, %v946
  %v952 = vmul.f32 %v570, %v951
  %v953 = vrcp.pop %v765
  %v954 = vmul.f32 %v765, %v953
  %v955 = vsub.f32 1.0, %v954
  %v956 = vmul.f32 %v953, %v955
  %v957 = vadd.f32 %v953, %v956
  %vm958 = vweird.f32 %v765
  %vm959 = vweird.f32 %v953
  %vm960 = vmor %vm958, %vm959
  %v961 = vsel %vm960, %v953, %v957
  %v962 = vand.u32 2147483647, %v765
  %vm963 = vcmp.eq.f32.partialorder %v962, 8.507059e+37
  %v964 = vand.u32 %v765, 2147483648
  %v965 = vor.u32 1.1754944e-38, %v964
  %v966 = vsel %vm963, %v965, %v961
  %v967 = vmul.f32 %v572, %v966
  %v968 = vrcp.pop %v766
  %v969 = vmul.f32 %v766, %v968
  %v970 = vsub.f32 1.0, %v969
  %v971 = vmul.f32 %v968, %v970
  %v972 = vadd.f32 %v968, %v971
  %vm973 = vweird.f32 %v766
  %vm974 = vweird.f32 %v968
  %vm975 = vmor %vm973, %vm974
  %v976 = vsel %vm975, %v968, %v972
  %v977 = vand.u32 2147483647, %v766
  %vm978 = vcmp.eq.f32.partialorder %v977, 8.507059e+37
  %v979 = vand.u32 %v766, 2147483648
  %v980 = vor.u32 1.1754944e-38, %v979
  %v981 = vsel %vm978, %v980, %v976
  %v982 = vmul.f32 %v574, %v981
  %v983 = vrcp.pop %v767
  %v984 = vmul.f32 %v767, %v983
  %v985 = vsub.f32 1.0, %v984
  %v986 = vmul.f32 %v983, %v985
  %v987 = vadd.f32 %v983, %v986
  %vm988 = vweird.f32 %v767
  %vm989 = vweird.f32 %v983
  %vm990 = vmor %vm988, %vm989
  %v991 = vsel %vm990, %v983, %v987
  %v992 = vand.u32 2147483647, %v767
  %vm993 = vcmp.eq.f32.partialorder %v992, 8.507059e+37
  %v994 = vand.u32 %v767, 2147483648
  %v995 = vor.u32 1.1754944e-38, %v994
  %v996 = vsel %vm993, %v995, %v991
  %v997 = vmul.f32 %v576, %v996
  %v998 = vrcp.pop %v768
  %v999 = vmul.f32 %v768, %v998
  %v1000 = vsub.f32 1.0, %v999
  %v1001 = vmul.f32 %v998, %v1000
  %v1002 = vadd.f32 %v998, %v1001
  %vm1003 = vweird.f32 %v768
  %vm1004 = vweird.f32 %v998
  %vm1005 = vmor %vm1003, %vm1004
  %v1006 = vsel %vm1005, %v998, %v1002
  %v1007 = vand.u32 2147483647, %v768
  %vm1008 = vcmp.eq.f32.partialorder %v1007, 8.507059e+37
  %v1009 = vand.u32 %v768, 2147483648
  %v1010 = vor.u32 1.1754944e-38, %v1009
  %v1011 = vsel %vm1008, %v1010, %v1006
  %v1012 = vmul.f32 %v578, %v1011
  %v1013 = vrcp.pop %v769
  %v1014 = vmul.f32 %v769, %v1013
  %v1015 = vsub.f32 1.0, %v1014
  %v1016 = vmul.f32 %v1013, %v1015
  %v1017 = vadd.f32 %v1013, %v1016
  %vm1018 = vweird.f32 %v769
  %vm1019 = vweird.f32 %v1013
  %vm1020 = vmor %vm1018, %vm1019
  %v1021 = vsel %vm1020, %v1013, %v1017
  %v1022 = vand.u32 2147483647, %v769
  %vm1023 = vcmp.eq.f32.partialorder %v1022, 8.507059e+37
  %v1024 = vand.u32 %v769, 2147483648
  %v1025 = vor.u32 1.1754944e-38, %v1024
  %v1026 = vsel %vm1023, %v1025, %v1021
  %v1027 = vmul.f32 %v580, %v1026
  %v1028 = vrcp.pop %v770
  %v1029 = vmul.f32 %v770, %v1028
  %v1030 = vsub.f32 1.0, %v1029
  %v1031 = vmul.f32 %v1028, %v1030
  %v1032 = vadd.f32 %v1028, %v1031
  %vm1033 = vweird.f32 %v770
  %vm1034 = vweird.f32 %v1028
  %vm1035 = vmor %vm1033, %vm1034
  %v1036 = vsel %vm1035, %v1028, %v1032
  %v1037 = vand.u32 2147483647, %v770
  %vm1038 = vcmp.eq.f32.partialorder %v1037, 8.507059e+37
  %v1039 = vand.u32 %v770, 2147483648
  %v1040 = vor.u32 1.1754944e-38, %v1039
  %v1041 = vsel %vm1038, %v1040, %v1036
  %v1042 = vmul.f32 %v582, %v1041
  %v1043 = vrcp.pop %v771
  %v1044 = vmul.f32 %v771, %v1043
  %v1045 = vsub.f32 1.0, %v1044
  %v1046 = vmul.f32 %v1043, %v1045
  %v1047 = vadd.f32 %v1043, %v1046
  %vm1048 = vweird.f32 %v771
  %vm1049 = vweird.f32 %v1043
  %vm1050 = vmor %vm1048, %vm1049
  %v1051 = vsel %vm1050, %v1043, %v1047
  %v1052 = vand.u32 2147483647, %v771
  %vm1053 = vcmp.eq.f32.partialorder %v1052, 8.507059e+37
  %v1054 = vand.u32 %v771, 2147483648
  %v1055 = vor.u32 1.1754944e-38, %v1054
  %v1056 = vsel %vm1053, %v1055, %v1051
  %v1057 = vmul.f32 %v584, %v1056
  %v1058 = vrcp.pop %v772
  %v1059 = vmul.f32 %v772, %v1058
  %v1060 = vsub.f32 1.0, %v1059
  %v1061 = vmul.f32 %v1058, %v1060
  %v1062 = vadd.f32 %v1058, %v1061
  %vm1063 = vweird.f32 %v772
  %vm1064 = vweird.f32 %v1058
  %vm1065 = vmor %vm1063, %vm1064
  %v1066 = vsel %vm1065, %v1058, %v1062
  %v1067 = vand.u32 2147483647, %v772
  %vm1068 = vcmp.eq.f32.partialorder %v1067, 8.507059e+37
  %v1069 = vand.u32 %v772, 2147483648
  %v1070 = vor.u32 1.1754944e-38, %v1069
  %v1071 = vsel %vm1068, %v1070, %v1066
  %v1072 = vmul.f32 %v586, %v1071
  %v1073 = vrcp.pop %v773
  %v1074 = vmul.f32 %v773, %v1073
  %v1075 = vsub.f32 1.0, %v1074
  %v1076 = vmul.f32 %v1073, %v1075
  %v1077 = vadd.f32 %v1073, %v1076
  %vm1078 = vweird.f32 %v773
  %vm1079 = vweird.f32 %v1073
  %vm1080 = vmor %vm1078, %vm1079
  %v1081 = vsel %vm1080, %v1073, %v1077
  %v1082 = vand.u32 2147483647, %v773
  %vm1083 = vcmp.eq.f32.partialorder %v1082, 8.507059e+37
  %v1084 = vand.u32 %v773, 2147483648
  %v1085 = vor.u32 1.1754944e-38, %v1084
  %v1086 = vsel %vm1083, %v1085, %v1081
  %v1087 = vmul.f32 %v588, %v1086
  %v1088 = vrcp.pop %v774
  %v1089 = vmul.f32 %v774, %v1088
  %v1090 = vsub.f32 1.0, %v1089
  %v1091 = vmul.f32 %v1088, %v1090
  %v1092 = vadd.f32 %v1088, %v1091
  %vm1093 = vweird.f32 %v774
  %vm1094 = vweird.f32 %v1088
  %vm1095 = vmor %vm1093, %vm1094
  %v1096 = vsel %vm1095, %v1088, %v1092
  %v1097 = vand.u32 2147483647, %v774
  %vm1098 = vcmp.eq.f32.partialorder %v1097, 8.507059e+37
  %v1099 = vand.u32 %v774, 2147483648
  %v1100 = vor.u32 1.1754944e-38, %v1099
  %v1101 = vsel %vm1098, %v1100, %v1096
  %v1102 = vmul.f32 %v590, %v1101
  %v1103 = vrcp.pop %v775
  %v1104 = vmul.f32 %v775, %v1103
  %v1105 = vsub.f32 1.0, %v1104
  %v1106 = vmul.f32 %v1103, %v1105
  %v1107 = vadd.f32 %v1103, %v1106
  %vm1108 = vweird.f32 %v775
  %vm1109 = vweird.f32 %v1103
  %vm1110 = vmor %vm1108, %vm1109
  %v1111 = vsel %vm1110, %v1103, %v1107
  %v1112 = vand.u32 2147483647, %v775
  %vm1113 = vcmp.eq.f32.partialorder %v1112, 8.507059e+37
  %v1114 = vand.u32 %v775, 2147483648
  %v1115 = vor.u32 1.1754944e-38, %v1114
  %v1116 = vsel %vm1113, %v1115, %v1111
  %v1117 = vmul.f32 %v592, %v1116
  %v1118 = vrcp.pop %v776
  %v1119 = vmul.f32 %v776, %v1118
  %v1120 = vsub.f32 1.0, %v1119
  %v1121 = vmul.f32 %v1118, %v1120
  %v1122 = vadd.f32 %v1118, %v1121
  %vm1123 = vweird.f32 %v776
  %vm1124 = vweird.f32 %v1118
  %vm1125 = vmor %vm1123, %vm1124
  %v1126 = vsel %vm1125, %v1118, %v1122
  %v1127 = vand.u32 2147483647, %v776
  %vm1128 = vcmp.eq.f32.partialorder %v1127, 8.507059e+37
  %v1129 = vand.u32 %v776, 2147483648
  %v1130 = vor.u32 1.1754944e-38, %v1129
  %v1131 = vsel %vm1128, %v1130, %v1126
  %v1132 = vmul.f32 %v594, %v1131
  %v1133 = vrcp.pop %v777
  %v1134 = vmul.f32 %v777, %v1133
  %v1135 = vsub.f32 1.0, %v1134
  %v1136 = vmul.f32 %v1133, %v1135
  %v1137 = vadd.f32 %v1133, %v1136
  %vm1138 = vweird.f32 %v777
  %vm1139 = vweird.f32 %v1133
  %vm1140 = vmor %vm1138, %vm1139
  %v1141 = vsel %vm1140, %v1133, %v1137
  %v1142 = vand.u32 2147483647, %v777
  %vm1143 = vcmp.eq.f32.partialorder %v1142, 8.507059e+37
  %v1144 = vand.u32 %v777, 2147483648
  %v1145 = vor.u32 1.1754944e-38, %v1144
  %v1146 = vsel %vm1143, %v1145, %v1141
  %v1147 = vmul.f32 %v596, %v1146
  %v1148 = vrcp.pop %v778
  %v1149 = vmul.f32 %v778, %v1148
  %v1150 = vsub.f32 1.0, %v1149
  %v1151 = vmul.f32 %v1148, %v1150
  %v1152 = vadd.f32 %v1148, %v1151
  %vm1153 = vweird.f32 %v778
  %vm1154 = vweird.f32 %v1148
  %vm1155 = vmor %vm1153, %vm1154
  %v1156 = vsel %vm1155, %v1148, %v1152
  %v1157 = vand.u32 2147483647, %v778
  %vm1158 = vcmp.eq.f32.partialorder %v1157, 8.507059e+37
  %v1159 = vand.u32 %v778, 2147483648
  %v1160 = vor.u32 1.1754944e-38, %v1159
  %v1161 = vsel %vm1158, %v1160, %v1156
  %v1162 = vmul.f32 %v598, %v1161
  %vm1163 = vcmp.eq.f32.partialorder %v817, 0.25
  %vm1164 = vcmp.eq.f32.partialorder %v832, 0.25
  %vm1165 = vcmp.eq.f32.partialorder %v847, 0.25
  %vm1166 = vcmp.eq.f32.partialorder %v862, 0.25
  %vm1167 = vcmp.eq.f32.partialorder %v877, 0.25
  %vm1168 = vcmp.eq.f32.partialorder %v892, 0.25
  %vm1169 = vcmp.eq.f32.partialorder %v907, 0.25
  %vm1170 = vcmp.eq.f32.partialorder %v922, 0.25
  %vm1171 = vcmp.eq.f32.partialorder %v937, 0.25
  %vm1172 = vcmp.eq.f32.partialorder %v952, 0.25
  %vm1173 = vcmp.eq.f32.partialorder %v967, 0.25
  %vm1174 = vcmp.eq.f32.partialorder %v982, 0.25
  %vm1175 = vcmp.eq.f32.partialorder %v997, 0.25
  %vm1176 = vcmp.eq.f32.partialorder %v1012, 0.25
  %vm1177 = vcmp.eq.f32.partialorder %v1027, 0.25
  %vm1178 = vcmp.eq.f32.partialorder %v1042, 0.25
  %vm1179 = vcmp.eq.f32.partialorder %v1057, 0.25
  %vm1180 = vcmp.eq.f32.partialorder %v1072, 0.25
  %vm1181 = vcmp.eq.f32.partialorder %v1087, 0.25
  %vm1182 = vcmp.eq.f32.partialorder %v1102, 0.25
  %vm1183 = vcmp.eq.f32.partialorder %v1117, 0.25
  %vm1184 = vcmp.eq.f32.partialorder %v1132, 0.25
  %vm1185 = vcmp.eq.f32.partialorder %v1147, 0.25
  %vm1186 = vcmp.eq.f32.partialorder %v1162, 0.25
  %v1187 = vsel %vm1163, 0.0, %v817
  %v1188 = vsel %vm1164, 0.0, %v832
  %v1189 = vsel %vm1165, 0.0, %v847
  %v1190 = vsel %vm1166, 0.0, %v862
  %v1191 = vsel %vm1167, 0.0, %v877
  %v1192 = vsel %vm1168, 0.0, %v892
  %v1193 = vsel %vm1169, 0.0, %v907
  %v1194 = vsel %vm1170, 0.0, %v922
  %v1195 = vsel %vm1171, 0.0, %v937
  %v1196 = vsel %vm1172, 0.0, %v952
  %v1197 = vsel %vm1173, 0.0, %v967
  %v1198 = vsel %vm1174, 0.0, %v982
  %v1199 = vsel %vm1175, 0.0, %v997
  %v1200 = vsel %vm1176, 0.0, %v1012
  %v1201 = vsel %vm1177, 0.0, %v1027
  %v1202 = vsel %vm1178, 0.0, %v1042
  %v1203 = vsel %vm1179, 0.0, %v1057
  %v1204 = vsel %vm1180, 0.0, %v1072
  %v1205 = vsel %vm1181, 0.0, %v1087
  %v1206 = vsel %vm1182, 0.0, %v1102
  %v1207 = vsel %vm1183, 0.0, %v1117
  %v1208 = vsel %vm1184, 0.0, %v1132
  %v1209 = vsel %vm1185, 0.0, %v1147
  %v1210 = vsel %vm1186, 0.0, %v1162
  %1212 = vset.pattern.permute.xlu0 0
  %1213 = vperm.xlu0 %1212, %v1187
  %v1214 = vpop.permute.xlu0 %1213
  %1217 = vset.pattern.permute.xlu0 0
  %1218 = vperm.xlu0 %1217, %v1188
  %v1219 = vpop.permute.xlu0 %1218
  %1222 = vset.pattern.permute.xlu0 0
  %1223 = vperm.xlu0 %1222, %v1189
  %v1224 = vpop.permute.xlu0 %1223
  %1227 = vset.pattern.permute.xlu0 0
  %1228 = vperm.xlu0 %1227, %v1190
  %v1229 = vpop.permute.xlu0 %1228
  %1232 = vset.pattern.permute.xlu0 0
  %1233 = vperm.xlu0 %1232, %v1191
  %v1234 = vpop.permute.xlu0 %1233
  %1237 = vset.pattern.permute.xlu0 0
  %1238 = vperm.xlu0 %1237, %v1192
  %v1239 = vpop.permute.xlu0 %1238
  %1242 = vset.pattern.permute.xlu0 0
  %1243 = vperm.xlu0 %1242, %v1193
  %v1244 = vpop.permute.xlu0 %1243
  %1247 = vset.pattern.permute.xlu0 0
  %1248 = vperm.xlu0 %1247, %v1194
  %v1249 = vpop.permute.xlu0 %1248
  %1252 = vset.pattern.permute.xlu0 0
  %1253 = vperm.xlu0 %1252, %v1195
  %v1254 = vpop.permute.xlu0 %1253
  %1257 = vset.pattern.permute.xlu0 0
  %1258 = vperm.xlu0 %1257, %v1196
  %v1259 = vpop.permute.xlu0 %1258
  %1262 = vset.pattern.permute.xlu0 0
  %1263 = vperm.xlu0 %1262, %v1197
  %v1264 = vpop.permute.xlu0 %1263
  %1267 = vset.pattern.permute.xlu0 0
  %1268 = vperm.xlu0 %1267, %v1198
  %v1269 = vpop.permute.xlu0 %1268
  %1272 = vset.pattern.permute.xlu0 0
  %1273 = vperm.xlu0 %1272, %v1199
  %v1274 = vpop.permute.xlu0 %1273
  %1277 = vset.pattern.permute.xlu0 0
  %1278 = vperm.xlu0 %1277, %v1200
  %v1279 = vpop.permute.xlu0 %1278
  %1282 = vset.pattern.permute.xlu0 0
  %1283 = vperm.xlu0 %1282, %v1201
  %v1284 = vpop.permute.xlu0 %1283
  %1287 = vset.pattern.permute.xlu0 0
  %1288 = vperm.xlu0 %1287, %v1202
  %v1289 = vpop.permute.xlu0 %1288
  %1292 = vset.pattern.permute.xlu0 0
  %1293 = vperm.xlu0 %1292, %v1203
  %v1294 = vpop.permute.xlu0 %1293
  %1297 = vset.pattern.permute.xlu0 0
  %1298 = vperm.xlu0 %1297, %v1204
  %v1299 = vpop.permute.xlu0 %1298
  %1302 = vset.pattern.permute.xlu0 0
  %1303 = vperm.xlu0 %1302, %v1205
  %v1304 = vpop.permute.xlu0 %1303
  %1307 = vset.pattern.permute.xlu0 0
  %1308 = vperm.xlu0 %1307, %v1206
  %v1309 = vpop.permute.xlu0 %1308
  %1312 = vset.pattern.permute.xlu0 0
  %1313 = vperm.xlu0 %1312, %v1207
  %v1314 = vpop.permute.xlu0 %1313
  %1317 = vset.pattern.permute.xlu0 0
  %1318 = vperm.xlu0 %1317, %v1208
  %v1319 = vpop.permute.xlu0 %1318
  %1322 = vset.pattern.permute.xlu0 0
  %1323 = vperm.xlu0 %1322, %v1209
  %v1324 = vpop.permute.xlu0 %1323
  %1327 = vset.pattern.permute.xlu0 0
  %1328 = vperm.xlu0 %1327, %v1210
  %v1329 = vpop.permute.xlu0 %1328
  %v1331 = vmul.f32 %v1214, %v41
  %v1332 = vmul.f32 %v1219, %v42
  %v1333 = vmul.f32 %v1224, %v43
  %v1334 = vmul.f32 %v1229, %v44
  %v1335 = vmul.f32 %v1234, %v45
  %v1336 = vmul.f32 %v1239, %v46
  %v1337 = vmul.f32 %v1244, %v47
  %v1338 = vmul.f32 %v1249, %v48
  %v1339 = vmul.f32 %v1254, %v49
  %v1340 = vmul.f32 %v1259, %v50
  %v1341 = vmul.f32 %v1264, %v51
  %v1342 = vmul.f32 %v1269, %v52
  %v1343 = vmul.f32 %v1274, %v53
  %v1344 = vmul.f32 %v1279, %v54
  %v1345 = vmul.f32 %v1284, %v55
  %v1346 = vmul.f32 %v1289, %v56
  %v1347 = vmul.f32 %v1294, %v57
  %v1348 = vmul.f32 %v1299, %v58
  %v1349 = vmul.f32 %v1304, %v59
  %v1350 = vmul.f32 %v1309, %v60
  %v1351 = vmul.f32 %v1314, %v61
  %v1352 = vmul.f32 %v1319, %v62
  %v1353 = vmul.f32 %v1324, %v63
  %v1354 = vmul.f32 %v1329, %v64
  %v1355 = vsel %vm161, %v1331, 0.0
  %v1356 = vrot.slane %v1355, 4
  %v1357 = vadd.f32 %v1355, %v1356
  %v1358 = vrot.slane %v1357, 2
  %v1359 = vadd.f32 %v1357, %v1358
  %v1360 = vrot.slane %v1359, 1
  %v1361 = vadd.f32 %v1359, %v1360
  %v1362 = vsel %vm161, %v1332, 0.0
  %v1363 = vrot.slane %v1362, 4
  %v1364 = vadd.f32 %v1362, %v1363
  %v1365 = vrot.slane %v1364, 2
  %v1366 = vadd.f32 %v1364, %v1365
  %v1367 = vrot.slane %v1366, 1
  %v1368 = vadd.f32 %v1366, %v1367
  %v1369 = vsel %vm161, %v1333, 0.0
  %v1370 = vrot.slane %v1369, 4
  %v1371 = vadd.f32 %v1369, %v1370
  %v1372 = vrot.slane %v1371, 2
  %v1373 = vadd.f32 %v1371, %v1372
  %v1374 = vrot.slane %v1373, 1
  %v1375 = vadd.f32 %v1373, %v1374
  %v1376 = vsel %vm161, %v1334, 0.0
  %v1377 = vrot.slane %v1376, 4
  %v1378 = vadd.f32 %v1376, %v1377
  %v1379 = vrot.slane %v1378, 2
  %v1380 = vadd.f32 %v1378, %v1379
  %v1381 = vrot.slane %v1380, 1
  %v1382 = vadd.f32 %v1380, %v1381
  %v1383 = vsel %vm161, %v1335, 0.0
  %v1384 = vrot.slane %v1383, 4
  %v1385 = vadd.f32 %v1383, %v1384
  %v1386 = vrot.slane %v1385, 2
  %v1387 = vadd.f32 %v1385, %v1386
  %v1388 = vrot.slane %v1387, 1
  %v1389 = vadd.f32 %v1387, %v1388
  %v1390 = vsel %vm161, %v1336, 0.0
  %v1391 = vrot.slane %v1390, 4
  %v1392 = vadd.f32 %v1390, %v1391
  %v1393 = vrot.slane %v1392, 2
  %v1394 = vadd.f32 %v1392, %v1393
  %v1395 = vrot.slane %v1394, 1
  %v1396 = vadd.f32 %v1394, %v1395
  %v1397 = vsel %vm161, %v1337, 0.0
  %v1398 = vrot.slane %v1397, 4
  %v1399 = vadd.f32 %v1397, %v1398
  %v1400 = vrot.slane %v1399, 2
  %v1401 = vadd.f32 %v1399, %v1400
  %v1402 = vrot.slane %v1401, 1
  %v1403 = vadd.f32 %v1401, %v1402
  %v1404 = vsel %vm161, %v1338, 0.0
  %v1405 = vrot.slane %v1404, 4
  %v1406 = vadd.f32 %v1404, %v1405
  %v1407 = vrot.slane %v1406, 2
  %v1408 = vadd.f32 %v1406, %v1407
  %v1409 = vrot.slane %v1408, 1
  %v1410 = vadd.f32 %v1408, %v1409
  %v1411 = vsel %vm161, %v1339, 0.0
  %v1412 = vrot.slane %v1411, 4
  %v1413 = vadd.f32 %v1411, %v1412
  %v1414 = vrot.slane %v1413, 2
  %v1415 = vadd.f32 %v1413, %v1414
  %v1416 = vrot.slane %v1415, 1
  %v1417 = vadd.f32 %v1415, %v1416
  %v1418 = vsel %vm161, %v1340, 0.0
  %v1419 = vrot.slane %v1418, 4
  %v1420 = vadd.f32 %v1418, %v1419
  %v1421 = vrot.slane %v1420, 2
  %v1422 = vadd.f32 %v1420, %v1421
  %v1423 = vrot.slane %v1422, 1
  %v1424 = vadd.f32 %v1422, %v1423
  %v1425 = vsel %vm161, %v1341, 0.0
  %v1426 = vrot.slane %v1425, 4
  %v1427 = vadd.f32 %v1425, %v1426
  %v1428 = vrot.slane %v1427, 2
  %v1429 = vadd.f32 %v1427, %v1428
  %v1430 = vrot.slane %v1429, 1
  %v1431 = vadd.f32 %v1429, %v1430
  %v1432 = vsel %vm161, %v1342, 0.0
  %v1433 = vrot.slane %v1432, 4
  %v1434 = vadd.f32 %v1432, %v1433
  %v1435 = vrot.slane %v1434, 2
  %v1436 = vadd.f32 %v1434, %v1435
  %v1437 = vrot.slane %v1436, 1
  %v1438 = vadd.f32 %v1436, %v1437
  %v1439 = vsel %vm161, %v1343, 0.0
  %v1440 = vrot.slane %v1439, 4
  %v1441 = vadd.f32 %v1439, %v1440
  %v1442 = vrot.slane %v1441, 2
  %v1443 = vadd.f32 %v1441, %v1442
  %v1444 = vrot.slane %v1443, 1
  %v1445 = vadd.f32 %v1443, %v1444
  %v1446 = vsel %vm161, %v1344, 0.0
  %v1447 = vrot.slane %v1446, 4
  %v1448 = vadd.f32 %v1446, %v1447
  %v1449 = vrot.slane %v1448, 2
  %v1450 = vadd.f32 %v1448, %v1449
  %v1451 = vrot.slane %v1450, 1
  %v1452 = vadd.f32 %v1450, %v1451
  %v1453 = vsel %vm161, %v1345, 0.0
  %v1454 = vrot.slane %v1453, 4
  %v1455 = vadd.f32 %v1453, %v1454
  %v1456 = vrot.slane %v1455, 2
  %v1457 = vadd.f32 %v1455, %v1456
  %v1458 = vrot.slane %v1457, 1
  %v1459 = vadd.f32 %v1457, %v1458
  %v1460 = vsel %vm161, %v1346, 0.0
  %v1461 = vrot.slane %v1460, 4
  %v1462 = vadd.f32 %v1460, %v1461
  %v1463 = vrot.slane %v1462, 2
  %v1464 = vadd.f32 %v1462, %v1463
  %v1465 = vrot.slane %v1464, 1
  %v1466 = vadd.f32 %v1464, %v1465
  %v1467 = vsel %vm161, %v1347, 0.0
  %v1468 = vrot.slane %v1467, 4
  %v1469 = vadd.f32 %v1467, %v1468
  %v1470 = vrot.slane %v1469, 2
  %v1471 = vadd.f32 %v1469, %v1470
  %v1472 = vrot.slane %v1471, 1
  %v1473 = vadd.f32 %v1471, %v1472
  %v1474 = vsel %vm161, %v1348, 0.0
  %v1475 = vrot.slane %v1474, 4
  %v1476 = vadd.f32 %v1474, %v1475
  %v1477 = vrot.slane %v1476, 2
  %v1478 = vadd.f32 %v1476, %v1477
  %v1479 = vrot.slane %v1478, 1
  %v1480 = vadd.f32 %v1478, %v1479
  %v1481 = vsel %vm161, %v1349, 0.0
  %v1482 = vrot.slane %v1481, 4
  %v1483 = vadd.f32 %v1481, %v1482
  %v1484 = vrot.slane %v1483, 2
  %v1485 = vadd.f32 %v1483, %v1484
  %v1486 = vrot.slane %v1485, 1
  %v1487 = vadd.f32 %v1485, %v1486
  %v1488 = vsel %vm161, %v1350, 0.0
  %v1489 = vrot.slane %v1488, 4
  %v1490 = vadd.f32 %v1488, %v1489
  %v1491 = vrot.slane %v1490, 2
  %v1492 = vadd.f32 %v1490, %v1491
  %v1493 = vrot.slane %v1492, 1
  %v1494 = vadd.f32 %v1492, %v1493
  %v1495 = vsel %vm161, %v1351, 0.0
  %v1496 = vrot.slane %v1495, 4
  %v1497 = vadd.f32 %v1495, %v1496
  %v1498 = vrot.slane %v1497, 2
  %v1499 = vadd.f32 %v1497, %v1498
  %v1500 = vrot.slane %v1499, 1
  %v1501 = vadd.f32 %v1499, %v1500
  %v1502 = vsel %vm161, %v1352, 0.0
  %v1503 = vrot.slane %v1502, 4
  %v1504 = vadd.f32 %v1502, %v1503
  %v1505 = vrot.slane %v1504, 2
  %v1506 = vadd.f32 %v1504, %v1505
  %v1507 = vrot.slane %v1506, 1
  %v1508 = vadd.f32 %v1506, %v1507
  %v1509 = vsel %vm161, %v1353, 0.0
  %v1510 = vrot.slane %v1509, 4
  %v1511 = vadd.f32 %v1509, %v1510
  %v1512 = vrot.slane %v1511, 2
  %v1513 = vadd.f32 %v1511, %v1512
  %v1514 = vrot.slane %v1513, 1
  %v1515 = vadd.f32 %v1513, %v1514
  %v1516 = vsel %vm161, %v1354, 0.0
  %v1517 = vrot.slane %v1516, 4
  %v1518 = vadd.f32 %v1516, %v1517
  %v1519 = vrot.slane %v1518, 2
  %v1520 = vadd.f32 %v1518, %v1519
  %v1521 = vrot.slane %v1520, 1
  %v1522 = vadd.f32 %v1520, %v1521
  %v1547 = vsel %vm435, %v1368, %v1361
  %v1548 = vsel %vm437, %v1375, %v1547
  %v1549 = vsel %vm439, %v1382, %v1548
  %v1550 = vsel %vm441, %v1389, %v1549
  %v1551 = vsel %vm443, %v1396, %v1550
  %v1552 = vsel %vm445, %v1403, %v1551
  %v1553 = vsel %vm447, %v1410, %v1552
  %v1554 = vsel %vm435, %v1424, %v1417
  %v1555 = vsel %vm437, %v1431, %v1554
  %v1556 = vsel %vm439, %v1438, %v1555
  %v1557 = vsel %vm441, %v1445, %v1556
  %v1558 = vsel %vm443, %v1452, %v1557
  %v1559 = vsel %vm445, %v1459, %v1558
  %v1560 = vsel %vm447, %v1466, %v1559
  %v1561 = vsel %vm435, %v1480, %v1473
  %v1562 = vsel %vm437, %v1487, %v1561
  %v1563 = vsel %vm439, %v1494, %v1562
  %v1564 = vsel %vm441, %v1501, %v1563
  %v1565 = vsel %vm443, %v1508, %v1564
  %v1566 = vsel %vm445, %v1515, %v1565
  %v1567 = vsel %vm447, %v1522, %v1566
  %vm1571 = vcmask 64512
  %1572 = vst.msk [vmem:[%s3] sm:$0xff] %vm1571, %v1553
  %1573 = vst.msk [vmem:[%s3 + $0x8] sm:$0xff] %vm1571, %v1560
  %1574 = vst.msk [vmem:[%s3 + $0x10] sm:$0xff] %vm1571, %v1567
  // Predicated region
  $region14: #{_lambda_.32} parent=0 // pred_check
    _
  $region15: #{_lambda_.32} parent=0 // pred_check_branch
    %1576 = sbr.rel (0) target = $region17
  $region16: #{_lambda_.32} parent=0 // pred_region
    _
  $region17: #{_lambda_.32} parent=0 // pred_fallthru
    _
  // Predicated region
  $region18: #{_lambda_.32} parent=0 // pred_check
    _
  $region19: #{_lambda_.32} parent=0 // pred_check_branch
    %1578 = sbr.rel (0) target = $region21
  $region20: #{_lambda_.32} parent=0 // pred_region
    _
  $region21: #{_lambda_.32} parent=0 // pred_fallthru
    _

// kernel: _lambda_.40
$region0: #{_lambda_.40}
  #allocation0 [shape = 'u32[]', space=smem, size = 0x4, offset = 0x4, fixed_abs, tag = 'smem constant byte address 0x4 - core index']
  #allocation1 [shape = 'u32[72,128]{1,0:T(1,128)}', space=vmem, size = 0x9000, scoped, tag = 'internal scratch']
  %s0 = inlined_call_operand.vmem [shape: bf16[16,32], index: 0, kind: input, shape index: {}]
  %s1 = inlined_call_operand.vmem [shape: bf16[32,64], index: 1, kind: input, shape index: {}]
  %s2 = inlined_call_operand.vmem [shape: bf16[16,16], index: 2, kind: input, shape index: {}]
  %s3 = inlined_call_operand.vmem [shape: bf16[16,64], index: 3, kind: input, shape index: {}]
  %s4 = inlined_call_operand.vmem [shape: f32[1,64], index: 4, kind: input, shape index: {}]
  %s5 = inlined_call_operand.vmem [shape: bf16[16,64], index: 5, kind: output, shape index: {}]
  %s6 = sld [smem:[#allocation0]]
  $region30: #{_lambda_.40} parent=0
    _
  %s8 = ssub.s32 1, %s6
  %s9 = scalar_select 0, %s8, %s6
  // Predicated region
  $region2: #{_lambda_.40} parent=0 // pred_check
    _
  $region3: #{_lambda_.40} parent=0 // pred_check_branch
    %11 = sbr.rel (0) target = $region5
  $region4: #{_lambda_.40} parent=0 // pred_region
    _
  $region5: #{_lambda_.40} parent=0 // pred_fallthru
    _
  // Predicated region
  $region6: #{_lambda_.40} parent=0 // pred_check
    _
  $region7: #{_lambda_.40} parent=0 // pred_check_branch
    %13 = sbr.rel (0) target = $region9
  $region8: #{_lambda_.40} parent=0 // pred_region
    _
  $region9: #{_lambda_.40} parent=0 // pred_fallthru
    _
  // Predicated region
  $region10: #{_lambda_.40} parent=0 // pred_check
    _
  $region11: #{_lambda_.40} parent=0 // pred_check_branch
    %15 = sbr.rel (0) target = $region13
  $region12: #{_lambda_.40} parent=0 // pred_region
    _
  $region13: #{_lambda_.40} parent=0 // pred_fallthru
    _
  // Predicated region
  $region14: #{_lambda_.40} parent=0 // pred_check
    _
  $region15: #{_lambda_.40} parent=0 // pred_check_branch
    %17 = sbr.rel (0) target = $region17
  $region16: #{_lambda_.40} parent=0 // pred_region
    _
  $region17: #{_lambda_.40} parent=0 // pred_fallthru
    _
  // Predicated region
  $region18: #{_lambda_.40} parent=0 // pred_check
    _
  $region19: #{_lambda_.40} parent=0 // pred_check_branch
    %19 = sbr.rel (0) target = $region21
  $region20: #{_lambda_.40} parent=0 // pred_region
    _
  $region21: #{_lambda_.40} parent=0 // pred_fallthru
    _
  %v21 = vld [vmem:[%s0] sm:$0xf]
  %v22 = vld [vmem:[%s0 + $0x4] sm:$0xf]
  %v23 = vld [vmem:[%s1] sm:$0xf]
  %v24 = vld [vmem:[%s1 + $0x4] sm:$0xf]
  %v25 = vld [vmem:[%s1 + $0x8] sm:$0xf]
  %v26 = vld [vmem:[%s1 + $0xc] sm:$0xf]
  %v27 = vld [vmem:[%s2] sm:$0xf]
  %v28 = vld [vmem:[%s2 + $0x4] sm:$0xf]
  %v29 = vld [vmem:[%s3] sm:$0xf]
  %v30 = vld [vmem:[%s3 + $0x4] sm:$0xf]
  %v33 = vunpack.c.l.b16 %v27
  %v34 = vunpack.c.l.b16 %v28
  %v35 = vpack.c.b16 %v34, %v33
  %v38 = vunpack.c.l.b16 %v29
  %v39 = vunpack.c.l.b16 %v30
  %v40 = vpack.c.b16 %v39, %v38
  %vm42 = vcmask 130048
  %v44 = vsel %vm42, %v35, 0
  %46 = vmatpush.bf16.msra.mxu0 0
  %47 = vmatpush.bf16.msra.mxu0 0
  %48 = vmatpush.bf16.msra.mxu0 0
  %49 = vmatpush.bf16.msra.mxu0 0
  %50 = vmatpush.bf16.msra.mxu0 0
  %51 = vmatpush.bf16.msra.mxu0 0
  %52 = vmatpush.bf16.msra.mxu0 0
  %53 = vmatpush.bf16.msra.mxu0 %v40
  %54 = vmatmul.bf16.gmra.mxu0 %v44
  %v55 = vpop.f32.mrf.mxu0
  %v56 = vadd.f32 0.0, %v55
  %v57 = vpop.f32.mrf.mxu0
  %v58 = vadd.f32 0.0, %v57
  %59 = vdwg.mxu0
  %v62 = vunpack.c.l.b16 %v21
  %v63 = vunpack.c.l.b16 %v22
  %v64 = vpack.c.b16 %v63, %v62
  %v69 = vunpack.c.l.b16 %v23
  %v70 = vunpack.c.l.b16 %v24
  %v71 = vunpack.c.l.b16 %v25
  %v72 = vunpack.c.l.b16 %v26
  %v73 = vpack.c.b16 %v70, %v69
  %v74 = vpack.c.b16 %v72, %v71
  %vm77 = vcmask 261120
  %v79 = vsel %vm77, %v64, 0
  %81 = vmatpush.bf16.msra.mxu0 0
  %82 = vmatpush.bf16.msra.mxu0 0
  %83 = vmatpush.bf16.msra.mxu0 0
  %84 = vmatpush.bf16.msra.mxu0 0
  %85 = vmatpush.bf16.msra.mxu0 0
  %86 = vmatpush.bf16.msra.mxu0 0
  %87 = vmatpush.bf16.msra.mxu0 %v74
  %88 = vmatpush.bf16.msra.mxu0 %v73
  %89 = vmatmul.bf16.gmra.mxu0 %v79
  %v90 = vpop.f32.mrf.mxu0
  %v91 = vadd.f32 %v56, %v90
  %v92 = vpop.f32.mrf.mxu0
  %v93 = vadd.f32 %v58, %v92
  %94 = vdwg.mxu0
  %v95 = vld [vmem:[%s4] sm:$0x1]
  %v97 = vperm.slane %v95, 0
  %v99 = vadd.f32 %v91, %v97
  %v100 = vadd.f32 %v93, %v97
  %v101 = vmul.f32 %v99, 0.5
  %v102 = vmul.f32 %v100, 0.5
  %v103 = vmul.f32 %v99, 0.044715
  %v104 = vmul.f32 %v100, 0.044715
  %v105 = vmul.f32 %v103, %v99
  %v106 = vmul.f32 %v104, %v100
  %v107 = vmul.f32 %v105, %v99
  %v108 = vmul.f32 %v106, %v100
  %v109 = vadd.f32 %v99, %v107
  %v110 = vadd.f32 %v100, %v108
  %v111 = vmul.f32 %v109, 0.7978846
  %v112 = vmul.f32 %v110, 0.7978846
  %v113 = vtanh.pop %v111
  %v114 = vtanh.pop %v112
  %v115 = vadd.f32 %v113, 1.0
  %v116 = vadd.f32 %v114, 1.0
  %v117 = vmul.f32 %v101, %v115
  %v118 = vmul.f32 %v102, %v116
  %v119 = vpack.c.bf16 %v117, %v117
  %v120 = vpack.c.bf16 %v118, %v118
  %vm121 = vcmask 519168
  %122 = vst.msk [vmem:[%s5] sm:$0xf] %vm121, %v119
  %123 = vst.msk [vmem:[%s5 + $0x4] sm:$0xf] %vm121, %v120
  // Predicated region
  $region22: #{_lambda_.40} parent=0 // pred_check
    _
  $region23: #{_lambda_.40} parent=0 // pred_check_branch
    %125 = sbr.rel (0) target = $region25
  $region24: #{_lambda_.40} parent=0 // pred_region
    _
  $region25: #{_lambda_.40} parent=0 // pred_fallthru
    _
  // Predicated region
  $region26: #{_lambda_.40} parent=0 // pred_check
    _
  $region27: #{_lambda_.40} parent=0 // pred_check_branch
    %127 = sbr.rel (0) target = $region29
  $region28: #{_lambda_.40} parent=0 // pred_region
    _
  $region29: #{_lambda_.40} parent=0 // pred_fallthru
    _

// kernel: _lambda_.43
$region0: #{_lambda_.43}
  #allocation0 [shape = 'u32[]', space=smem, size = 0x4, offset = 0x4, fixed_abs, tag = 'smem constant byte address 0x4 - core index']
  #allocation1 [shape = 'u32[72,128]{1,0:T(1,128)}', space=vmem, size = 0x9000, scoped, tag = 'internal scratch']
  %s0 = inlined_call_operand.vmem [shape: bf16[2,32], index: 0, kind: input, shape index: {}]
  %s1 = inlined_call_operand.vmem [shape: bf16[32,32], index: 1, kind: input, shape index: {}]
  %s2 = inlined_call_operand.vmem [shape: f32[1,32], index: 2, kind: input, shape index: {}]
  %s3 = inlined_call_operand.hbm [shape: f32[2,32], index: 3, kind: output, shape index: {}]
  %s4 = sld [smem:[#allocation0]]
  $region22: #{_lambda_.43} parent=0
    _
  %s6 = ssub.s32 1, %s4
  %s7 = scalar_select 0, %s6, %s4
  $region1: #{_lambda_.43} parent=0
    #allocation2 [shape = 'u8[1024]{0}', space=vmem, size = 0x400, scoped, tag = 'output window, operand 0, single buffered']
    #allocation3 [shape = 's32[1]{0}', space=sflag, size = 0x4, scoped, tag = 'scoped memory for _lambda_.43']
    %8 = vsyncpa [#allocation3], 0
    // Predicated region
    $region2: #{_lambda_.43} parent=1 // pred_check
      _
    $region3: #{_lambda_.43} parent=1 // pred_check_branch
      %10 = sbr.rel (0) target = $region5
    $region4: #{_lambda_.43} parent=1 // pred_region
      _
    $region5: #{_lambda_.43} parent=1 // pred_fallthru
      _
    // Predicated region
    $region6: #{_lambda_.43} parent=1 // pred_check
      _
    $region7: #{_lambda_.43} parent=1 // pred_check_branch
      %12 = sbr.rel (0) target = $region9
    $region8: #{_lambda_.43} parent=1 // pred_region
      _
    $region9: #{_lambda_.43} parent=1 // pred_fallthru
      _
    // Predicated region
    $region10: #{_lambda_.43} parent=1 // pred_check
      _
    $region11: #{_lambda_.43} parent=1 // pred_check_branch
      %14 = sbr.rel (0) target = $region13
    $region12: #{_lambda_.43} parent=1 // pred_region
      _
    $region13: #{_lambda_.43} parent=1 // pred_fallthru
      _
    %v16 = vld [vmem:[%s0] sm:$0x1]
    %v17 = vld [vmem:[%s1] sm:$0xf]
    %v18 = vld [vmem:[%s1 + $0x4] sm:$0xf]
    %v19 = vld [vmem:[%s1 + $0x8] sm:$0xf]
    %v20 = vld [vmem:[%s1 + $0xc] sm:$0xf]
    %v21 = vld [vmem:[%s2] sm:$0x1]
    %v23 = vperm.slane %v21, 0
    %v29 = vunpack.c.l.b16 %v17
    %v30 = vunpack.c.l.b16 %v18
    %v31 = vunpack.c.l.b16 %v19
    %v32 = vunpack.c.l.b16 %v20
    %v33 = vpack.c.b16 %v30, %v29
    %v34 = vpack.c.b16 %v32, %v31
    %vm37 = vcmask 261120
    %v39 = vsel %vm37, %v16, 0
    %41 = vmatpush.bf16.msra.mxu0 0
    %42 = vmatpush.bf16.msra.mxu0 0
    %43 = vmatpush.bf16.msra.mxu0 0
    %44 = vmatpush.bf16.msra.mxu0 0
    %45 = vmatpush.bf16.msra.mxu0 0
    %46 = vmatpush.bf16.msra.mxu0 0
    %47 = vmatpush.bf16.msra.mxu0 %v34
    %48 = vmatpush.bf16.msra.mxu0 %v33
    %49 = vmatmul.bf16.gmra.mxu0 %v39
    %v50 = vpop.f32.mrf.mxu0
    %v51 = vadd.f32 %v23, %v50
    %v52 = vpop.f32.mrf.mxu0
    %53 = vdwg.mxu0
    %v54 = vtanh.pop %v51
    %vm55 = vcmask 254976
    %56 = vst.msk [vmem:[#allocation2] sm:$0x3] %vm55, %v54
    // Predicated region
    $region14: #{_lambda_.43} parent=1 // pred_check
      _
    $region15: #{_lambda_.43} parent=1 // pred_check_branch
      %58 = sbr.rel (0) target = $region17
    $region16: #{_lambda_.43} parent=1 // pred_region
      %60 = vsyncadd [#allocation3], 0
      %s62 = sshll.u32 [#allocation2], 4
      %s63 = int_to_ptr.vmem [resolvable:$true] %s62
      %s64 = sshll.u32 %s3, 4
      %s65 = int_to_ptr.hbm [resolvable:$true] %s64
      %67 = dma.vmem_to_hbm [thread:$0]  %s63, 32, %s65, [#allocation3]
    $region17: #{_lambda_.43} parent=1 // pred_fallthru
      _
    // Predicated region
    $region18: #{_lambda_.43} parent=1 // pred_check
      _
    $region19: #{_lambda_.43} parent=1 // pred_check_branch
      %69 = sbr.rel (0) target = $region21
    $region20: #{_lambda_.43} parent=1 // pred_region
      %71 = dma.done [#allocation3], 32
    $region21: #{_lambda_.43} parent=1 // pred_fallthru
      _
    %72 = vsyncpa [#allocation3], 1

</llo_original>
